<compile_context>
chip_gen: v7x
topology: tpu7x:2x2x1
jax: 0.10.0
libtpu: 0.0.40
codegen_flags: <defaults>
</compile_context>

<pallas_src>
import functools

import jax
import jax.numpy as jnp
import numpy as np
from jax import lax
from jax.experimental import pallas as pl
from jax.experimental.pallas import tpu as pltpu


def _round_up(x, m):
    return (x + m - 1) // m * m


# ----------------------------------------------------------------------------
# Pallas kernel: one grid step = one GRU direction.
# ----------------------------------------------------------------------------
def _bidir_gru_kernel(T, B, H, x_ref, wih_ref, whh_ref, bin_ref, bhn_ref,
                      out_ref, gi_ref):
    d = pl.program_id(0)                                  # 0 = forward, 1 = backward

    # Hoisted input projection for ALL gates & timesteps in ONE fused MXU matmul:
    # (T*B, I) @ (I, 3H) -> (T*B, 3H), biases pre-folded, f32 accumulation.
    gi_ref[...] = (jnp.dot(x_ref[...], wih_ref[0],
                           preferred_element_type=jnp.float32)
                   + bin_ref[0])

    # Recurrent weights (fused gate layout) + remaining bias stay resident.
    w_hh = whh_ref[0]                                     # (H, 3H), f32 or bf16
    b_hn = jnp.broadcast_to(bhn_ref[0], (B, H))           # hoisted (no per-step re-emit)

    def step(t, h):
        # forward walks t = 0..T-1; backward walks t = T-1..0 (scalar-slot work only).
        t_eff = jnp.where(d == 0, t, T - 1 - t)
        row = pl.multiple_of(t_eff * B, 8)                # sublane-aligned: B % 8 == 0
        gi_t = gi_ref[pl.ds(row, B), :]                   # (B, 3H) f32, aligned slice

        # Single fused recurrent matmul: one MXU push/pop per timestep.
        gh = jnp.dot(h.astype(w_hh.dtype), w_hh,
                     preferred_element_type=jnp.float32)  # (B, 3H) f32

        # Gate slices are lane-aligned (H % 128 == 0 after wrapper padding).
        r = jax.nn.sigmoid(gi_t[:, 0 * H:1 * H] + gh[:, 0 * H:1 * H])
        z = jax.nn.sigmoid(gi_t[:, 1 * H:2 * H] + gh[:, 1 * H:2 * H])
        n = jnp.tanh(gi_t[:, 2 * H:3 * H] + r * (gh[:, 2 * H:3 * H] + b_hn))
        h_new = n + z * (h - n)                           # == (1-z)*n + z*h, 1 fewer VPU op

        out_ref[0, t_eff] = h_new.astype(out_ref.dtype)   # full (B,H)=(8k,128k) tile store
        return h_new

    h0 = jnp.zeros((B, H), jnp.float32)
    lax.fori_loop(0, T, step, h0, unroll=min(T, 8))       # bounded unroll


def _bidir_gru_pallas(x_flat, w_ih, w_hh, b_in, b_hn, *, T, B, H):
    """x_flat: (T*B, I) (already padded / cast).
       w_ih: (2, I, 3H), w_hh: (2, H, 3H) — fused gate layout, columns [r | z | n].
       b_in: (2, 1, 3H) folded bias added to the input projection.
       b_hn: (2, 1, H)  b_hh of the n gate (kept inside r * (...)).
       Returns out_dir: (2, T, B, H), out_dir[d, t] = hidden of direction d at time t."""
    I = x_flat.shape[-1]
    kernel = functools.partial(_bidir_gru_kernel, T, B, H)

    def build(single_buffer_resident):
        # Weights / biases / x gain nothing from double buffering (x's block never
        # changes; each direction uses its weights exactly once) -> Buffered(1).
        resident = ({"pipeline_mode": pl.Buffered(1)}
                    if single_buffer_resident else {})
        return pl.pallas_call(
            kernel,
            out_shape=jax.ShapeDtypeStruct((2, T, B, H), jnp.float32),
            grid_spec=pltpu.PrefetchScalarGridSpec(
                num_scalar_prefetch=0,
                grid=(2,),                                    # one step per direction
                in_specs=[
                    pl.BlockSpec((T * B, I), lambda d: (0, 0), **resident),
                    pl.BlockSpec((1, I, 3 * H), lambda d: (d, 0, 0), **resident),
                    pl.BlockSpec((1, H, 3 * H), lambda d: (d, 0, 0), **resident),
                    pl.BlockSpec((1, 1, 3 * H), lambda d: (d, 0, 0), **resident),
                    pl.BlockSpec((1, 1, H), lambda d: (d, 0, 0), **resident),
                ],
                out_specs=pl.BlockSpec((1, T, B, H), lambda d: (d, 0, 0, 0)),
                scratch_shapes=[pltpu.VMEM((T * B, 3 * H), jnp.float32)],  # hoisted gi
            ),
            compiler_params=pltpu.CompilerParams(
                dimension_semantics=("parallel",),            # 2 dirs -> 2 TCs on v7x
                vmem_limit_bytes=64 * 1024 * 1024,            # <= v7x per-TC physical VMEM
            ),
        )

    try:
        out = build(True)(x_flat, w_ih, w_hh, b_in, b_hn)
        return jax.block_until_ready(out)
    except Exception:
        # pipeline_mode=pl.Buffered(1) unsupported in this build: fall back to the
        # default double-buffered specs (identical numerics, slightly more VMEM).
        return build(False)(x_flat, w_ih, w_hh, b_in, b_hn)


# ----------------------------------------------------------------------------
# Parameter preparation (PyTorch nn.GRU layout -> fused, padded kernel layout)
# ----------------------------------------------------------------------------
def _prepare_kernel_params(params, H, Hp, Ip, mm_dtype):
    w_ih = params["w_ih"]                                  # (2, 3H, I)
    w_hh = params["w_hh"]                                  # (2, 3H, H)
    I = w_ih.shape[-1]
    b_ih = params["b_ih"].reshape(2, 3, H)
    b_hh = params["b_hh"].reshape(2, 3, H)

    # Per-gate (dir, gate, in, out) layout, then zero-pad contraction/output dims.
    w_ih_g = jnp.transpose(w_ih.reshape(2, 3, H, I), (0, 1, 3, 2))   # (2,3,I,H)
    w_hh_g = jnp.transpose(w_hh.reshape(2, 3, H, H), (0, 1, 3, 2))   # (2,3,H,H)
    w_ih_g = jnp.pad(w_ih_g, ((0, 0), (0, 0), (0, Ip - I), (0, Hp - H)))
    w_hh_g = jnp.pad(w_hh_g, ((0, 0), (0, 0), (0, Hp - H), (0, Hp - H)))

    # Fuse gates along the output dim: columns ordered [r | z | n].
    w_ih_f = jnp.transpose(w_ih_g, (0, 2, 1, 3)).reshape(2, Ip, 3 * Hp)
    w_hh_f = jnp.transpose(w_hh_g, (0, 2, 1, 3)).reshape(2, Hp, 3 * Hp)

    # r, z gates: fold b_ih + b_hh into the input projection.
    # n gate: fold only b_ih; b_hh_n must stay inside r * (W_hn h + b_hn).
    fold_mask = jnp.array([1.0, 1.0, 0.0], jnp.float32)[None, :, None]
    b_in = b_ih + b_hh * fold_mask                                   # (2,3,H)
    b_in = jnp.pad(b_in, ((0, 0), (0, 0), (0, Hp - H))).reshape(2, 1, 3 * Hp)
    b_hn = jnp.pad(b_hh[:, 2, :], ((0, 0), (0, Hp - H)))[:, None, :]  # (2,1,Hp)

    return (w_ih_f.astype(mm_dtype), w_hh_f.astype(mm_dtype),
            b_in.astype(jnp.float32), b_hn.astype(jnp.float32))


# ----------------------------------------------------------------------------
# EncoderRNN forward (non-packed path of the PyTorch module)
# ----------------------------------------------------------------------------
def encoder_rnn_forward(x, params, *, use_bf16_matmul=False):
    """x: (T, B, input_size) f32 -> (output_t [B,T,2H], lengths, h_n_fixed [B,2H]).
       use_bf16_matmul: cast matmul operands to bf16 (native MXU path on v6e/v7x);
       accumulation and gate math stay f32."""
    T, B, I = x.shape
    H = params["w_hh"].shape[-1]

    # Pad to TPU-friendly shapes: B -> x8 (sublanes), H / I -> x128 (lanes).
    # Zero padding is exact for the GRU (padded units stay 0, contribute 0).
    Bp = _round_up(B, 8)
    Hp = _round_up(H, 128)
    Ip = _round_up(I, 128)

    mm_dtype = jnp.bfloat16 if use_bf16_matmul else jnp.float32
    w_ih_f, w_hh_f, b_in, b_hn = _prepare_kernel_params(params, H, Hp, Ip, mm_dtype)

    x_p = jnp.pad(x, ((0, 0), (0, Bp - B), (0, Ip - I))).astype(mm_dtype)
    x_flat = x_p.reshape(T * Bp, Ip)

    out_dir = _bidir_gru_pallas(x_flat, w_ih_f, w_hh_f, b_in, b_hn,
                                T=T, B=Bp, H=Hp)                     # (2, T, Bp, Hp)
    out_dir = out_dir[:, :, :B, :H]                                  # strip padding

    # output[t] = concat(fwd hidden at t, bwd hidden at t) -> (T, B, 2H)
    output = jnp.concatenate([out_dir[0], out_dir[1]], axis=-1)
    output_t = jnp.transpose(output, (1, 0, 2))                      # (B, T, 2H)

    # Reproduces the PyTorch code verbatim: lengths = [output.size(1)] * output.size(0)
    # where output is still time-first, i.e. a list of length T filled with B.
    lengths = [B] * T

    # nn.GRU h_n: (2, B, H). fwd final = hidden at t=T-1, bwd final = hidden at t=0.
    h_n = jnp.stack([out_dir[0, T - 1], out_dir[1, 0]], axis=0)      # (2, B, H)
    h_n_fixed = jnp.transpose(h_n, (1, 0, 2)).reshape(B, 2 * H)
    return output_t, lengths, h_n_fixed


# ----------------------------------------------------------------------------
# Pure-JAX reference (for correctness check), using PyTorch-layout params
# ----------------------------------------------------------------------------
def _gru_dir_ref(x, w_ih, w_hh, b_ih, b_hh):
    H = w_hh.shape[-1]

    def step(h, xt):
        gi = xt @ w_ih.T + b_ih
        gh = h @ w_hh.T + b_hh
        r = jax.nn.sigmoid(gi[:, :H] + gh[:, :H])
        z = jax.nn.sigmoid(gi[:, H:2 * H] + gh[:, H:2 * H])
        n = jnp.tanh(gi[:, 2 * H:] + r * gh[:, 2 * H:])
        h_new = (1.0 - z) * n + z * h
        return h_new, h_new

    h0 = jnp.zeros((x.shape[1], H), jnp.float32)
    hT, hs = jax.lax.scan(step, h0, x)
    return hs, hT


def encoder_rnn_forward_ref(x, params):
    w_ih, w_hh = params["w_ih"], params["w_hh"]
    b_ih, b_hh = params["b_ih"], params["b_hh"]
    fwd_out, fwd_h = _gru_dir_ref(x, w_ih[0], w_hh[0], b_ih[0], b_hh[0])
    bwd_out_rev, bwd_h = _gru_dir_ref(x[::-1], w_ih[1], w_hh[1], b_ih[1], b_hh[1])
    bwd_out = bwd_out_rev[::-1]
    output = jnp.concatenate([fwd_out, bwd_out], axis=-1)            # (T, B, 2H)
    output_t = jnp.transpose(output, (1, 0, 2))
    h_n = jnp.stack([fwd_h, bwd_h], axis=0)                          # (2, B, H)
    h_n_fixed = jnp.transpose(h_n, (1, 0, 2)).reshape(x.shape[1], -1)
    return output_t, h_n_fixed


# ----------------------------------------------------------------------------
# Deterministic parameter init (same shapes as nn.GRU(input, hidden, bidirectional=True))
# ----------------------------------------------------------------------------
def init_params(key, input_size, hidden_size):
    k = 1.0 / np.sqrt(hidden_size)
    keys = jax.random.split(key, 4)
    w_ih = jax.random.uniform(keys[0], (2, 3 * hidden_size, input_size),
                              jnp.float32, -k, k)
    w_hh = jax.random.uniform(keys[1], (2, 3 * hidden_size, hidden_size),
                              jnp.float32, -k, k)
    b_ih = jax.random.uniform(keys[2], (2, 3 * hidden_size), jnp.float32, -k, k)
    b_hh = jax.random.uniform(keys[3], (2, 3 * hidden_size), jnp.float32, -k, k)
    return {"w_ih": w_ih, "w_hh": w_hh, "b_ih": b_ih, "b_hh": b_hh}


if __name__ == "__main__":
    T, B = 8, 4
    input_size, hidden_size = 16, 32

    key = jax.random.PRNGKey(0)
    kx, kp = jax.random.split(key)
    x = jax.random.normal(kx, (T, B, input_size), jnp.float32)
    params = init_params(kp, input_size, hidden_size)

    ref_out, ref_hn = encoder_rnn_forward_ref(x, params)

    # f32-operand MXU path (v5e default / reference-precision).
    output_t, lengths, h_n_fixed = encoder_rnn_forward(x, params, use_bf16_matmul=False)
    output_t, h_n_fixed = jax.block_until_ready((output_t, h_n_fixed))
    np.testing.assert_allclose(np.asarray(output_t), np.asarray(ref_out),
                               rtol=1e-4, atol=1e-4)
    np.testing.assert_allclose(np.asarray(h_n_fixed), np.asarray(ref_hn),
                               rtol=1e-4, atol=1e-4)

    # bf16-operand MXU path (v6e/v7x-oriented) — looser tolerance for bf16 rounding.
    output_t_bf, _, h_n_bf = encoder_rnn_forward(x, params, use_bf16_matmul=True)
    output_t_bf, h_n_bf = jax.block_until_ready((output_t_bf, h_n_bf))
    np.testing.assert_allclose(np.asarray(output_t_bf), np.asarray(ref_out),
                               rtol=5e-2, atol=5e-2)
    np.testing.assert_allclose(np.asarray(h_n_bf), np.asarray(ref_hn),
                               rtol=5e-2, atol=5e-2)

    assert output_t.shape == (B, T, 2 * hidden_size)
    assert h_n_fixed.shape == (B, 2 * hidden_size)
    assert len(lengths) == T and lengths[0] == B  # mirrors the PyTorch code's lengths

    print("KERNEL_OK")
</pallas_src>

<mosaic_0001>
module attributes {stable_mosaic.version = 11 : i64} {
  func.func @_bidir_gru_kernel(%arg0: i32, %arg1: memref<64x128xf32, #tpu.memory_space<vmem>>, %arg2: memref<1x128x384xf32, #tpu.memory_space<vmem>>, %arg3: memref<1x128x384xf32, #tpu.memory_space<vmem>>, %arg4: memref<1x1x384xf32, #tpu.memory_space<vmem>>, %arg5: memref<1x1x128xf32, #tpu.memory_space<vmem>>, %arg6: memref<1x8x8x128xf32, #tpu.memory_space<vmem>>, %arg7: memref<64x384xf32, #tpu.memory_space<vmem>>) attributes {dimension_semantics = [#tpu.dimension_semantics<parallel>], iteration_bounds = array<i64: 2>, scalar_prefetch = 0 : i64, scratch_operands = 1 : i64, tpu.core_type = #tpu.core_type<tc>, window_params = [{pipeline_mode = #tpu.pipeline_mode<synchronous>, transform_indices = @transform_0, window_bounds = array<i64: 64, 128>}, {pipeline_mode = #tpu.pipeline_mode<synchronous>, transform_indices = @transform_1, window_bounds = array<i64: 1, 128, 384>}, {pipeline_mode = #tpu.pipeline_mode<synchronous>, transform_indices = @transform_2, window_bounds = array<i64: 1, 128, 384>}, {pipeline_mode = #tpu.pipeline_mode<synchronous>, transform_indices = @transform_3, window_bounds = array<i64: 1, 1, 384>}, {pipeline_mode = #tpu.pipeline_mode<synchronous>, transform_indices = @transform_4, window_bounds = array<i64: 1, 1, 128>}, {transform_indices = @transform_5, window_bounds = array<i64: 1, 8, 8, 128>}]} {
    %c0 = arith.constant 0 : index
    %c0_0 = arith.constant 0 : index
    %0 = vector.load %arg1[%c0, %c0_0] : memref<64x128xf32, #tpu.memory_space<vmem>>, vector<64x128xf32>
    %c0_1 = arith.constant 0 : index
    %c0_2 = arith.constant 0 : index
    %c0_3 = arith.constant 0 : index
    %1 = vector.load %arg2[%c0_1, %c0_2, %c0_3] : memref<1x128x384xf32, #tpu.memory_space<vmem>>, vector<1x128x384xf32>
    %2 = vector.shape_cast %1 : vector<1x128x384xf32> to vector<128x384xf32>
    %cst = arith.constant dense<0.000000e+00> : vector<64x384xf32>
    %3 = tpu.matmul %0, %2, %cst {dimension_numbers = #tpu.dot_dimension_numbers<[1], [0], [0], [1], [0, 0, 1, 1], [], []>} : vector<64x128xf32>, vector<128x384xf32>, vector<64x384xf32> -> vector<64x384xf32>
    %c0_4 = arith.constant 0 : index
    %c0_5 = arith.constant 0 : index
    %c0_6 = arith.constant 0 : index
    %4 = vector.load %arg4[%c0_4, %c0_5, %c0_6] : memref<1x1x384xf32, #tpu.memory_space<vmem>>, vector<1x1x384xf32>
    %5 = vector.shape_cast %4 : vector<1x1x384xf32> to vector<1x384xf32>
    %6 = vector.broadcast %5 : vector<1x384xf32> to vector<64x384xf32>
    %7 = arith.addf %3, %6 : vector<64x384xf32>
    %c0_7 = arith.constant 0 : index
    %c0_8 = arith.constant 0 : index
    %8 = vector.load %arg7[%c0_7, %c0_8] : memref<64x384xf32, #tpu.memory_space<vmem>>, vector<64x384xf32>
    tpu.vector_store %arg7[%c0_7, %c0_8], %7 {strides = array<i32>} : memref<64x384xf32, #tpu.memory_space<vmem>>, vector<64x384xf32>,
    %c0_9 = arith.constant 0 : index
    %c0_10 = arith.constant 0 : index
    %c0_11 = arith.constant 0 : index
    %9 = vector.load %arg3[%c0_9, %c0_10, %c0_11] : memref<1x128x384xf32, #tpu.memory_space<vmem>>, vector<1x128x384xf32>
    %10 = vector.shape_cast %9 : vector<1x128x384xf32> to vector<128x384xf32>
    %c0_12 = arith.constant 0 : index
    %c0_13 = arith.constant 0 : index
    %c0_14 = arith.constant 0 : index
    %11 = vector.load %arg5[%c0_12, %c0_13, %c0_14] : memref<1x1x128xf32, #tpu.memory_space<vmem>>, vector<1x1x128xf32>
    %12 = vector.shape_cast %11 : vector<1x1x128xf32> to vector<1x128xf32>
    %13 = vector.shape_cast %12 : vector<1x128xf32> to vector<1x128xf32>
    %14 = vector.broadcast %13 : vector<1x128xf32> to vector<8x128xf32>
    %cst_15 = arith.constant 0.000000e+00 : f32
    %15 = vector.broadcast %cst_15 : f32 to vector<8x128xf32>
    %c0_i32 = arith.constant 0 : i32
    %c0_i32_16 = arith.constant 0 : i32
    %16 = arith.cmpi eq, %arg0, %c0_i32_16 : i32
    %c7_i32 = arith.constant 7 : i32
    %17 = arith.subi %c7_i32, %c0_i32 : i32
    %18 = arith.select %16, %c0_i32, %17 : i32
    %c8_i32 = arith.constant 8 : i32
    %19 = arith.muli %18, %c8_i32 : i32
    %20 = tpu.assume_multiple %19, 8 : i32
    %21 = arith.index_cast %20 : i32 to index
    %c0_17 = arith.constant 0 : index
    %22 = vector.load %arg7[%21, %c0_17] : memref<64x384xf32, #tpu.memory_space<vmem>>, vector<8x384xf32>
    %cst_18 = arith.constant dense<0.000000e+00> : vector<8x384xf32>
    %23 = tpu.matmul %15, %10, %cst_18 {dimension_numbers = #tpu.dot_dimension_numbers<[1], [0], [0], [1], [0, 0, 1, 1], [], []>} : vector<8x128xf32>, vector<128x384xf32>, vector<8x384xf32> -> vector<8x384xf32>
    %24 = vector.extract_strided_slice %22 {offsets = [0, 0], sizes = [8, 128], strides = [1, 1]} : vector<8x384xf32> to vector<8x128xf32>
    %25 = vector.extract_strided_slice %23 {offsets = [0, 0], sizes = [8, 128], strides = [1, 1]} : vector<8x384xf32> to vector<8x128xf32>
    %26 = arith.addf %24, %25 : vector<8x128xf32>
    %27 = arith.negf %26 : vector<8x128xf32>
    %28 = math.exp %27 : vector<8x128xf32>
    %cst_19 = arith.constant 1.000000e+00 : f32
    %29 = vector.broadcast %cst_19 : f32 to vector<8x128xf32>
    %30 = arith.addf %29, %28 : vector<8x128xf32>
    %31 = arith.divf %29, %30 : vector<8x128xf32>
    %32 = vector.extract_strided_slice %22 {offsets = [0, 128], sizes = [8, 128], strides = [1, 1]} : vector<8x384xf32> to vector<8x128xf32>
    %33 = vector.extract_strided_slice %23 {offsets = [0, 128], sizes = [8, 128], strides = [1, 1]} : vector<8x384xf32> to vector<8x128xf32>
    %34 = arith.addf %32, %33 : vector<8x128xf32>
    %35 = arith.negf %34 : vector<8x128xf32>
    %36 = math.exp %35 : vector<8x128xf32>
    %cst_20 = arith.constant 1.000000e+00 : f32
    %37 = vector.broadcast %cst_20 : f32 to vector<8x128xf32>
    %38 = arith.addf %37, %36 : vector<8x128xf32>
    %39 = arith.divf %37, %38 : vector<8x128xf32>
    %40 = vector.extract_strided_slice %22 {offsets = [0, 256], sizes = [8, 128], strides = [1, 1]} : vector<8x384xf32> to vector<8x128xf32>
    %41 = vector.extract_strided_slice %23 {offsets = [0, 256], sizes = [8, 128], strides = [1, 1]} : vector<8x384xf32> to vector<8x128xf32>
    %42 = arith.addf %41, %14 : vector<8x128xf32>
    %43 = arith.mulf %31, %42 : vector<8x128xf32>
    %44 = arith.addf %40, %43 : vector<8x128xf32>
    %45 = math.tanh %44 : vector<8x128xf32>
    %46 = arith.subf %15, %45 : vector<8x128xf32>
    %47 = arith.mulf %39, %46 : vector<8x128xf32>
    %48 = arith.addf %45, %47 : vector<8x128xf32>
    %c0_21 = arith.constant 0 : index
    %49 = arith.index_cast %18 : i32 to index
    %c0_22 = arith.constant 0 : index
    %c0_23 = arith.constant 0 : index
    %50 = vector.load %arg6[%c0_21, %49, %c0_22, %c0_23] : memref<1x8x8x128xf32, #tpu.memory_space<vmem>>, vector<1x1x8x128xf32>
    %51 = vector.shape_cast %50 : vector<1x1x8x128xf32> to vector<8x128xf32>
    %52 = vector.shape_cast %48 : vector<8x128xf32> to vector<1x1x8x128xf32>
    tpu.vector_store %arg6[%c0_21, %49, %c0_22, %c0_23], %52 {strides = array<i32>} : memref<1x8x8x128xf32, #tpu.memory_space<vmem>>, vector<1x1x8x128xf32>,
    %c1_i32 = arith.constant 1 : i32
    %c0_i32_24 = arith.constant 0 : i32
    %53 = arith.cmpi eq, %arg0, %c0_i32_24 : i32
    %c7_i32_25 = arith.constant 7 : i32
    %54 = arith.subi %c7_i32_25, %c1_i32 : i32
    %55 = arith.select %53, %c1_i32, %54 : i32
    %c8_i32_26 = arith.constant 8 : i32
    %56 = arith.muli %55, %c8_i32_26 : i32
    %57 = tpu.assume_multiple %56, 8 : i32
    %58 = arith.index_cast %57 : i32 to index
    %c0_27 = arith.constant 0 : index
    %59 = vector.load %arg7[%58, %c0_27] : memref<64x384xf32, #tpu.memory_space<vmem>>, vector<8x384xf32>
    %cst_28 = arith.constant dense<0.000000e+00> : vector<8x384xf32>
    %60 = tpu.matmul %48, %10, %cst_28 {dimension_numbers = #tpu.dot_dimension_numbers<[1], [0], [0], [1], [0, 0, 1, 1], [], []>} : vector<8x128xf32>, vector<128x384xf32>, vector<8x384xf32> -> vector<8x384xf32>
    %61 = vector.extract_strided_slice %59 {offsets = [0, 0], sizes = [8, 128], strides = [1, 1]} : vector<8x384xf32> to vector<8x128xf32>
    %62 = vector.extract_strided_slice %60 {offsets = [0, 0], sizes = [8, 128], strides = [1, 1]} : vector<8x384xf32> to vector<8x128xf32>
    %63 = arith.addf %61, %62 : vector<8x128xf32>
    %64 = arith.negf %63 : vector<8x128xf32>
    %65 = math.exp %64 : vector<8x128xf32>
    %cst_29 = arith.constant 1.000000e+00 : f32
    %66 = vector.broadcast %cst_29 : f32 to vector<8x128xf32>
    %67 = arith.addf %66, %65 : vector<8x128xf32>
    %68 = arith.divf %66, %67 : vector<8x128xf32>
    %69 = vector.extract_strided_slice %59 {offsets = [0, 128], sizes = [8, 128], strides = [1, 1]} : vector<8x384xf32> to vector<8x128xf32>
    %70 = vector.extract_strided_slice %60 {offsets = [0, 128], sizes = [8, 128], strides = [1, 1]} : vector<8x384xf32> to vector<8x128xf32>
    %71 = arith.addf %69, %70 : vector<8x128xf32>
    %72 = arith.negf %71 : vector<8x128xf32>
    %73 = math.exp %72 : vector<8x128xf32>
    %cst_30 = arith.constant 1.000000e+00 : f32
    %74 = vector.broadcast %cst_30 : f32 to vector<8x128xf32>
    %75 = arith.addf %74, %73 : vector<8x128xf32>
    %76 = arith.divf %74, %75 : vector<8x128xf32>
    %77 = vector.extract_strided_slice %59 {offsets = [0, 256], sizes = [8, 128], strides = [1, 1]} : vector<8x384xf32> to vector<8x128xf32>
    %78 = vector.extract_strided_slice %60 {offsets = [0, 256], sizes = [8, 128], strides = [1, 1]} : vector<8x384xf32> to vector<8x128xf32>
    %79 = arith.addf %78, %14 : vector<8x128xf32>
    %80 = arith.mulf %68, %79 : vector<8x128xf32>
    %81 = arith.addf %77, %80 : vector<8x128xf32>
    %82 = math.tanh %81 : vector<8x128xf32>
    %83 = arith.subf %48, %82 : vector<8x128xf32>
    %84 = arith.mulf %76, %83 : vector<8x128xf32>
    %85 = arith.addf %82, %84 : vector<8x128xf32>
    %c0_31 = arith.constant 0 : index
    %86 = arith.index_cast %55 : i32 to index
    %c0_32 = arith.constant 0 : index
    %c0_33 = arith.constant 0 : index
    %87 = vector.load %arg6[%c0_31, %86, %c0_32, %c0_33] : memref<1x8x8x128xf32, #tpu.memory_space<vmem>>, vector<1x1x8x128xf32>
    %88 = vector.shape_cast %87 : vector<1x1x8x128xf32> to vector<8x128xf32>
    %89 = vector.shape_cast %85 : vector<8x128xf32> to vector<1x1x8x128xf32>
    tpu.vector_store %arg6[%c0_31, %86, %c0_32, %c0_33], %89 {strides = array<i32>} : memref<1x8x8x128xf32, #tpu.memory_space<vmem>>, vector<1x1x8x128xf32>,
    %c2_i32 = arith.constant 2 : i32
    %c0_i32_34 = arith.constant 0 : i32
    %90 = arith.cmpi eq, %arg0, %c0_i32_34 : i32
    %c7_i32_35 = arith.constant 7 : i32
    %91 = arith.subi %c7_i32_35, %c2_i32 : i32
    %92 = arith.select %90, %c2_i32, %91 : i32
    %c8_i32_36 = arith.constant 8 : i32
    %93 = arith.muli %92, %c8_i32_36 : i32
    %94 = tpu.assume_multiple %93, 8 : i32
    %95 = arith.index_cast %94 : i32 to index
    %c0_37 = arith.constant 0 : index
    %96 = vector.load %arg7[%95, %c0_37] : memref<64x384xf32, #tpu.memory_space<vmem>>, vector<8x384xf32>
    %cst_38 = arith.constant dense<0.000000e+00> : vector<8x384xf32>
    %97 = tpu.matmul %85, %10, %cst_38 {dimension_numbers = #tpu.dot_dimension_numbers<[1], [0], [0], [1], [0, 0, 1, 1], [], []>} : vector<8x128xf32>, vector<128x384xf32>, vector<8x384xf32> -> vector<8x384xf32>
    %98 = vector.extract_strided_slice %96 {offsets = [0, 0], sizes = [8, 128], strides = [1, 1]} : vector<8x384xf32> to vector<8x128xf32>
    %99 = vector.extract_strided_slice %97 {offsets = [0, 0], sizes = [8, 128], strides = [1, 1]} : vector<8x384xf32> to vector<8x128xf32>
    %100 = arith.addf %98, %99 : vector<8x128xf32>
    %101 = arith.negf %100 : vector<8x128xf32>
    %102 = math.exp %101 : vector<8x128xf32>
    %cst_39 = arith.constant 1.000000e+00 : f32
    %103 = vector.broadcast %cst_39 : f32 to vector<8x128xf32>
    %104 = arith.addf %103, %102 : vector<8x128xf32>
    %105 = arith.divf %103, %104 : vector<8x128xf32>
    %106 = vector.extract_strided_slice %96 {offsets = [0, 128], sizes = [8, 128], strides = [1, 1]} : vector<8x384xf32> to vector<8x128xf32>
    %107 = vector.extract_strided_slice %97 {offsets = [0, 128], sizes = [8, 128], strides = [1, 1]} : vector<8x384xf32> to vector<8x128xf32>
    %108 = arith.addf %106, %107 : vector<8x128xf32>
    %109 = arith.negf %108 : vector<8x128xf32>
    %110 = math.exp %109 : vector<8x128xf32>
    %cst_40 = arith.constant 1.000000e+00 : f32
    %111 = vector.broadcast %cst_40 : f32 to vector<8x128xf32>
    %112 = arith.addf %111, %110 : vector<8x128xf32>
    %113 = arith.divf %111, %112 : vector<8x128xf32>
    %114 = vector.extract_strided_slice %96 {offsets = [0, 256], sizes = [8, 128], strides = [1, 1]} : vector<8x384xf32> to vector<8x128xf32>
    %115 = vector.extract_strided_slice %97 {offsets = [0, 256], sizes = [8, 128], strides = [1, 1]} : vector<8x384xf32> to vector<8x128xf32>
    %116 = arith.addf %115, %14 : vector<8x128xf32>
    %117 = arith.mulf %105, %116 : vector<8x128xf32>
    %118 = arith.addf %114, %117 : vector<8x128xf32>
    %119 = math.tanh %118 : vector<8x128xf32>
    %120 = arith.subf %85, %119 : vector<8x128xf32>
    %121 = arith.mulf %113, %120 : vector<8x128xf32>
    %122 = arith.addf %119, %121 : vector<8x128xf32>
    %c0_41 = arith.constant 0 : index
    %123 = arith.index_cast %92 : i32 to index
    %c0_42 = arith.constant 0 : index
    %c0_43 = arith.constant 0 : index
    %124 = vector.load %arg6[%c0_41, %123, %c0_42, %c0_43] : memref<1x8x8x128xf32, #tpu.memory_space<vmem>>, vector<1x1x8x128xf32>
    %125 = vector.shape_cast %124 : vector<1x1x8x128xf32> to vector<8x128xf32>
    %126 = vector.shape_cast %122 : vector<8x128xf32> to vector<1x1x8x128xf32>
    tpu.vector_store %arg6[%c0_41, %123, %c0_42, %c0_43], %126 {strides = array<i32>} : memref<1x8x8x128xf32, #tpu.memory_space<vmem>>, vector<1x1x8x128xf32>,
    %c3_i32 = arith.constant 3 : i32
    %c0_i32_44 = arith.constant 0 : i32
    %127 = arith.cmpi eq, %arg0, %c0_i32_44 : i32
    %c7_i32_45 = arith.constant 7 : i32
    %128 = arith.subi %c7_i32_45, %c3_i32 : i32
    %129 = arith.select %127, %c3_i32, %128 : i32
    %c8_i32_46 = arith.constant 8 : i32
    %130 = arith.muli %129, %c8_i32_46 : i32
    %131 = tpu.assume_multiple %130, 8 : i32
    %132 = arith.index_cast %131 : i32 to index
    %c0_47 = arith.constant 0 : index
    %133 = vector.load %arg7[%132, %c0_47] : memref<64x384xf32, #tpu.memory_space<vmem>>, vector<8x384xf32>
    %cst_48 = arith.constant dense<0.000000e+00> : vector<8x384xf32>
    %134 = tpu.matmul %122, %10, %cst_48 {dimension_numbers = #tpu.dot_dimension_numbers<[1], [0], [0], [1], [0, 0, 1, 1], [], []>} : vector<8x128xf32>, vector<128x384xf32>, vector<8x384xf32> -> vector<8x384xf32>
    %135 = vector.extract_strided_slice %133 {offsets = [0, 0], sizes = [8, 128], strides = [1, 1]} : vector<8x384xf32> to vector<8x128xf32>
    %136 = vector.extract_strided_slice %134 {offsets = [0, 0], sizes = [8, 128], strides = [1, 1]} : vector<8x384xf32> to vector<8x128xf32>
    %137 = arith.addf %135, %136 : vector<8x128xf32>
    %138 = arith.negf %137 : vector<8x128xf32>
    %139 = math.exp %138 : vector<8x128xf32>
    %cst_49 = arith.constant 1.000000e+00 : f32
    %140 = vector.broadcast %cst_49 : f32 to vector<8x128xf32>
    %141 = arith.addf %140, %139 : vector<8x128xf32>
    %142 = arith.divf %140, %141 : vector<8x128xf32>
    %143 = vector.extract_strided_slice %133 {offsets = [0, 128], sizes = [8, 128], strides = [1, 1]} : vector<8x384xf32> to vector<8x128xf32>
    %144 = vector.extract_strided_slice %134 {offsets = [0, 128], sizes = [8, 128], strides = [1, 1]} : vector<8x384xf32> to vector<8x128xf32>
    %145 = arith.addf %143, %144 : vector<8x128xf32>
    %146 = arith.negf %145 : vector<8x128xf32>
    %147 = math.exp %146 : vector<8x128xf32>
    %cst_50 = arith.constant 1.000000e+00 : f32
    %148 = vector.broadcast %cst_50 : f32 to vector<8x128xf32>
    %149 = arith.addf %148, %147 : vector<8x128xf32>
    %150 = arith.divf %148, %149 : vector<8x128xf32>
    %151 = vector.extract_strided_slice %133 {offsets = [0, 256], sizes = [8, 128], strides = [1, 1]} : vector<8x384xf32> to vector<8x128xf32>
    %152 = vector.extract_strided_slice %134 {offsets = [0, 256], sizes = [8, 128], strides = [1, 1]} : vector<8x384xf32> to vector<8x128xf32>
    %153 = arith.addf %152, %14 : vector<8x128xf32>
    %154 = arith.mulf %142, %153 : vector<8x128xf32>
    %155 = arith.addf %151, %154 : vector<8x128xf32>
    %156 = math.tanh %155 : vector<8x128xf32>
    %157 = arith.subf %122, %156 : vector<8x128xf32>
    %158 = arith.mulf %150, %157 : vector<8x128xf32>
    %159 = arith.addf %156, %158 : vector<8x128xf32>
    %c0_51 = arith.constant 0 : index
    %160 = arith.index_cast %129 : i32 to index
    %c0_52 = arith.constant 0 : index
    %c0_53 = arith.constant 0 : index
    %161 = vector.load %arg6[%c0_51, %160, %c0_52, %c0_53] : memref<1x8x8x128xf32, #tpu.memory_space<vmem>>, vector<1x1x8x128xf32>
    %162 = vector.shape_cast %161 : vector<1x1x8x128xf32> to vector<8x128xf32>
    %163 = vector.shape_cast %159 : vector<8x128xf32> to vector<1x1x8x128xf32>
    tpu.vector_store %arg6[%c0_51, %160, %c0_52, %c0_53], %163 {strides = array<i32>} : memref<1x8x8x128xf32, #tpu.memory_space<vmem>>, vector<1x1x8x128xf32>,
    %c4_i32 = arith.constant 4 : i32
    %c0_i32_54 = arith.constant 0 : i32
    %164 = arith.cmpi eq, %arg0, %c0_i32_54 : i32
    %c7_i32_55 = arith.constant 7 : i32
    %165 = arith.subi %c7_i32_55, %c4_i32 : i32
    %166 = arith.select %164, %c4_i32, %165 : i32
    %c8_i32_56 = arith.constant 8 : i32
    %167 = arith.muli %166, %c8_i32_56 : i32
    %168 = tpu.assume_multiple %167, 8 : i32
    %169 = arith.index_cast %168 : i32 to index
    %c0_57 = arith.constant 0 : index
    %170 = vector.load %arg7[%169, %c0_57] : memref<64x384xf32, #tpu.memory_space<vmem>>, vector<8x384xf32>
    %cst_58 = arith.constant dense<0.000000e+00> : vector<8x384xf32>
    %171 = tpu.matmul %159, %10, %cst_58 {dimension_numbers = #tpu.dot_dimension_numbers<[1], [0], [0], [1], [0, 0, 1, 1], [], []>} : vector<8x128xf32>, vector<128x384xf32>, vector<8x384xf32> -> vector<8x384xf32>
    %172 = vector.extract_strided_slice %170 {offsets = [0, 0], sizes = [8, 128], strides = [1, 1]} : vector<8x384xf32> to vector<8x128xf32>
    %173 = vector.extract_strided_slice %171 {offsets = [0, 0], sizes = [8, 128], strides = [1, 1]} : vector<8x384xf32> to vector<8x128xf32>
    %174 = arith.addf %172, %173 : vector<8x128xf32>
    %175 = arith.negf %174 : vector<8x128xf32>
    %176 = math.exp %175 : vector<8x128xf32>
    %cst_59 = arith.constant 1.000000e+00 : f32
    %177 = vector.broadcast %cst_59 : f32 to vector<8x128xf32>
    %178 = arith.addf %177, %176 : vector<8x128xf32>
    %179 = arith.divf %177, %178 : vector<8x128xf32>
    %180 = vector.extract_strided_slice %170 {offsets = [0, 128], sizes = [8, 128], strides = [1, 1]} : vector<8x384xf32> to vector<8x128xf32>
    %181 = vector.extract_strided_slice %171 {offsets = [0, 128], sizes = [8, 128], strides = [1, 1]} : vector<8x384xf32> to vector<8x128xf32>
    %182 = arith.addf %180, %181 : vector<8x128xf32>
    %183 = arith.negf %182 : vector<8x128xf32>
    %184 = math.exp %183 : vector<8x128xf32>
    %cst_60 = arith.constant 1.000000e+00 : f32
    %185 = vector.broadcast %cst_60 : f32 to vector<8x128xf32>
    %186 = arith.addf %185, %184 : vector<8x128xf32>
    %187 = arith.divf %185, %186 : vector<8x128xf32>
    %188 = vector.extract_strided_slice %170 {offsets = [0, 256], sizes = [8, 128], strides = [1, 1]} : vector<8x384xf32> to vector<8x128xf32>
    %189 = vector.extract_strided_slice %171 {offsets = [0, 256], sizes = [8, 128], strides = [1, 1]} : vector<8x384xf32> to vector<8x128xf32>
    %190 = arith.addf %189, %14 : vector<8x128xf32>
    %191 = arith.mulf %179, %190 : vector<8x128xf32>
    %192 = arith.addf %188, %191 : vector<8x128xf32>
    %193 = math.tanh %192 : vector<8x128xf32>
    %194 = arith.subf %159, %193 : vector<8x128xf32>
    %195 = arith.mulf %187, %194 : vector<8x128xf32>
    %196 = arith.addf %193, %195 : vector<8x128xf32>
    %c0_61 = arith.constant 0 : index
    %197 = arith.index_cast %166 : i32 to index
    %c0_62 = arith.constant 0 : index
    %c0_63 = arith.constant 0 : index
    %198 = vector.load %arg6[%c0_61, %197, %c0_62, %c0_63] : memref<1x8x8x128xf32, #tpu.memory_space<vmem>>, vector<1x1x8x128xf32>
    %199 = vector.shape_cast %198 : vector<1x1x8x128xf32> to vector<8x128xf32>
    %200 = vector.shape_cast %196 : vector<8x128xf32> to vector<1x1x8x128xf32>
    tpu.vector_store %arg6[%c0_61, %197, %c0_62, %c0_63], %200 {strides = array<i32>} : memref<1x8x8x128xf32, #tpu.memory_space<vmem>>, vector<1x1x8x128xf32>,
    %c5_i32 = arith.constant 5 : i32
    %c0_i32_64 = arith.constant 0 : i32
    %201 = arith.cmpi eq, %arg0, %c0_i32_64 : i32
    %c7_i32_65 = arith.constant 7 : i32
    %202 = arith.subi %c7_i32_65, %c5_i32 : i32
    %203 = arith.select %201, %c5_i32, %202 : i32
    %c8_i32_66 = arith.constant 8 : i32
    %204 = arith.muli %203, %c8_i32_66 : i32
    %205 = tpu.assume_multiple %204, 8 : i32
    %206 = arith.index_cast %205 : i32 to index
    %c0_67 = arith.constant 0 : index
    %207 = vector.load %arg7[%206, %c0_67] : memref<64x384xf32, #tpu.memory_space<vmem>>, vector<8x384xf32>
    %cst_68 = arith.constant dense<0.000000e+00> : vector<8x384xf32>
    %208 = tpu.matmul %196, %10, %cst_68 {dimension_numbers = #tpu.dot_dimension_numbers<[1], [0], [0], [1], [0, 0, 1, 1], [], []>} : vector<8x128xf32>, vector<128x384xf32>, vector<8x384xf32> -> vector<8x384xf32>
    %209 = vector.extract_strided_slice %207 {offsets = [0, 0], sizes = [8, 128], strides = [1, 1]} : vector<8x384xf32> to vector<8x128xf32>
    %210 = vector.extract_strided_slice %208 {offsets = [0, 0], sizes = [8, 128], strides = [1, 1]} : vector<8x384xf32> to vector<8x128xf32>
    %211 = arith.addf %209, %210 : vector<8x128xf32>
    %212 = arith.negf %211 : vector<8x128xf32>
    %213 = math.exp %212 : vector<8x128xf32>
    %cst_69 = arith.constant 1.000000e+00 : f32
    %214 = vector.broadcast %cst_69 : f32 to vector<8x128xf32>
    %215 = arith.addf %214, %213 : vector<8x128xf32>
    %216 = arith.divf %214, %215 : vector<8x128xf32>
    %217 = vector.extract_strided_slice %207 {offsets = [0, 128], sizes = [8, 128], strides = [1, 1]} : vector<8x384xf32> to vector<8x128xf32>
    %218 = vector.extract_strided_slice %208 {offsets = [0, 128], sizes = [8, 128], strides = [1, 1]} : vector<8x384xf32> to vector<8x128xf32>
    %219 = arith.addf %217, %218 : vector<8x128xf32>
    %220 = arith.negf %219 : vector<8x128xf32>
    %221 = math.exp %220 : vector<8x128xf32>
    %cst_70 = arith.constant 1.000000e+00 : f32
    %222 = vector.broadcast %cst_70 : f32 to vector<8x128xf32>
    %223 = arith.addf %222, %221 : vector<8x128xf32>
    %224 = arith.divf %222, %223 : vector<8x128xf32>
    %225 = vector.extract_strided_slice %207 {offsets = [0, 256], sizes = [8, 128], strides = [1, 1]} : vector<8x384xf32> to vector<8x128xf32>
    %226 = vector.extract_strided_slice %208 {offsets = [0, 256], sizes = [8, 128], strides = [1, 1]} : vector<8x384xf32> to vector<8x128xf32>
    %227 = arith.addf %226, %14 : vector<8x128xf32>
    %228 = arith.mulf %216, %227 : vector<8x128xf32>
    %229 = arith.addf %225, %228 : vector<8x128xf32>
    %230 = math.tanh %229 : vector<8x128xf32>
    %231 = arith.subf %196, %230 : vector<8x128xf32>
    %232 = arith.mulf %224, %231 : vector<8x128xf32>
    %233 = arith.addf %230, %232 : vector<8x128xf32>
    %c0_71 = arith.constant 0 : index
    %234 = arith.index_cast %203 : i32 to index
    %c0_72 = arith.constant 0 : index
    %c0_73 = arith.constant 0 : index
    %235 = vector.load %arg6[%c0_71, %234, %c0_72, %c0_73] : memref<1x8x8x128xf32, #tpu.memory_space<vmem>>, vector<1x1x8x128xf32>
    %236 = vector.shape_cast %235 : vector<1x1x8x128xf32> to vector<8x128xf32>
    %237 = vector.shape_cast %233 : vector<8x128xf32> to vector<1x1x8x128xf32>
    tpu.vector_store %arg6[%c0_71, %234, %c0_72, %c0_73], %237 {strides = array<i32>} : memref<1x8x8x128xf32, #tpu.memory_space<vmem>>, vector<1x1x8x128xf32>,
    %c6_i32 = arith.constant 6 : i32
    %c0_i32_74 = arith.constant 0 : i32
    %238 = arith.cmpi eq, %arg0, %c0_i32_74 : i32
    %c7_i32_75 = arith.constant 7 : i32
    %239 = arith.subi %c7_i32_75, %c6_i32 : i32
    %240 = arith.select %238, %c6_i32, %239 : i32
    %c8_i32_76 = arith.constant 8 : i32
    %241 = arith.muli %240, %c8_i32_76 : i32
    %242 = tpu.assume_multiple %241, 8 : i32
    %243 = arith.index_cast %242 : i32 to index
    %c0_77 = arith.constant 0 : index
    %244 = vector.load %arg7[%243, %c0_77] : memref<64x384xf32, #tpu.memory_space<vmem>>, vector<8x384xf32>
    %cst_78 = arith.constant dense<0.000000e+00> : vector<8x384xf32>
    %245 = tpu.matmul %233, %10, %cst_78 {dimension_numbers = #tpu.dot_dimension_numbers<[1], [0], [0], [1], [0, 0, 1, 1], [], []>} : vector<8x128xf32>, vector<128x384xf32>, vector<8x384xf32> -> vector<8x384xf32>
    %246 = vector.extract_strided_slice %244 {offsets = [0, 0], sizes = [8, 128], strides = [1, 1]} : vector<8x384xf32> to vector<8x128xf32>
    %247 = vector.extract_strided_slice %245 {offsets = [0, 0], sizes = [8, 128], strides = [1, 1]} : vector<8x384xf32> to vector<8x128xf32>
    %248 = arith.addf %246, %247 : vector<8x128xf32>
    %249 = arith.negf %248 : vector<8x128xf32>
    %250 = math.exp %249 : vector<8x128xf32>
    %cst_79 = arith.constant 1.000000e+00 : f32
    %251 = vector.broadcast %cst_79 : f32 to vector<8x128xf32>
    %252 = arith.addf %251, %250 : vector<8x128xf32>
    %253 = arith.divf %251, %252 : vector<8x128xf32>
    %254 = vector.extract_strided_slice %244 {offsets = [0, 128], sizes = [8, 128], strides = [1, 1]} : vector<8x384xf32> to vector<8x128xf32>
    %255 = vector.extract_strided_slice %245 {offsets = [0, 128], sizes = [8, 128], strides = [1, 1]} : vector<8x384xf32> to vector<8x128xf32>
    %256 = arith.addf %254, %255 : vector<8x128xf32>
    %257 = arith.negf %256 : vector<8x128xf32>
    %258 = math.exp %257 : vector<8x128xf32>
    %cst_80 = arith.constant 1.000000e+00 : f32
    %259 = vector.broadcast %cst_80 : f32 to vector<8x128xf32>
    %260 = arith.addf %259, %258 : vector<8x128xf32>
    %261 = arith.divf %259, %260 : vector<8x128xf32>
    %262 = vector.extract_strided_slice %244 {offsets = [0, 256], sizes = [8, 128], strides = [1, 1]} : vector<8x384xf32> to vector<8x128xf32>
    %263 = vector.extract_strided_slice %245 {offsets = [0, 256], sizes = [8, 128], strides = [1, 1]} : vector<8x384xf32> to vector<8x128xf32>
    %264 = arith.addf %263, %14 : vector<8x128xf32>
    %265 = arith.mulf %253, %264 : vector<8x128xf32>
    %266 = arith.addf %262, %265 : vector<8x128xf32>
    %267 = math.tanh %266 : vector<8x128xf32>
    %268 = arith.subf %233, %267 : vector<8x128xf32>
    %269 = arith.mulf %261, %268 : vector<8x128xf32>
    %270 = arith.addf %267, %269 : vector<8x128xf32>
    %c0_81 = arith.constant 0 : index
    %271 = arith.index_cast %240 : i32 to index
    %c0_82 = arith.constant 0 : index
    %c0_83 = arith.constant 0 : index
    %272 = vector.load %arg6[%c0_81, %271, %c0_82, %c0_83] : memref<1x8x8x128xf32, #tpu.memory_space<vmem>>, vector<1x1x8x128xf32>
    %273 = vector.shape_cast %272 : vector<1x1x8x128xf32> to vector<8x128xf32>
    %274 = vector.shape_cast %270 : vector<8x128xf32> to vector<1x1x8x128xf32>
    tpu.vector_store %arg6[%c0_81, %271, %c0_82, %c0_83], %274 {strides = array<i32>} : memref<1x8x8x128xf32, #tpu.memory_space<vmem>>, vector<1x1x8x128xf32>,
    %c7_i32_84 = arith.constant 7 : i32
    %c0_i32_85 = arith.constant 0 : i32
    %275 = arith.cmpi eq, %arg0, %c0_i32_85 : i32
    %c7_i32_86 = arith.constant 7 : i32
    %276 = arith.subi %c7_i32_86, %c7_i32_84 : i32
    %277 = arith.select %275, %c7_i32_84, %276 : i32
    %c8_i32_87 = arith.constant 8 : i32
    %278 = arith.muli %277, %c8_i32_87 : i32
    %279 = tpu.assume_multiple %278, 8 : i32
    %280 = arith.index_cast %279 : i32 to index
    %c0_88 = arith.constant 0 : index
    %281 = vector.load %arg7[%280, %c0_88] : memref<64x384xf32, #tpu.memory_space<vmem>>, vector<8x384xf32>
    %cst_89 = arith.constant dense<0.000000e+00> : vector<8x384xf32>
    %282 = tpu.matmul %270, %10, %cst_89 {dimension_numbers = #tpu.dot_dimension_numbers<[1], [0], [0], [1], [0, 0, 1, 1], [], []>} : vector<8x128xf32>, vector<128x384xf32>, vector<8x384xf32> -> vector<8x384xf32>
    %283 = vector.extract_strided_slice %281 {offsets = [0, 0], sizes = [8, 128], strides = [1, 1]} : vector<8x384xf32> to vector<8x128xf32>
    %284 = vector.extract_strided_slice %282 {offsets = [0, 0], sizes = [8, 128], strides = [1, 1]} : vector<8x384xf32> to vector<8x128xf32>
    %285 = arith.addf %283, %284 : vector<8x128xf32>
    %286 = arith.negf %285 : vector<8x128xf32>
    %287 = math.exp %286 : vector<8x128xf32>
    %cst_90 = arith.constant 1.000000e+00 : f32
    %288 = vector.broadcast %cst_90 : f32 to vector<8x128xf32>
    %289 = arith.addf %288, %287 : vector<8x128xf32>
    %290 = arith.divf %288, %289 : vector<8x128xf32>
    %291 = vector.extract_strided_slice %281 {offsets = [0, 128], sizes = [8, 128], strides = [1, 1]} : vector<8x384xf32> to vector<8x128xf32>
    %292 = vector.extract_strided_slice %282 {offsets = [0, 128], sizes = [8, 128], strides = [1, 1]} : vector<8x384xf32> to vector<8x128xf32>
    %293 = arith.addf %291, %292 : vector<8x128xf32>
    %294 = arith.negf %293 : vector<8x128xf32>
    %295 = math.exp %294 : vector<8x128xf32>
    %cst_91 = arith.constant 1.000000e+00 : f32
    %296 = vector.broadcast %cst_91 : f32 to vector<8x128xf32>
    %297 = arith.addf %296, %295 : vector<8x128xf32>
    %298 = arith.divf %296, %297 : vector<8x128xf32>
    %299 = vector.extract_strided_slice %281 {offsets = [0, 256], sizes = [8, 128], strides = [1, 1]} : vector<8x384xf32> to vector<8x128xf32>
    %300 = vector.extract_strided_slice %282 {offsets = [0, 256], sizes = [8, 128], strides = [1, 1]} : vector<8x384xf32> to vector<8x128xf32>
    %301 = arith.addf %300, %14 : vector<8x128xf32>
    %302 = arith.mulf %290, %301 : vector<8x128xf32>
    %303 = arith.addf %299, %302 : vector<8x128xf32>
    %304 = math.tanh %303 : vector<8x128xf32>
    %305 = arith.subf %270, %304 : vector<8x128xf32>
    %306 = arith.mulf %298, %305 : vector<8x128xf32>
    %307 = arith.addf %304, %306 : vector<8x128xf32>
    %c0_92 = arith.constant 0 : index
    %308 = arith.index_cast %277 : i32 to index
    %c0_93 = arith.constant 0 : index
    %c0_94 = arith.constant 0 : index
    %309 = vector.load %arg6[%c0_92, %308, %c0_93, %c0_94] : memref<1x8x8x128xf32, #tpu.memory_space<vmem>>, vector<1x1x8x128xf32>
    %310 = vector.shape_cast %309 : vector<1x1x8x128xf32> to vector<8x128xf32>
    %311 = vector.shape_cast %307 : vector<8x128xf32> to vector<1x1x8x128xf32>
    tpu.vector_store %arg6[%c0_92, %308, %c0_93, %c0_94], %311 {strides = array<i32>} : memref<1x8x8x128xf32, #tpu.memory_space<vmem>>, vector<1x1x8x128xf32>,
    %c8_i32_95 = arith.constant 8 : i32
    return
  }
  func.func @transform_0(%arg0: i32) -> (i32, i32) {
    %c0_i32 = arith.constant 0 : i32
    %c0_i32_0 = arith.constant 0 : i32
    %c0_i32_1 = arith.constant 0 : i32
    return %c0_i32, %c0_i32_0 : i32, i32
  }
  func.func @transform_1(%arg0: i32) -> (i32, i32, i32) {
    %c0_i32 = arith.constant 0 : i32
    %c0_i32_0 = arith.constant 0 : i32
    %c0_i32_1 = arith.constant 0 : i32
    return %arg0, %c0_i32, %c0_i32_0 : i32, i32, i32
  }
  func.func @transform_2(%arg0: i32) -> (i32, i32, i32) {
    %c0_i32 = arith.constant 0 : i32
    %c0_i32_0 = arith.constant 0 : i32
    %c0_i32_1 = arith.constant 0 : i32
    return %arg0, %c0_i32, %c0_i32_0 : i32, i32, i32
  }
  func.func @transform_3(%arg0: i32) -> (i32, i32, i32) {
    %c0_i32 = arith.constant 0 : i32
    %c0_i32_0 = arith.constant 0 : i32
    %c0_i32_1 = arith.constant 0 : i32
    return %arg0, %c0_i32, %c0_i32_0 : i32, i32, i32
  }
  func.func @transform_4(%arg0: i32) -> (i32, i32, i32) {
    %c0_i32 = arith.constant 0 : i32
    %c0_i32_0 = arith.constant 0 : i32
    %c0_i32_1 = arith.constant 0 : i32
    return %arg0, %c0_i32, %c0_i32_0 : i32, i32, i32
  }
  func.func @transform_5(%arg0: i32) -> (i32, i32, i32, i32) {
    %c0_i32 = arith.constant 0 : i32
    %c0_i32_0 = arith.constant 0 : i32
    %c0_i32_1 = arith.constant 0 : i32
    %c0_i32_2 = arith.constant 0 : i32
    return %arg0, %c0_i32, %c0_i32_0, %c0_i32_1 : i32, i32, i32, i32
  }
}

module attributes {stable_mosaic.version = 11 : i64} {
  func.func @_bidir_gru_kernel(%arg0: i32, %arg1: memref<64x128xf32, #tpu.memory_space<vmem>>, %arg2: memref<1x128x384xf32, #tpu.memory_space<vmem>>, %arg3: memref<1x128x384xf32, #tpu.memory_space<vmem>>, %arg4: memref<1x1x384xf32, #tpu.memory_space<vmem>>, %arg5: memref<1x1x128xf32, #tpu.memory_space<vmem>>, %arg6: memref<1x8x8x128xf32, #tpu.memory_space<vmem>>, %arg7: memref<64x384xf32, #tpu.memory_space<vmem>>) attributes {dimension_semantics = [#tpu.dimension_semantics<parallel>], iteration_bounds = array<i64: 2>, scalar_prefetch = 0 : i64, scratch_operands = 1 : i64, tpu.core_type = #tpu.core_type<tc>, window_params = [{pipeline_mode = #tpu.pipeline_mode<synchronous>, transform_indices = @transform_0, window_bounds = array<i64: 64, 128>}, {transform_indices = @transform_1, window_bounds = array<i64: 1, 128, 384>}, {transform_indices = @transform_2, window_bounds = array<i64: 1, 128, 384>}, {transform_indices = @transform_3, window_bounds = array<i64: 1, 1, 384>}, {transform_indices = @transform_4, window_bounds = array<i64: 1, 1, 128>}, {transform_indices = @transform_5, window_bounds = array<i64: 1, 8, 8, 128>}]} {
    %c0 = arith.constant 0 : index
    %c0_0 = arith.constant 0 : index
    %0 = vector.load %arg1[%c0, %c0_0] : memref<64x128xf32, #tpu.memory_space<vmem>>, vector<64x128xf32>
    %c0_1 = arith.constant 0 : index
    %c0_2 = arith.constant 0 : index
    %c0_3 = arith.constant 0 : index
    %1 = vector.load %arg2[%c0_1, %c0_2, %c0_3] : memref<1x128x384xf32, #tpu.memory_space<vmem>>, vector<1x128x384xf32>
    %2 = vector.shape_cast %1 : vector<1x128x384xf32> to vector<128x384xf32>
    %cst = arith.constant dense<0.000000e+00> : vector<64x384xf32>
    %3 = tpu.matmul %0, %2, %cst {dimension_numbers = #tpu.dot_dimension_numbers<[1], [0], [0], [1], [0, 0, 1, 1], [], []>} : vector<64x128xf32>, vector<128x384xf32>, vector<64x384xf32> -> vector<64x384xf32>
    %c0_4 = arith.constant 0 : index
    %c0_5 = arith.constant 0 : index
    %c0_6 = arith.constant 0 : index
    %4 = vector.load %arg4[%c0_4, %c0_5, %c0_6] : memref<1x1x384xf32, #tpu.memory_space<vmem>>, vector<1x1x384xf32>
    %5 = vector.shape_cast %4 : vector<1x1x384xf32> to vector<1x384xf32>
    %6 = vector.broadcast %5 : vector<1x384xf32> to vector<64x384xf32>
    %7 = arith.addf %3, %6 : vector<64x384xf32>
    %c0_7 = arith.constant 0 : index
    %c0_8 = arith.constant 0 : index
    %8 = vector.load %arg7[%c0_7, %c0_8] : memref<64x384xf32, #tpu.memory_space<vmem>>, vector<64x384xf32>
    tpu.vector_store %arg7[%c0_7, %c0_8], %7 {strides = array<i32>} : memref<64x384xf32, #tpu.memory_space<vmem>>, vector<64x384xf32>,
    %c0_9 = arith.constant 0 : index
    %c0_10 = arith.constant 0 : index
    %c0_11 = arith.constant 0 : index
    %9 = vector.load %arg3[%c0_9, %c0_10, %c0_11] : memref<1x128x384xf32, #tpu.memory_space<vmem>>, vector<1x128x384xf32>
    %10 = vector.shape_cast %9 : vector<1x128x384xf32> to vector<128x384xf32>
    %c0_12 = arith.constant 0 : index
    %c0_13 = arith.constant 0 : index
    %c0_14 = arith.constant 0 : index
    %11 = vector.load %arg5[%c0_12, %c0_13, %c0_14] : memref<1x1x128xf32, #tpu.memory_space<vmem>>, vector<1x1x128xf32>
    %12 = vector.shape_cast %11 : vector<1x1x128xf32> to vector<1x128xf32>
    %13 = vector.shape_cast %12 : vector<1x128xf32> to vector<1x128xf32>
    %14 = vector.broadcast %13 : vector<1x128xf32> to vector<8x128xf32>
    %cst_15 = arith.constant 0.000000e+00 : f32
    %15 = vector.broadcast %cst_15 : f32 to vector<8x128xf32>
    %c0_i32 = arith.constant 0 : i32
    %c0_i32_16 = arith.constant 0 : i32
    %16 = arith.cmpi eq, %arg0, %c0_i32_16 : i32
    %c7_i32 = arith.constant 7 : i32
    %17 = arith.subi %c7_i32, %c0_i32 : i32
    %18 = arith.select %16, %c0_i32, %17 : i32
    %c8_i32 = arith.constant 8 : i32
    %19 = arith.muli %18, %c8_i32 : i32
    %20 = tpu.assume_multiple %19, 8 : i32
    %21 = arith.index_cast %20 : i32 to index
    %c0_17 = arith.constant 0 : index
    %22 = vector.load %arg7[%21, %c0_17] : memref<64x384xf32, #tpu.memory_space<vmem>>, vector<8x384xf32>
    %cst_18 = arith.constant dense<0.000000e+00> : vector<8x384xf32>
    %23 = tpu.matmul %15, %10, %cst_18 {dimension_numbers = #tpu.dot_dimension_numbers<[1], [0], [0], [1], [0, 0, 1, 1], [], []>} : vector<8x128xf32>, vector<128x384xf32>, vector<8x384xf32> -> vector<8x384xf32>
    %24 = vector.extract_strided_slice %22 {offsets = [0, 0], sizes = [8, 128], strides = [1, 1]} : vector<8x384xf32> to vector<8x128xf32>
    %25 = vector.extract_strided_slice %23 {offsets = [0, 0], sizes = [8, 128], strides = [1, 1]} : vector<8x384xf32> to vector<8x128xf32>
    %26 = arith.addf %24, %25 : vector<8x128xf32>
    %27 = arith.negf %26 : vector<8x128xf32>
    %28 = math.exp %27 : vector<8x128xf32>
    %cst_19 = arith.constant 1.000000e+00 : f32
    %29 = vector.broadcast %cst_19 : f32 to vector<8x128xf32>
    %30 = arith.addf %29, %28 : vector<8x128xf32>
    %31 = arith.divf %29, %30 : vector<8x128xf32>
    %32 = vector.extract_strided_slice %22 {offsets = [0, 128], sizes = [8, 128], strides = [1, 1]} : vector<8x384xf32> to vector<8x128xf32>
    %33 = vector.extract_strided_slice %23 {offsets = [0, 128], sizes = [8, 128], strides = [1, 1]} : vector<8x384xf32> to vector<8x128xf32>
    %34 = arith.addf %32, %33 : vector<8x128xf32>
    %35 = arith.negf %34 : vector<8x128xf32>
    %36 = math.exp %35 : vector<8x128xf32>
    %cst_20 = arith.constant 1.000000e+00 : f32
    %37 = vector.broadcast %cst_20 : f32 to vector<8x128xf32>
    %38 = arith.addf %37, %36 : vector<8x128xf32>
    %39 = arith.divf %37, %38 : vector<8x128xf32>
    %40 = vector.extract_strided_slice %22 {offsets = [0, 256], sizes = [8, 128], strides = [1, 1]} : vector<8x384xf32> to vector<8x128xf32>
    %41 = vector.extract_strided_slice %23 {offsets = [0, 256], sizes = [8, 128], strides = [1, 1]} : vector<8x384xf32> to vector<8x128xf32>
    %42 = arith.addf %41, %14 : vector<8x128xf32>
    %43 = arith.mulf %31, %42 : vector<8x128xf32>
    %44 = arith.addf %40, %43 : vector<8x128xf32>
    %45 = math.tanh %44 : vector<8x128xf32>
    %46 = arith.subf %15, %45 : vector<8x128xf32>
    %47 = arith.mulf %39, %46 : vector<8x128xf32>
    %48 = arith.addf %45, %47 : vector<8x128xf32>
    %c0_21 = arith.constant 0 : index
    %49 = arith.index_cast %18 : i32 to index
    %c0_22 = arith.constant 0 : index
    %c0_23 = arith.constant 0 : index
    %50 = vector.load %arg6[%c0_21, %49, %c0_22, %c0_23] : memref<1x8x8x128xf32, #tpu.memory_space<vmem>>, vector<1x1x8x128xf32>
    %51 = vector.shape_cast %50 : vector<1x1x8x128xf32> to vector<8x128xf32>
    %52 = vector.shape_cast %48 : vector<8x128xf32> to vector<1x1x8x128xf32>
    tpu.vector_store %arg6[%c0_21, %49, %c0_22, %c0_23], %52 {strides = array<i32>} : memref<1x8x8x128xf32, #tpu.memory_space<vmem>>, vector<1x1x8x128xf32>,
    %c1_i32 = arith.constant 1 : i32
    %c0_i32_24 = arith.constant 0 : i32
    %53 = arith.cmpi eq, %arg0, %c0_i32_24 : i32
    %c7_i32_25 = arith.constant 7 : i32
    %54 = arith.subi %c7_i32_25, %c1_i32 : i32
    %55 = arith.select %53, %c1_i32, %54 : i32
    %c8_i32_26 = arith.constant 8 : i32
    %56 = arith.muli %55, %c8_i32_26 : i32
    %57 = tpu.assume_multiple %56, 8 : i32
    %58 = arith.index_cast %57 : i32 to index
    %c0_27 = arith.constant 0 : index
    %59 = vector.load %arg7[%58, %c0_27] : memref<64x384xf32, #tpu.memory_space<vmem>>, vector<8x384xf32>
    %cst_28 = arith.constant dense<0.000000e+00> : vector<8x384xf32>
    %60 = tpu.matmul %48, %10, %cst_28 {dimension_numbers = #tpu.dot_dimension_numbers<[1], [0], [0], [1], [0, 0, 1, 1], [], []>} : vector<8x128xf32>, vector<128x384xf32>, vector<8x384xf32> -> vector<8x384xf32>
    %61 = vector.extract_strided_slice %59 {offsets = [0, 0], sizes = [8, 128], strides = [1, 1]} : vector<8x384xf32> to vector<8x128xf32>
    %62 = vector.extract_strided_slice %60 {offsets = [0, 0], sizes = [8, 128], strides = [1, 1]} : vector<8x384xf32> to vector<8x128xf32>
    %63 = arith.addf %61, %62 : vector<8x128xf32>
    %64 = arith.negf %63 : vector<8x128xf32>
    %65 = math.exp %64 : vector<8x128xf32>
    %cst_29 = arith.constant 1.000000e+00 : f32
    %66 = vector.broadcast %cst_29 : f32 to vector<8x128xf32>
    %67 = arith.addf %66, %65 : vector<8x128xf32>
    %68 = arith.divf %66, %67 : vector<8x128xf32>
    %69 = vector.extract_strided_slice %59 {offsets = [0, 128], sizes = [8, 128], strides = [1, 1]} : vector<8x384xf32> to vector<8x128xf32>
    %70 = vector.extract_strided_slice %60 {offsets = [0, 128], sizes = [8, 128], strides = [1, 1]} : vector<8x384xf32> to vector<8x128xf32>
    %71 = arith.addf %69, %70 : vector<8x128xf32>
    %72 = arith.negf %71 : vector<8x128xf32>
    %73 = math.exp %72 : vector<8x128xf32>
    %cst_30 = arith.constant 1.000000e+00 : f32
    %74 = vector.broadcast %cst_30 : f32 to vector<8x128xf32>
    %75 = arith.addf %74, %73 : vector<8x128xf32>
    %76 = arith.divf %74, %75 : vector<8x128xf32>
    %77 = vector.extract_strided_slice %59 {offsets = [0, 256], sizes = [8, 128], strides = [1, 1]} : vector<8x384xf32> to vector<8x128xf32>
    %78 = vector.extract_strided_slice %60 {offsets = [0, 256], sizes = [8, 128], strides = [1, 1]} : vector<8x384xf32> to vector<8x128xf32>
    %79 = arith.addf %78, %14 : vector<8x128xf32>
    %80 = arith.mulf %68, %79 : vector<8x128xf32>
    %81 = arith.addf %77, %80 : vector<8x128xf32>
    %82 = math.tanh %81 : vector<8x128xf32>
    %83 = arith.subf %48, %82 : vector<8x128xf32>
    %84 = arith.mulf %76, %83 : vector<8x128xf32>
    %85 = arith.addf %82, %84 : vector<8x128xf32>
    %c0_31 = arith.constant 0 : index
    %86 = arith.index_cast %55 : i32 to index
    %c0_32 = arith.constant 0 : index
    %c0_33 = arith.constant 0 : index
    %87 = vector.load %arg6[%c0_31, %86, %c0_32, %c0_33] : memref<1x8x8x128xf32, #tpu.memory_space<vmem>>, vector<1x1x8x128xf32>
    %88 = vector.shape_cast %87 : vector<1x1x8x128xf32> to vector<8x128xf32>
    %89 = vector.shape_cast %85 : vector<8x128xf32> to vector<1x1x8x128xf32>
    tpu.vector_store %arg6[%c0_31, %86, %c0_32, %c0_33], %89 {strides = array<i32>} : memref<1x8x8x128xf32, #tpu.memory_space<vmem>>, vector<1x1x8x128xf32>,
    %c2_i32 = arith.constant 2 : i32
    %c0_i32_34 = arith.constant 0 : i32
    %90 = arith.cmpi eq, %arg0, %c0_i32_34 : i32
    %c7_i32_35 = arith.constant 7 : i32
    %91 = arith.subi %c7_i32_35, %c2_i32 : i32
    %92 = arith.select %90, %c2_i32, %91 : i32
    %c8_i32_36 = arith.constant 8 : i32
    %93 = arith.muli %92, %c8_i32_36 : i32
    %94 = tpu.assume_multiple %93, 8 : i32
    %95 = arith.index_cast %94 : i32 to index
    %c0_37 = arith.constant 0 : index
    %96 = vector.load %arg7[%95, %c0_37] : memref<64x384xf32, #tpu.memory_space<vmem>>, vector<8x384xf32>
    %cst_38 = arith.constant dense<0.000000e+00> : vector<8x384xf32>
    %97 = tpu.matmul %85, %10, %cst_38 {dimension_numbers = #tpu.dot_dimension_numbers<[1], [0], [0], [1], [0, 0, 1, 1], [], []>} : vector<8x128xf32>, vector<128x384xf32>, vector<8x384xf32> -> vector<8x384xf32>
    %98 = vector.extract_strided_slice %96 {offsets = [0, 0], sizes = [8, 128], strides = [1, 1]} : vector<8x384xf32> to vector<8x128xf32>
    %99 = vector.extract_strided_slice %97 {offsets = [0, 0], sizes = [8, 128], strides = [1, 1]} : vector<8x384xf32> to vector<8x128xf32>
    %100 = arith.addf %98, %99 : vector<8x128xf32>
    %101 = arith.negf %100 : vector<8x128xf32>
    %102 = math.exp %101 : vector<8x128xf32>
    %cst_39 = arith.constant 1.000000e+00 : f32
    %103 = vector.broadcast %cst_39 : f32 to vector<8x128xf32>
    %104 = arith.addf %103, %102 : vector<8x128xf32>
    %105 = arith.divf %103, %104 : vector<8x128xf32>
    %106 = vector.extract_strided_slice %96 {offsets = [0, 128], sizes = [8, 128], strides = [1, 1]} : vector<8x384xf32> to vector<8x128xf32>
    %107 = vector.extract_strided_slice %97 {offsets = [0, 128], sizes = [8, 128], strides = [1, 1]} : vector<8x384xf32> to vector<8x128xf32>
    %108 = arith.addf %106, %107 : vector<8x128xf32>
    %109 = arith.negf %108 : vector<8x128xf32>
    %110 = math.exp %109 : vector<8x128xf32>
    %cst_40 = arith.constant 1.000000e+00 : f32
    %111 = vector.broadcast %cst_40 : f32 to vector<8x128xf32>
    %112 = arith.addf %111, %110 : vector<8x128xf32>
    %113 = arith.divf %111, %112 : vector<8x128xf32>
    %114 = vector.extract_strided_slice %96 {offsets = [0, 256], sizes = [8, 128], strides = [1, 1]} : vector<8x384xf32> to vector<8x128xf32>
    %115 = vector.extract_strided_slice %97 {offsets = [0, 256], sizes = [8, 128], strides = [1, 1]} : vector<8x384xf32> to vector<8x128xf32>
    %116 = arith.addf %115, %14 : vector<8x128xf32>
    %117 = arith.mulf %105, %116 : vector<8x128xf32>
    %118 = arith.addf %114, %117 : vector<8x128xf32>
    %119 = math.tanh %118 : vector<8x128xf32>
    %120 = arith.subf %85, %119 : vector<8x128xf32>
    %121 = arith.mulf %113, %120 : vector<8x128xf32>
    %122 = arith.addf %119, %121 : vector<8x128xf32>
    %c0_41 = arith.constant 0 : index
    %123 = arith.index_cast %92 : i32 to index
    %c0_42 = arith.constant 0 : index
    %c0_43 = arith.constant 0 : index
    %124 = vector.load %arg6[%c0_41, %123, %c0_42, %c0_43] : memref<1x8x8x128xf32, #tpu.memory_space<vmem>>, vector<1x1x8x128xf32>
    %125 = vector.shape_cast %124 : vector<1x1x8x128xf32> to vector<8x128xf32>
    %126 = vector.shape_cast %122 : vector<8x128xf32> to vector<1x1x8x128xf32>
    tpu.vector_store %arg6[%c0_41, %123, %c0_42, %c0_43], %126 {strides = array<i32>} : memref<1x8x8x128xf32, #tpu.memory_space<vmem>>, vector<1x1x8x128xf32>,
    %c3_i32 = arith.constant 3 : i32
    %c0_i32_44 = arith.constant 0 : i32
    %127 = arith.cmpi eq, %arg0, %c0_i32_44 : i32
    %c7_i32_45 = arith.constant 7 : i32
    %128 = arith.subi %c7_i32_45, %c3_i32 : i32
    %129 = arith.select %127, %c3_i32, %128 : i32
    %c8_i32_46 = arith.constant 8 : i32
    %130 = arith.muli %129, %c8_i32_46 : i32
    %131 = tpu.assume_multiple %130, 8 : i32
    %132 = arith.index_cast %131 : i32 to index
    %c0_47 = arith.constant 0 : index
    %133 = vector.load %arg7[%132, %c0_47] : memref<64x384xf32, #tpu.memory_space<vmem>>, vector<8x384xf32>
    %cst_48 = arith.constant dense<0.000000e+00> : vector<8x384xf32>
    %134 = tpu.matmul %122, %10, %cst_48 {dimension_numbers = #tpu.dot_dimension_numbers<[1], [0], [0], [1], [0, 0, 1, 1], [], []>} : vector<8x128xf32>, vector<128x384xf32>, vector<8x384xf32> -> vector<8x384xf32>
    %135 = vector.extract_strided_slice %133 {offsets = [0, 0], sizes = [8, 128], strides = [1, 1]} : vector<8x384xf32> to vector<8x128xf32>
    %136 = vector.extract_strided_slice %134 {offsets = [0, 0], sizes = [8, 128], strides = [1, 1]} : vector<8x384xf32> to vector<8x128xf32>
    %137 = arith.addf %135, %136 : vector<8x128xf32>
    %138 = arith.negf %137 : vector<8x128xf32>
    %139 = math.exp %138 : vector<8x128xf32>
    %cst_49 = arith.constant 1.000000e+00 : f32
    %140 = vector.broadcast %cst_49 : f32 to vector<8x128xf32>
    %141 = arith.addf %140, %139 : vector<8x128xf32>
    %142 = arith.divf %140, %141 : vector<8x128xf32>
    %143 = vector.extract_strided_slice %133 {offsets = [0, 128], sizes = [8, 128], strides = [1, 1]} : vector<8x384xf32> to vector<8x128xf32>
    %144 = vector.extract_strided_slice %134 {offsets = [0, 128], sizes = [8, 128], strides = [1, 1]} : vector<8x384xf32> to vector<8x128xf32>
    %145 = arith.addf %143, %144 : vector<8x128xf32>
    %146 = arith.negf %145 : vector<8x128xf32>
    %147 = math.exp %146 : vector<8x128xf32>
    %cst_50 = arith.constant 1.000000e+00 : f32
    %148 = vector.broadcast %cst_50 : f32 to vector<8x128xf32>
    %149 = arith.addf %148, %147 : vector<8x128xf32>
    %150 = arith.divf %148, %149 : vector<8x128xf32>
    %151 = vector.extract_strided_slice %133 {offsets = [0, 256], sizes = [8, 128], strides = [1, 1]} : vector<8x384xf32> to vector<8x128xf32>
    %152 = vector.extract_strided_slice %134 {offsets = [0, 256], sizes = [8, 128], strides = [1, 1]} : vector<8x384xf32> to vector<8x128xf32>
    %153 = arith.addf %152, %14 : vector<8x128xf32>
    %154 = arith.mulf %142, %153 : vector<8x128xf32>
    %155 = arith.addf %151, %154 : vector<8x128xf32>
    %156 = math.tanh %155 : vector<8x128xf32>
    %157 = arith.subf %122, %156 : vector<8x128xf32>
    %158 = arith.mulf %150, %157 : vector<8x128xf32>
    %159 = arith.addf %156, %158 : vector<8x128xf32>
    %c0_51 = arith.constant 0 : index
    %160 = arith.index_cast %129 : i32 to index
    %c0_52 = arith.constant 0 : index
    %c0_53 = arith.constant 0 : index
    %161 = vector.load %arg6[%c0_51, %160, %c0_52, %c0_53] : memref<1x8x8x128xf32, #tpu.memory_space<vmem>>, vector<1x1x8x128xf32>
    %162 = vector.shape_cast %161 : vector<1x1x8x128xf32> to vector<8x128xf32>
    %163 = vector.shape_cast %159 : vector<8x128xf32> to vector<1x1x8x128xf32>
    tpu.vector_store %arg6[%c0_51, %160, %c0_52, %c0_53], %163 {strides = array<i32>} : memref<1x8x8x128xf32, #tpu.memory_space<vmem>>, vector<1x1x8x128xf32>,
    %c4_i32 = arith.constant 4 : i32
    %c0_i32_54 = arith.constant 0 : i32
    %164 = arith.cmpi eq, %arg0, %c0_i32_54 : i32
    %c7_i32_55 = arith.constant 7 : i32
    %165 = arith.subi %c7_i32_55, %c4_i32 : i32
    %166 = arith.select %164, %c4_i32, %165 : i32
    %c8_i32_56 = arith.constant 8 : i32
    %167 = arith.muli %166, %c8_i32_56 : i32
    %168 = tpu.assume_multiple %167, 8 : i32
    %169 = arith.index_cast %168 : i32 to index
    %c0_57 = arith.constant 0 : index
    %170 = vector.load %arg7[%169, %c0_57] : memref<64x384xf32, #tpu.memory_space<vmem>>, vector<8x384xf32>
    %cst_58 = arith.constant dense<0.000000e+00> : vector<8x384xf32>
    %171 = tpu.matmul %159, %10, %cst_58 {dimension_numbers = #tpu.dot_dimension_numbers<[1], [0], [0], [1], [0, 0, 1, 1], [], []>} : vector<8x128xf32>, vector<128x384xf32>, vector<8x384xf32> -> vector<8x384xf32>
    %172 = vector.extract_strided_slice %170 {offsets = [0, 0], sizes = [8, 128], strides = [1, 1]} : vector<8x384xf32> to vector<8x128xf32>
    %173 = vector.extract_strided_slice %171 {offsets = [0, 0], sizes = [8, 128], strides = [1, 1]} : vector<8x384xf32> to vector<8x128xf32>
    %174 = arith.addf %172, %173 : vector<8x128xf32>
    %175 = arith.negf %174 : vector<8x128xf32>
    %176 = math.exp %175 : vector<8x128xf32>
    %cst_59 = arith.constant 1.000000e+00 : f32
    %177 = vector.broadcast %cst_59 : f32 to vector<8x128xf32>
    %178 = arith.addf %177, %176 : vector<8x128xf32>
    %179 = arith.divf %177, %178 : vector<8x128xf32>
    %180 = vector.extract_strided_slice %170 {offsets = [0, 128], sizes = [8, 128], strides = [1, 1]} : vector<8x384xf32> to vector<8x128xf32>
    %181 = vector.extract_strided_slice %171 {offsets = [0, 128], sizes = [8, 128], strides = [1, 1]} : vector<8x384xf32> to vector<8x128xf32>
    %182 = arith.addf %180, %181 : vector<8x128xf32>
    %183 = arith.negf %182 : vector<8x128xf32>
    %184 = math.exp %183 : vector<8x128xf32>
    %cst_60 = arith.constant 1.000000e+00 : f32
    %185 = vector.broadcast %cst_60 : f32 to vector<8x128xf32>
    %186 = arith.addf %185, %184 : vector<8x128xf32>
    %187 = arith.divf %185, %186 : vector<8x128xf32>
    %188 = vector.extract_strided_slice %170 {offsets = [0, 256], sizes = [8, 128], strides = [1, 1]} : vector<8x384xf32> to vector<8x128xf32>
    %189 = vector.extract_strided_slice %171 {offsets = [0, 256], sizes = [8, 128], strides = [1, 1]} : vector<8x384xf32> to vector<8x128xf32>
    %190 = arith.addf %189, %14 : vector<8x128xf32>
    %191 = arith.mulf %179, %190 : vector<8x128xf32>
    %192 = arith.addf %188, %191 : vector<8x128xf32>
    %193 = math.tanh %192 : vector<8x128xf32>
    %194 = arith.subf %159, %193 : vector<8x128xf32>
    %195 = arith.mulf %187, %194 : vector<8x128xf32>
    %196 = arith.addf %193, %195 : vector<8x128xf32>
    %c0_61 = arith.constant 0 : index
    %197 = arith.index_cast %166 : i32 to index
    %c0_62 = arith.constant 0 : index
    %c0_63 = arith.constant 0 : index
    %198 = vector.load %arg6[%c0_61, %197, %c0_62, %c0_63] : memref<1x8x8x128xf32, #tpu.memory_space<vmem>>, vector<1x1x8x128xf32>
    %199 = vector.shape_cast %198 : vector<1x1x8x128xf32> to vector<8x128xf32>
    %200 = vector.shape_cast %196 : vector<8x128xf32> to vector<1x1x8x128xf32>
    tpu.vector_store %arg6[%c0_61, %197, %c0_62, %c0_63], %200 {strides = array<i32>} : memref<1x8x8x128xf32, #tpu.memory_space<vmem>>, vector<1x1x8x128xf32>,
    %c5_i32 = arith.constant 5 : i32
    %c0_i32_64 = arith.constant 0 : i32
    %201 = arith.cmpi eq, %arg0, %c0_i32_64 : i32
    %c7_i32_65 = arith.constant 7 : i32
    %202 = arith.subi %c7_i32_65, %c5_i32 : i32
    %203 = arith.select %201, %c5_i32, %202 : i32
    %c8_i32_66 = arith.constant 8 : i32
    %204 = arith.muli %203, %c8_i32_66 : i32
    %205 = tpu.assume_multiple %204, 8 : i32
    %206 = arith.index_cast %205 : i32 to index
    %c0_67 = arith.constant 0 : index
    %207 = vector.load %arg7[%206, %c0_67] : memref<64x384xf32, #tpu.memory_space<vmem>>, vector<8x384xf32>
    %cst_68 = arith.constant dense<0.000000e+00> : vector<8x384xf32>
    %208 = tpu.matmul %196, %10, %cst_68 {dimension_numbers = #tpu.dot_dimension_numbers<[1], [0], [0], [1], [0, 0, 1, 1], [], []>} : vector<8x128xf32>, vector<128x384xf32>, vector<8x384xf32> -> vector<8x384xf32>
    %209 = vector.extract_strided_slice %207 {offsets = [0, 0], sizes = [8, 128], strides = [1, 1]} : vector<8x384xf32> to vector<8x128xf32>
    %210 = vector.extract_strided_slice %208 {offsets = [0, 0], sizes = [8, 128], strides = [1, 1]} : vector<8x384xf32> to vector<8x128xf32>
    %211 = arith.addf %209, %210 : vector<8x128xf32>
    %212 = arith.negf %211 : vector<8x128xf32>
    %213 = math.exp %212 : vector<8x128xf32>
    %cst_69 = arith.constant 1.000000e+00 : f32
    %214 = vector.broadcast %cst_69 : f32 to vector<8x128xf32>
    %215 = arith.addf %214, %213 : vector<8x128xf32>
    %216 = arith.divf %214, %215 : vector<8x128xf32>
    %217 = vector.extract_strided_slice %207 {offsets = [0, 128], sizes = [8, 128], strides = [1, 1]} : vector<8x384xf32> to vector<8x128xf32>
    %218 = vector.extract_strided_slice %208 {offsets = [0, 128], sizes = [8, 128], strides = [1, 1]} : vector<8x384xf32> to vector<8x128xf32>
    %219 = arith.addf %217, %218 : vector<8x128xf32>
    %220 = arith.negf %219 : vector<8x128xf32>
    %221 = math.exp %220 : vector<8x128xf32>
    %cst_70 = arith.constant 1.000000e+00 : f32
    %222 = vector.broadcast %cst_70 : f32 to vector<8x128xf32>
    %223 = arith.addf %222, %221 : vector<8x128xf32>
    %224 = arith.divf %222, %223 : vector<8x128xf32>
    %225 = vector.extract_strided_slice %207 {offsets = [0, 256], sizes = [8, 128], strides = [1, 1]} : vector<8x384xf32> to vector<8x128xf32>
    %226 = vector.extract_strided_slice %208 {offsets = [0, 256], sizes = [8, 128], strides = [1, 1]} : vector<8x384xf32> to vector<8x128xf32>
    %227 = arith.addf %226, %14 : vector<8x128xf32>
    %228 = arith.mulf %216, %227 : vector<8x128xf32>
    %229 = arith.addf %225, %228 : vector<8x128xf32>
    %230 = math.tanh %229 : vector<8x128xf32>
    %231 = arith.subf %196, %230 : vector<8x128xf32>
    %232 = arith.mulf %224, %231 : vector<8x128xf32>
    %233 = arith.addf %230, %232 : vector<8x128xf32>
    %c0_71 = arith.constant 0 : index
    %234 = arith.index_cast %203 : i32 to index
    %c0_72 = arith.constant 0 : index
    %c0_73 = arith.constant 0 : index
    %235 = vector.load %arg6[%c0_71, %234, %c0_72, %c0_73] : memref<1x8x8x128xf32, #tpu.memory_space<vmem>>, vector<1x1x8x128xf32>
    %236 = vector.shape_cast %235 : vector<1x1x8x128xf32> to vector<8x128xf32>
    %237 = vector.shape_cast %233 : vector<8x128xf32> to vector<1x1x8x128xf32>
    tpu.vector_store %arg6[%c0_71, %234, %c0_72, %c0_73], %237 {strides = array<i32>} : memref<1x8x8x128xf32, #tpu.memory_space<vmem>>, vector<1x1x8x128xf32>,
    %c6_i32 = arith.constant 6 : i32
    %c0_i32_74 = arith.constant 0 : i32
    %238 = arith.cmpi eq, %arg0, %c0_i32_74 : i32
    %c7_i32_75 = arith.constant 7 : i32
    %239 = arith.subi %c7_i32_75, %c6_i32 : i32
    %240 = arith.select %238, %c6_i32, %239 : i32
    %c8_i32_76 = arith.constant 8 : i32
    %241 = arith.muli %240, %c8_i32_76 : i32
    %242 = tpu.assume_multiple %241, 8 : i32
    %243 = arith.index_cast %242 : i32 to index
    %c0_77 = arith.constant 0 : index
    %244 = vector.load %arg7[%243, %c0_77] : memref<64x384xf32, #tpu.memory_space<vmem>>, vector<8x384xf32>
    %cst_78 = arith.constant dense<0.000000e+00> : vector<8x384xf32>
    %245 = tpu.matmul %233, %10, %cst_78 {dimension_numbers = #tpu.dot_dimension_numbers<[1], [0], [0], [1], [0, 0, 1, 1], [], []>} : vector<8x128xf32>, vector<128x384xf32>, vector<8x384xf32> -> vector<8x384xf32>
    %246 = vector.extract_strided_slice %244 {offsets = [0, 0], sizes = [8, 128], strides = [1, 1]} : vector<8x384xf32> to vector<8x128xf32>
    %247 = vector.extract_strided_slice %245 {offsets = [0, 0], sizes = [8, 128], strides = [1, 1]} : vector<8x384xf32> to vector<8x128xf32>
    %248 = arith.addf %246, %247 : vector<8x128xf32>
    %249 = arith.negf %248 : vector<8x128xf32>
    %250 = math.exp %249 : vector<8x128xf32>
    %cst_79 = arith.constant 1.000000e+00 : f32
    %251 = vector.broadcast %cst_79 : f32 to vector<8x128xf32>
    %252 = arith.addf %251, %250 : vector<8x128xf32>
    %253 = arith.divf %251, %252 : vector<8x128xf32>
    %254 = vector.extract_strided_slice %244 {offsets = [0, 128], sizes = [8, 128], strides = [1, 1]} : vector<8x384xf32> to vector<8x128xf32>
    %255 = vector.extract_strided_slice %245 {offsets = [0, 128], sizes = [8, 128], strides = [1, 1]} : vector<8x384xf32> to vector<8x128xf32>
    %256 = arith.addf %254, %255 : vector<8x128xf32>
    %257 = arith.negf %256 : vector<8x128xf32>
    %258 = math.exp %257 : vector<8x128xf32>
    %cst_80 = arith.constant 1.000000e+00 : f32
    %259 = vector.broadcast %cst_80 : f32 to vector<8x128xf32>
    %260 = arith.addf %259, %258 : vector<8x128xf32>
    %261 = arith.divf %259, %260 : vector<8x128xf32>
    %262 = vector.extract_strided_slice %244 {offsets = [0, 256], sizes = [8, 128], strides = [1, 1]} : vector<8x384xf32> to vector<8x128xf32>
    %263 = vector.extract_strided_slice %245 {offsets = [0, 256], sizes = [8, 128], strides = [1, 1]} : vector<8x384xf32> to vector<8x128xf32>
    %264 = arith.addf %263, %14 : vector<8x128xf32>
    %265 = arith.mulf %253, %264 : vector<8x128xf32>
    %266 = arith.addf %262, %265 : vector<8x128xf32>
    %267 = math.tanh %266 : vector<8x128xf32>
    %268 = arith.subf %233, %267 : vector<8x128xf32>
    %269 = arith.mulf %261, %268 : vector<8x128xf32>
    %270 = arith.addf %267, %269 : vector<8x128xf32>
    %c0_81 = arith.constant 0 : index
    %271 = arith.index_cast %240 : i32 to index
    %c0_82 = arith.constant 0 : index
    %c0_83 = arith.constant 0 : index
    %272 = vector.load %arg6[%c0_81, %271, %c0_82, %c0_83] : memref<1x8x8x128xf32, #tpu.memory_space<vmem>>, vector<1x1x8x128xf32>
    %273 = vector.shape_cast %272 : vector<1x1x8x128xf32> to vector<8x128xf32>
    %274 = vector.shape_cast %270 : vector<8x128xf32> to vector<1x1x8x128xf32>
    tpu.vector_store %arg6[%c0_81, %271, %c0_82, %c0_83], %274 {strides = array<i32>} : memref<1x8x8x128xf32, #tpu.memory_space<vmem>>, vector<1x1x8x128xf32>,
    %c7_i32_84 = arith.constant 7 : i32
    %c0_i32_85 = arith.constant 0 : i32
    %275 = arith.cmpi eq, %arg0, %c0_i32_85 : i32
    %c7_i32_86 = arith.constant 7 : i32
    %276 = arith.subi %c7_i32_86, %c7_i32_84 : i32
    %277 = arith.select %275, %c7_i32_84, %276 : i32
    %c8_i32_87 = arith.constant 8 : i32
    %278 = arith.muli %277, %c8_i32_87 : i32
    %279 = tpu.assume_multiple %278, 8 : i32
    %280 = arith.index_cast %279 : i32 to index
    %c0_88 = arith.constant 0 : index
    %281 = vector.load %arg7[%280, %c0_88] : memref<64x384xf32, #tpu.memory_space<vmem>>, vector<8x384xf32>
    %cst_89 = arith.constant dense<0.000000e+00> : vector<8x384xf32>
    %282 = tpu.matmul %270, %10, %cst_89 {dimension_numbers = #tpu.dot_dimension_numbers<[1], [0], [0], [1], [0, 0, 1, 1], [], []>} : vector<8x128xf32>, vector<128x384xf32>, vector<8x384xf32> -> vector<8x384xf32>
    %283 = vector.extract_strided_slice %281 {offsets = [0, 0], sizes = [8, 128], strides = [1, 1]} : vector<8x384xf32> to vector<8x128xf32>
    %284 = vector.extract_strided_slice %282 {offsets = [0, 0], sizes = [8, 128], strides = [1, 1]} : vector<8x384xf32> to vector<8x128xf32>
    %285 = arith.addf %283, %284 : vector<8x128xf32>
    %286 = arith.negf %285 : vector<8x128xf32>
    %287 = math.exp %286 : vector<8x128xf32>
    %cst_90 = arith.constant 1.000000e+00 : f32
    %288 = vector.broadcast %cst_90 : f32 to vector<8x128xf32>
    %289 = arith.addf %288, %287 : vector<8x128xf32>
    %290 = arith.divf %288, %289 : vector<8x128xf32>
    %291 = vector.extract_strided_slice %281 {offsets = [0, 128], sizes = [8, 128], strides = [1, 1]} : vector<8x384xf32> to vector<8x128xf32>
    %292 = vector.extract_strided_slice %282 {offsets = [0, 128], sizes = [8, 128], strides = [1, 1]} : vector<8x384xf32> to vector<8x128xf32>
    %293 = arith.addf %291, %292 : vector<8x128xf32>
    %294 = arith.negf %293 : vector<8x128xf32>
    %295 = math.exp %294 : vector<8x128xf32>
    %cst_91 = arith.constant 1.000000e+00 : f32
    %296 = vector.broadcast %cst_91 : f32 to vector<8x128xf32>
    %297 = arith.addf %296, %295 : vector<8x128xf32>
    %298 = arith.divf %296, %297 : vector<8x128xf32>
    %299 = vector.extract_strided_slice %281 {offsets = [0, 256], sizes = [8, 128], strides = [1, 1]} : vector<8x384xf32> to vector<8x128xf32>
    %300 = vector.extract_strided_slice %282 {offsets = [0, 256], sizes = [8, 128], strides = [1, 1]} : vector<8x384xf32> to vector<8x128xf32>
    %301 = arith.addf %300, %14 : vector<8x128xf32>
    %302 = arith.mulf %290, %301 : vector<8x128xf32>
    %303 = arith.addf %299, %302 : vector<8x128xf32>
    %304 = math.tanh %303 : vector<8x128xf32>
    %305 = arith.subf %270, %304 : vector<8x128xf32>
    %306 = arith.mulf %298, %305 : vector<8x128xf32>
    %307 = arith.addf %304, %306 : vector<8x128xf32>
    %c0_92 = arith.constant 0 : index
    %308 = arith.index_cast %277 : i32 to index
    %c0_93 = arith.constant 0 : index
    %c0_94 = arith.constant 0 : index
    %309 = vector.load %arg6[%c0_92, %308, %c0_93, %c0_94] : memref<1x8x8x128xf32, #tpu.memory_space<vmem>>, vector<1x1x8x128xf32>
    %310 = vector.shape_cast %309 : vector<1x1x8x128xf32> to vector<8x128xf32>
    %311 = vector.shape_cast %307 : vector<8x128xf32> to vector<1x1x8x128xf32>
    tpu.vector_store %arg6[%c0_92, %308, %c0_93, %c0_94], %311 {strides = array<i32>} : memref<1x8x8x128xf32, #tpu.memory_space<vmem>>, vector<1x1x8x128xf32>,
    %c8_i32_95 = arith.constant 8 : i32
    return
  }
  func.func @transform_0(%arg0: i32) -> (i32, i32) {
    %c0_i32 = arith.constant 0 : i32
    %c0_i32_0 = arith.constant 0 : i32
    %c0_i32_1 = arith.constant 0 : i32
    return %c0_i32, %c0_i32_0 : i32, i32
  }
  func.func @transform_1(%arg0: i32) -> (i32, i32, i32) {
    %c0_i32 = arith.constant 0 : i32
    %c0_i32_0 = arith.constant 0 : i32
    %c0_i32_1 = arith.constant 0 : i32
    return %arg0, %c0_i32, %c0_i32_0 : i32, i32, i32
  }
  func.func @transform_2(%arg0: i32) -> (i32, i32, i32) {
    %c0_i32 = arith.constant 0 : i32
    %c0_i32_0 = arith.constant 0 : i32
    %c0_i32_1 = arith.constant 0 : i32
    return %arg0, %c0_i32, %c0_i32_0 : i32, i32, i32
  }
  func.func @transform_3(%arg0: i32) -> (i32, i32, i32) {
    %c0_i32 = arith.constant 0 : i32
    %c0_i32_0 = arith.constant 0 : i32
    %c0_i32_1 = arith.constant 0 : i32
    return %arg0, %c0_i32, %c0_i32_0 : i32, i32, i32
  }
  func.func @transform_4(%arg0: i32) -> (i32, i32, i32) {
    %c0_i32 = arith.constant 0 : i32
    %c0_i32_0 = arith.constant 0 : i32
    %c0_i32_1 = arith.constant 0 : i32
    return %arg0, %c0_i32, %c0_i32_0 : i32, i32, i32
  }
  func.func @transform_5(%arg0: i32) -> (i32, i32, i32, i32) {
    %c0_i32 = arith.constant 0 : i32
    %c0_i32_0 = arith.constant 0 : i32
    %c0_i32_1 = arith.constant 0 : i32
    %c0_i32_2 = arith.constant 0 : i32
    return %arg0, %c0_i32, %c0_i32_0, %c0_i32_1 : i32, i32, i32, i32
  }
}

</mosaic_0001>

<llo_original>
// kernel: tpu_custom_call.1
$region0: #{tpu_custom_call.1}
  #allocation0 [shape = 'u32[]', space=smem, size = 0x4, offset = 0x4, fixed_abs, tag = 'smem constant byte address 0x4 - core index']
  #allocation1 [shape = 'u32[144,128]{1,0:T(1,128)}', space=vmem, size = 0x12000, scoped, tag = 'internal scratch']
  #allocation2 [shape = 'f32[64,384]{1,0:T(8,128)}', space=vmem, size = 0x18000, scoped, tag = 'scratch operand']
  %s0 = inlined_call_operand.hbm [shape: f32[64,128], index: 0, kind: input, shape index: {}]
  %s1 = inlined_call_operand.hbm [shape: f32[2,128,384], index: 1, kind: input, shape index: {}]
  %s2 = inlined_call_operand.hbm [shape: f32[2,128,384], index: 2, kind: input, shape index: {}]
  %s3 = inlined_call_operand.hbm [shape: f32[2,1,384], index: 3, kind: input, shape index: {}]
  %s4 = inlined_call_operand.hbm [shape: f32[2,1,128], index: 4, kind: input, shape index: {}]
  %s5 = inlined_call_operand.hbm [shape: f32[2,8,8,128], index: 5, kind: output, shape index: {}]
  %s6 = sld [smem:[#allocation0]]
  $region73: #{tpu_custom_call.1} parent=0
    _
  %s8 = ssub.s32 1, %s6
  %s9 = scalar_select 0, %s8, %s6
  $region1: #{tpu_custom_call.1} parent=0
    #allocation3 [shape = 'u8[32768]{0}', space=vmem, size = 0x8000, scoped, tag = 'input window, operand 0, single buffered']
    #allocation4 [shape = 's32[2]{0}', space=sflag, size = 0x8, scoped, tag = 'scoped memory for tpu_custom_call.1']
    #allocation5 [shape = 's32[2]{0}', space=sflag, size = 0x8, scoped, tag = 'scoped memory for tpu_custom_call.1']
    #allocation6 [shape = 'u8[196608]{0}', space=vmem, size = 0x30000, scoped, tag = 'input window, operand 1, single buffered']
    #allocation7 [shape = 's32[1]{0}', space=sflag, size = 0x4, scoped, tag = 'scoped memory for tpu_custom_call.1']
    #allocation8 [shape = 'u8[196608]{0}', space=vmem, size = 0x30000, scoped, tag = 'input window, operand 2, single buffered']
    #allocation9 [shape = 'u8[1536]{0}', space=vmem, size = 0x800, scoped, tag = 'input window, operand 3, single buffered']
    #allocation10 [shape = 's32[1]{0}', space=sflag, size = 0x4, scoped, tag = 'scoped memory for tpu_custom_call.1']
    #allocation11 [shape = 'u8[512]{0}', space=vmem, size = 0x400, scoped, tag = 'input window, operand 4, single buffered']
    #allocation12 [shape = 'u8[65536]{0}', space=vmem, size = 0x10000, scoped, tag = 'output window, operand 0']
    %10 = vsyncpa [#allocation4], 0
    %11 = vsyncpa [#allocation7], 0
    %12 = vsyncpa [#allocation10], 0
    %13 = vsyncpa [#allocation5], 0
    %s14 = scalar_lea.sflag [#allocation5], 1
    %15 = vsyncpa %s14, 0
    loop: start=0, step=1, limit=4
    $region2: #{tpu_custom_call.1} parent=1 // loop_pre_header
      _
    $region3: #{tpu_custom_call.1} parent=1 // loop_header
      %s17 = sphi 0, %s21
      %p18 = scmp.ge.s32.totalorder %s17, 4
      %s25 = sphi 0, %s25
      %s27 = sphi 0, %s25
      %s28 = sphi 0, %s27
      %s42 = sphi 0, %s28
      %s48 = sphi 0, %s50
      %s51 = sphi 0, %s48
      %s52 = sphi 0, %s51
      %s68 = sphi 0, %s52
      %s74 = sphi 0, %s76
      %s77 = sphi 0, %s74
      %s78 = sphi 0, %s77
      %s94 = sphi 0, %s78
      %s100 = sphi 0, %s102
      %s103 = sphi 0, %s100
      %s104 = sphi 0, %s103
      %s120 = sphi 0, %s104
      %s126 = sphi 0, %s128
      %s129 = sphi 0, %s126
      %s130 = sphi 0, %s129
      %s146 = sphi 0, %s130
      %s152 = sphi 0, %s154
      %s155 = sphi 0, %s152
      %s156 = sphi 0, %s155
      %s172 = sphi 0, %s156
    $region4: #{tpu_custom_call.1} parent=1 // loop_header_branch
      %20 = sbr.rel (%p18) target = $region8
    $region5: #{tpu_custom_call.1} parent=1 // loop_body
      %s22 = ssub.s32 %s17, 1
      %s23 = ssub.s32 %s17, 2
      %s24 = sadd.s32 %s17, 1
      %s26 = sadd.s32 %s25, 1
      %p29 = scmp.eq.s32.totalorder %s17, 1
      %p30 = scmp.ne.s32.totalorder %s25, %s27
      %p31 = scmp.eq.s32.totalorder %s17, 0
      %p32 = por %p30, %p31
      %p33 = scmp.ne.s32.totalorder %s25, %s27
      %p34 = scmp.eq.s32.totalorder %s22, 1
      %p35 = por %p33, %p34
      %p36 = scmp.ne.s32.totalorder %s27, %s28
      %p37 = scmp.eq.s32.totalorder %s22, 0
      %p38 = por %p36, %p37
      %p39 = scmp.ne.s32.totalorder %s27, %s28
      %p40 = scmp.eq.s32.totalorder %s23, 1
      %p41 = por %p39, %p40
      %p43 = scmp.ne.s32.totalorder %s28, %s42
      %p44 = scmp.eq.s32.totalorder %s23, 0
      %p45 = por %p43, %p44
      %s46 = ssub.s32 %s17, %s24
      %p47 = scmp.eq.s32.totalorder %s46, 0
      %s49 = sadd.s32 %s48, 1
      %s50 = scalar_select %p47, %s48, %s49
      %p53 = pneg %p47
      %p54 = scmp.eq.s32.totalorder %s17, 1
      %p55 = por %p53, %p54
      %p56 = scmp.ne.s32.totalorder %s48, %s51
      %p57 = scmp.eq.s32.totalorder %s17, 0
      %p58 = por %p56, %p57
      %p59 = scmp.ne.s32.totalorder %s48, %s51
      %p60 = scmp.eq.s32.totalorder %s22, 1
      %p61 = por %p59, %p60
      %p62 = scmp.ne.s32.totalorder %s51, %s52
      %p63 = scmp.eq.s32.totalorder %s22, 0
      %p64 = por %p62, %p63
      %p65 = scmp.ne.s32.totalorder %s51, %s52
      %p66 = scmp.eq.s32.totalorder %s23, 1
      %p67 = por %p65, %p66
      %p69 = scmp.ne.s32.totalorder %s52, %s68
      %p70 = scmp.eq.s32.totalorder %s23, 0
      %p71 = por %p69, %p70
      %s72 = ssub.s32 %s17, %s24
      %p73 = scmp.eq.s32.totalorder %s72, 0
      %s75 = sadd.s32 %s74, 1
      %s76 = scalar_select %p73, %s74, %s75
      %p79 = pneg %p73
      %p80 = scmp.eq.s32.totalorder %s17, 1
      %p81 = por %p79, %p80
      %p82 = scmp.ne.s32.totalorder %s74, %s77
      %p83 = scmp.eq.s32.totalorder %s17, 0
      %p84 = por %p82, %p83
      %p85 = scmp.ne.s32.totalorder %s74, %s77
      %p86 = scmp.eq.s32.totalorder %s22, 1
      %p87 = por %p85, %p86
      %p88 = scmp.ne.s32.totalorder %s77, %s78
      %p89 = scmp.eq.s32.totalorder %s22, 0
      %p90 = por %p88, %p89
      %p91 = scmp.ne.s32.totalorder %s77, %s78
      %p92 = scmp.eq.s32.totalorder %s23, 1
      %p93 = por %p91, %p92
      %p95 = scmp.ne.s32.totalorder %s78, %s94
      %p96 = scmp.eq.s32.totalorder %s23, 0
      %p97 = por %p95, %p96
      %s98 = ssub.s32 %s17, %s24
      %p99 = scmp.eq.s32.totalorder %s98, 0
      %s101 = sadd.s32 %s100, 1
      %s102 = scalar_select %p99, %s100, %s101
      %p105 = pneg %p99
      %p106 = scmp.eq.s32.totalorder %s17, 1
      %p107 = por %p105, %p106
      %p108 = scmp.ne.s32.totalorder %s100, %s103
      %p109 = scmp.eq.s32.totalorder %s17, 0
      %p110 = por %p108, %p109
      %p111 = scmp.ne.s32.totalorder %s100, %s103
      %p112 = scmp.eq.s32.totalorder %s22, 1
      %p113 = por %p111, %p112
      %p114 = scmp.ne.s32.totalorder %s103, %s104
      %p115 = scmp.eq.s32.totalorder %s22, 0
      %p116 = por %p114, %p115
      %p117 = scmp.ne.s32.totalorder %s103, %s104
      %p118 = scmp.eq.s32.totalorder %s23, 1
      %p119 = por %p117, %p118
      %p121 = scmp.ne.s32.totalorder %s104, %s120
      %p122 = scmp.eq.s32.totalorder %s23, 0
      %p123 = por %p121, %p122
      %s124 = ssub.s32 %s17, %s24
      %p125 = scmp.eq.s32.totalorder %s124, 0
      %s127 = sadd.s32 %s126, 1
      %s128 = scalar_select %p125, %s126, %s127
      %p131 = pneg %p125
      %p132 = scmp.eq.s32.totalorder %s17, 1
      %p133 = por %p131, %p132
      %p134 = scmp.ne.s32.totalorder %s126, %s129
      %p135 = scmp.eq.s32.totalorder %s17, 0
      %p136 = por %p134, %p135
      %p137 = scmp.ne.s32.totalorder %s126, %s129
      %p138 = scmp.eq.s32.totalorder %s22, 1
      %p139 = por %p137, %p138
      %p140 = scmp.ne.s32.totalorder %s129, %s130
      %p141 = scmp.eq.s32.totalorder %s22, 0
      %p142 = por %p140, %p141
      %p143 = scmp.ne.s32.totalorder %s129, %s130
      %p144 = scmp.eq.s32.totalorder %s23, 1
      %p145 = por %p143, %p144
      %p147 = scmp.ne.s32.totalorder %s130, %s146
      %p148 = scmp.eq.s32.totalorder %s23, 0
      %p149 = por %p147, %p148
      %s150 = ssub.s32 %s17, %s24
      %p151 = scmp.eq.s32.totalorder %s150, 0
      %s153 = sadd.s32 %s152, 1
      %s154 = scalar_select %p151, %s152, %s153
      %p157 = pneg %p151
      %p158 = scmp.eq.s32.totalorder %s17, 1
      %p159 = por %p157, %p158
      %p160 = scmp.ne.s32.totalorder %s152, %s155
      %p161 = scmp.eq.s32.totalorder %s17, 0
      %p162 = por %p160, %p161
      %p163 = scmp.ne.s32.totalorder %s152, %s155
      %p164 = scmp.eq.s32.totalorder %s22, 1
      %p165 = por %p163, %p164
      %p166 = scmp.ne.s32.totalorder %s155, %s156
      %p167 = scmp.eq.s32.totalorder %s22, 0
      %p168 = por %p166, %p167
      %p169 = scmp.ne.s32.totalorder %s155, %s156
      %p170 = scmp.eq.s32.totalorder %s23, 1
      %p171 = por %p169, %p170
      %p173 = scmp.ne.s32.totalorder %s156, %s172
      %p174 = scmp.eq.s32.totalorder %s23, 0
      %p175 = por %p173, %p174
      %p176 = scmp.le.s32.totalorder 1, %s17
      %p177 = scmp.lt.s32.totalorder %s17, 3
      %p178 = pnand %p176, %p177
      %p179 = pneg %p178
      // Predicated region
      $region9: #{tpu_custom_call.1} parent=5 // pred_check
        _
      $region10: #{tpu_custom_call.1} parent=5 // pred_check_branch
        %181 = sbr.rel (%p178) target = $region12
      $region11: #{tpu_custom_call.1} parent=5 // pred_region
        %s182 = ssub.s32 %s17, 1
        // Predicated region
        $region13: #{tpu_custom_call.1} parent=11 // pred_check
          %p183 = pneg %p38
        $region14: #{tpu_custom_call.1} parent=11 // pred_check_branch
          %185 = sbr.rel (%p183) target = $region16
        $region15: #{tpu_custom_call.1} parent=11 // pred_region
          %s187 = ssub.s32 1024, 1024
          %188 = vsyncadd [#allocation4], %s187
          %s189 = sshll.u32 [#allocation3], 4
          %s190 = int_to_ptr.vmem [resolvable:$true] %s189
          %195 = dma.hbm_to_vmem [thread:$0]  %s0, 1024, %s190, [#allocation4], 128, 128, 8
        $region16: #{tpu_custom_call.1} parent=11 // pred_fallthru
          _
        // Predicated region
        $region17: #{tpu_custom_call.1} parent=11 // pred_check
          %p196 = pneg %p64
        $region18: #{tpu_custom_call.1} parent=11 // pred_check_branch
          %198 = sbr.rel (%p196) target = $region20
        $region19: #{tpu_custom_call.1} parent=11 // pred_region
          %s200 = ssub.s32 6144, 6144
          %201 = vsyncadd [#allocation7], %s200
          %s202 = smul.addr %s22, 48
          %s203 = smul.addr %s202, 128
          %s204 = scalar_lea.hbm %s1, %s203
          %s205 = sshll.u32 [#allocation6], 4
          %s206 = int_to_ptr.vmem [resolvable:$true] %s205
          %211 = dma.hbm_to_vmem [thread:$0]  %s204, 6144, %s206, [#allocation7], 384, 384, 24
        $region20: #{tpu_custom_call.1} parent=11 // pred_fallthru
          _
        // Predicated region
        $region21: #{tpu_custom_call.1} parent=11 // pred_check
          %p212 = pneg %p90
        $region22: #{tpu_custom_call.1} parent=11 // pred_check_branch
          %214 = sbr.rel (%p212) target = $region24
        $region23: #{tpu_custom_call.1} parent=11 // pred_region
          %s216 = ssub.s32 6144, 6144
          %217 = vsyncadd [#allocation7], %s216
          %s218 = smul.addr %s22, 48
          %s219 = smul.addr %s218, 128
          %s220 = scalar_lea.hbm %s2, %s219
          %s221 = sshll.u32 [#allocation8], 4
          %s222 = int_to_ptr.vmem [resolvable:$true] %s221
          %227 = dma.hbm_to_vmem [thread:$0]  %s220, 6144, %s222, [#allocation7], 384, 384, 24
        $region24: #{tpu_custom_call.1} parent=11 // pred_fallthru
          _
        // Predicated region
        $region25: #{tpu_custom_call.1} parent=11 // pred_check
          %p228 = pneg %p116
        $region26: #{tpu_custom_call.1} parent=11 // pred_check_branch
          %230 = sbr.rel (%p228) target = $region28
        $region27: #{tpu_custom_call.1} parent=11 // pred_region
          %s232 = ssub.s32 48, 48
          %233 = vsyncadd [#allocation10], %s232
          %s234 = smul.addr %s22, 3
          %s235 = smul.addr %s234, 16
          %s236 = scalar_lea.hbm %s3, %s235
          %s238 = sshll.u32 [#allocation9], 4
          %s239 = int_to_ptr.vmem [resolvable:$true] %s238
          %241 = dma.hbm_to_vmem [thread:$0]  %s236, 48, %s239, [#allocation10]
        $region28: #{tpu_custom_call.1} parent=11 // pred_fallthru
          _
        // Predicated region
        $region29: #{tpu_custom_call.1} parent=11 // pred_check
          %p242 = pneg %p142
        $region30: #{tpu_custom_call.1} parent=11 // pred_check_branch
          %244 = sbr.rel (%p242) target = $region32
        $region31: #{tpu_custom_call.1} parent=11 // pred_region
          %s246 = ssub.s32 16, 16
          %247 = vsyncadd [#allocation10], %s246
          %s248 = smul.addr %s22, 16
          %s249 = scalar_lea.hbm %s4, %s248
          %s251 = sshll.u32 [#allocation11], 4
          %s252 = int_to_ptr.vmem [resolvable:$true] %s251
          %254 = dma.hbm_to_vmem [thread:$0]  %s249, 16, %s252, [#allocation10]
        $region32: #{tpu_custom_call.1} parent=11 // pred_fallthru
          _
      $region12: #{tpu_custom_call.1} parent=5 // pred_fallthru
        _
      %p255 = scmp.lt.s32.totalorder %s17, 2
      // Predicated region
      $region33: #{tpu_custom_call.1} parent=5 // pred_check
        %p256 = pneg %p255
      $region34: #{tpu_custom_call.1} parent=5 // pred_check_branch
        %258 = sbr.rel (%p256) target = $region36
      $region35: #{tpu_custom_call.1} parent=5 // pred_region
        _
      $region36: #{tpu_custom_call.1} parent=5 // pred_fallthru
        _
      %p259 = scmp.le.s32.totalorder 1, %s17
      %p260 = scmp.lt.s32.totalorder %s17, 3
      %p261 = pnand %p259, %p260
      %p262 = pneg %p261
      // Predicated region
      $region37: #{tpu_custom_call.1} parent=5 // pred_check
        _
      $region38: #{tpu_custom_call.1} parent=5 // pred_check_branch
        %264 = sbr.rel (%p261) target = $region40
      $region39: #{tpu_custom_call.1} parent=5 // pred_region
        %s265 = ssub.s32 %s17, 1
        // Predicated region
        $region41: #{tpu_custom_call.1} parent=39 // pred_check
          %p266 = pneg %p38
        $region42: #{tpu_custom_call.1} parent=39 // pred_check_branch
          %268 = sbr.rel (%p266) target = $region44
        $region43: #{tpu_custom_call.1} parent=39 // pred_region
          %269 = dma.done [#allocation4], 1024
        $region44: #{tpu_custom_call.1} parent=39 // pred_fallthru
          _
        // Predicated region
        $region45: #{tpu_custom_call.1} parent=39 // pred_check
          %p270 = pneg %p64
        $region46: #{tpu_custom_call.1} parent=39 // pred_check_branch
          %272 = sbr.rel (%p270) target = $region48
        $region47: #{tpu_custom_call.1} parent=39 // pred_region
          %273 = dma.done [#allocation7], 6144
        $region48: #{tpu_custom_call.1} parent=39 // pred_fallthru
          _
        // Predicated region
        $region49: #{tpu_custom_call.1} parent=39 // pred_check
          %p274 = pneg %p90
        $region50: #{tpu_custom_call.1} parent=39 // pred_check_branch
          %276 = sbr.rel (%p274) target = $region52
        $region51: #{tpu_custom_call.1} parent=39 // pred_region
          %277 = dma.done [#allocation7], 6144
        $region52: #{tpu_custom_call.1} parent=39 // pred_fallthru
          _
        // Predicated region
        $region53: #{tpu_custom_call.1} parent=39 // pred_check
          %p278 = pneg %p116
        $region54: #{tpu_custom_call.1} parent=39 // pred_check_branch
          %280 = sbr.rel (%p278) target = $region56
        $region55: #{tpu_custom_call.1} parent=39 // pred_region
          %281 = dma.done [#allocation10], 48
        $region56: #{tpu_custom_call.1} parent=39 // pred_fallthru
          _
        // Predicated region
        $region57: #{tpu_custom_call.1} parent=39 // pred_check
          %p282 = pneg %p142
        $region58: #{tpu_custom_call.1} parent=39 // pred_check_branch
          %284 = sbr.rel (%p282) target = $region60
        $region59: #{tpu_custom_call.1} parent=39 // pred_region
          %285 = dma.done [#allocation10], 16
        $region60: #{tpu_custom_call.1} parent=39 // pred_fallthru
          _
        %p286 = pneg %p38
        %p287 = pneg %p35
        %p288 = pneg %p64
        %p289 = pneg %p61
        %p290 = pneg %p90
        %p291 = pneg %p87
        %p292 = pneg %p116
        %p293 = pneg %p113
        %p294 = pneg %p142
        %p295 = pneg %p139
        %p296 = pneg %p168
        %p297 = pneg %p165
        %s298 = sand.u32 %s155, 1
        %s299 = scalar_lea.sflag [#allocation5], %s298
        %s300 = sand.u32 %s155, 1
        %s301 = smul.addr %s300, 64
        %s302 = scalar_lea.vmem [#allocation12], %s301
        %v303 = vld [vmem:[#allocation3] sm:$0xff]
        %v304 = vld [vmem:[#allocation3 + $0x8] sm:$0xff]
        %v305 = vld [vmem:[#allocation3 + $0x10] sm:$0xff]
        %v306 = vld [vmem:[#allocation3 + $0x18] sm:$0xff]
        %v307 = vld [vmem:[#allocation3 + $0x20] sm:$0xff]
        %v308 = vld [vmem:[#allocation3 + $0x28] sm:$0xff]
        %v309 = vld [vmem:[#allocation3 + $0x30] sm:$0xff]
        %v310 = vld [vmem:[#allocation3 + $0x38] sm:$0xff]
        %v311 = vld [vmem:[#allocation6] sm:$0xff]
        %v312 = vld [vmem:[#allocation6 + $0x8] sm:$0xff]
        %v313 = vld [vmem:[#allocation6 + $0x10] sm:$0xff]
        %v314 = vld [vmem:[#allocation6 + $0x18] sm:$0xff]
        %v315 = vld [vmem:[#allocation6 + $0x20] sm:$0xff]
        %v316 = vld [vmem:[#allocation6 + $0x28] sm:$0xff]
        %v317 = vld [vmem:[#allocation6 + $0x30] sm:$0xff]
        %v318 = vld [vmem:[#allocation6 + $0x38] sm:$0xff]
        %v319 = vld [vmem:[#allocation6 + $0x40] sm:$0xff]
        %v320 = vld [vmem:[#allocation6 + $0x48] sm:$0xff]
        %v321 = vld [vmem:[#allocation6 + $0x50] sm:$0xff]
        %v322 = vld [vmem:[#allocation6 + $0x58] sm:$0xff]
        %v323 = vld [vmem:[#allocation6 + $0x60] sm:$0xff]
        %v324 = vld [vmem:[#allocation6 + $0x68] sm:$0xff]
        %v325 = vld [vmem:[#allocation6 + $0x70] sm:$0xff]
        %v326 = vld [vmem:[#allocation6 + $0x78] sm:$0xff]
        %v327 = vld [vmem:[#allocation6 + $0x80] sm:$0xff]
        %v328 = vld [vmem:[#allocation6 + $0x88] sm:$0xff]
        %v329 = vld [vmem:[#allocation6 + $0x90] sm:$0xff]
        %v330 = vld [vmem:[#allocation6 + $0x98] sm:$0xff]
        %v331 = vld [vmem:[#allocation6 + $0xa0] sm:$0xff]
        %v332 = vld [vmem:[#allocation6 + $0xa8] sm:$0xff]
        %v333 = vld [vmem:[#allocation6 + $0xb0] sm:$0xff]
        %v334 = vld [vmem:[#allocation6 + $0xb8] sm:$0xff]
        %v335 = vld [vmem:[#allocation6 + $0xc0] sm:$0xff]
        %v336 = vld [vmem:[#allocation6 + $0xc8] sm:$0xff]
        %v337 = vld [vmem:[#allocation6 + $0xd0] sm:$0xff]
        %v338 = vld [vmem:[#allocation6 + $0xd8] sm:$0xff]
        %v339 = vld [vmem:[#allocation6 + $0xe0] sm:$0xff]
        %v340 = vld [vmem:[#allocation6 + $0xe8] sm:$0xff]
        %v341 = vld [vmem:[#allocation6 + $0xf0] sm:$0xff]
        %v342 = vld [vmem:[#allocation6 + $0xf8] sm:$0xff]
        %v343 = vld [vmem:[#allocation6 + $0x100] sm:$0xff]
        %v344 = vld [vmem:[#allocation6 + $0x108] sm:$0xff]
        %v345 = vld [vmem:[#allocation6 + $0x110] sm:$0xff]
        %v346 = vld [vmem:[#allocation6 + $0x118] sm:$0xff]
        %v347 = vld [vmem:[#allocation6 + $0x120] sm:$0xff]
        %v348 = vld [vmem:[#allocation6 + $0x128] sm:$0xff]
        %v349 = vld [vmem:[#allocation6 + $0x130] sm:$0xff]
        %v350 = vld [vmem:[#allocation6 + $0x138] sm:$0xff]
        %v351 = vld [vmem:[#allocation6 + $0x140] sm:$0xff]
        %v352 = vld [vmem:[#allocation6 + $0x148] sm:$0xff]
        %v353 = vld [vmem:[#allocation6 + $0x150] sm:$0xff]
        %v354 = vld [vmem:[#allocation6 + $0x158] sm:$0xff]
        %v355 = vld [vmem:[#allocation6 + $0x160] sm:$0xff]
        %v356 = vld [vmem:[#allocation6 + $0x168] sm:$0xff]
        %v357 = vld [vmem:[#allocation6 + $0x170] sm:$0xff]
        %v358 = vld [vmem:[#allocation6 + $0x178] sm:$0xff]
        %v359 = vld [vmem:[#allocation9] sm:$0x7]
        %v361 = vlaneseq
        %v362 = vshrl.u32 %v361, 7
        %v363 = vsub.s32 0, %v362
        %v364 = vrot.slane %v359, %v363
        %v365 = vlaneseq
        %v366 = vshrl.u32 %v365, 7
        %v367 = vsub.s32 1, %v366
        %v368 = vrot.slane %v359, %v367
        %v369 = vlaneseq
        %v370 = vshrl.u32 %v369, 7
        %v371 = vsub.s32 2, %v370
        %v372 = vrot.slane %v359, %v371
        %376 = vmatprep.subr.mxu0 %v312
        %377 = vmatpush1.msra.mxu0 %v311
        %378 = vmatprep.subr.mxu0 %v315
        %379 = vmatpush1.msra.mxu0 %v314
        %380 = vmatprep.subr.mxu0 %v318
        %381 = vmatpush1.msra.mxu0 %v317
        %382 = vmatprep.subr.mxu0 %v321
        %383 = vmatpush1.msra.mxu0 %v320
        %384 = vmatprep.subr.mxu0 %v324
        %385 = vmatpush1.msra.mxu0 %v323
        %386 = vmatprep.subr.mxu0 %v327
        %387 = vmatpush1.msra.mxu0 %v326
        %388 = vmatprep.subr.mxu0 %v330
        %389 = vmatpush1.msra.mxu0 %v329
        %390 = vmatprep.subr.mxu0 %v333
        %391 = vmatpush1.msra.mxu0 %v332
        %392 = vmatprep.subr.mxu0 %v336
        %393 = vmatpush1.msra.mxu0 %v335
        %394 = vmatprep.subr.mxu0 %v339
        %395 = vmatpush1.msra.mxu0 %v338
        %396 = vmatprep.subr.mxu0 %v342
        %397 = vmatpush1.msra.mxu0 %v341
        %398 = vmatprep.subr.mxu0 %v345
        %399 = vmatpush1.msra.mxu0 %v344
        %400 = vmatprep.subr.mxu0 %v348
        %401 = vmatpush1.msra.mxu0 %v347
        %402 = vmatprep.subr.mxu0 %v351
        %403 = vmatpush1.msra.mxu0 %v350
        %404 = vmatprep.subr.mxu0 %v354
        %405 = vmatpush1.msra.mxu0 %v353
        %406 = vmatprep.subr.mxu0 %v357
        %407 = vmatpush1.msra.mxu0 %v356
        %408 = vmatprep.subr.mxu0 0.0
        %409 = vmatpush1.msra.mxu0 0.0
        %410 = vmatprep.subr.mxu0 0.0
        %411 = vmatpush1.msra.mxu0 0.0
        %412 = vmatprep.subr.mxu0 0.0
        %413 = vmatpush1.msra.mxu0 0.0
        %414 = vmatprep.subr.mxu0 0.0
        %415 = vmatpush1.msra.mxu0 0.0
        %416 = vmatprep.subr.mxu0 0.0
        %417 = vmatpush1.msra.mxu0 0.0
        %418 = vmatprep.subr.mxu0 0.0
        %419 = vmatpush1.msra.mxu0 0.0
        %420 = vmatprep.subr.mxu0 0.0
        %421 = vmatpush1.msra.mxu0 0.0
        %422 = vmatprep.subr.mxu0 0.0
        %423 = vmatpush1.msra.mxu0 0.0
        %424 = vmatprep.subr.mxu0 0.0
        %425 = vmatpush1.msra.mxu0 0.0
        %426 = vmatprep.subr.mxu0 0.0
        %427 = vmatpush1.msra.mxu0 0.0
        %428 = vmatprep.subr.mxu0 0.0
        %429 = vmatpush1.msra.mxu0 0.0
        %430 = vmatprep.subr.mxu0 0.0
        %431 = vmatpush1.msra.mxu0 0.0
        %432 = vmatprep.subr.mxu0 0.0
        %433 = vmatpush1.msra.mxu0 0.0
        %434 = vmatprep.subr.mxu0 0.0
        %435 = vmatpush1.msra.mxu0 0.0
        %436 = vmatprep.subr.mxu0 0.0
        %437 = vmatpush1.msra.mxu0 0.0
        %438 = vmatprep.subr.mxu0 0.0
        %439 = vmatpush1.msra.mxu0 0.0
        %440 = vmatprep.mubr.f32.mxu0 0.0
        %441 = vmatmul.mubr.f32.gmra.mrb[0].mxu0 %v303
        %v442 = vpop.f32.mrb[0].mxu0
        %v443 = vadd.f32 %v364, %v442
        %v444 = vpop.f32.mrb[0].mxu0
        %v445 = vadd.f32 %v368, %v444
        %446 = vmatprep.mubr.f32.mxu0 0.0
        %447 = vmatmul.mubr.f32.gmra.mrb[0].mxu0 %v304
        %v448 = vpop.f32.mrb[0].mxu0
        %v449 = vadd.f32 %v364, %v448
        %v450 = vpop.f32.mrb[0].mxu0
        %v451 = vadd.f32 %v368, %v450
        %452 = vmatprep.mubr.f32.mxu0 0.0
        %453 = vmatmul.mubr.f32.gmra.mrb[0].mxu0 %v305
        %v454 = vpop.f32.mrb[0].mxu0
        %v455 = vadd.f32 %v364, %v454
        %v456 = vpop.f32.mrb[0].mxu0
        %v457 = vadd.f32 %v368, %v456
        %458 = vmatprep.mubr.f32.mxu0 0.0
        %459 = vmatmul.mubr.f32.gmra.mrb[0].mxu0 %v306
        %v460 = vpop.f32.mrb[0].mxu0
        %v461 = vadd.f32 %v364, %v460
        %v462 = vpop.f32.mrb[0].mxu0
        %v463 = vadd.f32 %v368, %v462
        %464 = vmatprep.mubr.f32.mxu0 0.0
        %465 = vmatmul.mubr.f32.gmra.mrb[0].mxu0 %v307
        %v466 = vpop.f32.mrb[0].mxu0
        %v467 = vadd.f32 %v364, %v466
        %v468 = vpop.f32.mrb[0].mxu0
        %v469 = vadd.f32 %v368, %v468
        %470 = vmatprep.mubr.f32.mxu0 0.0
        %471 = vmatmul.mubr.f32.gmra.mrb[0].mxu0 %v308
        %v472 = vpop.f32.mrb[0].mxu0
        %v473 = vadd.f32 %v364, %v472
        %v474 = vpop.f32.mrb[0].mxu0
        %v475 = vadd.f32 %v368, %v474
        %476 = vmatprep.mubr.f32.mxu0 0.0
        %477 = vmatmul.mubr.f32.gmra.mrb[0].mxu0 %v309
        %v478 = vpop.f32.mrb[0].mxu0
        %v479 = vadd.f32 %v364, %v478
        %v480 = vpop.f32.mrb[0].mxu0
        %v481 = vadd.f32 %v368, %v480
        %482 = vmatprep.mubr.f32.mxu0 0.0
        %483 = vmatmul.mubr.f32.gmra.mrb[0].mxu0 %v310
        %v484 = vpop.f32.mrb[0].mxu0
        %v485 = vadd.f32 %v364, %v484
        %v486 = vpop.f32.mrb[0].mxu0
        %v487 = vadd.f32 %v368, %v486
        %488 = vdwg.mxu0
        %489 = vmatprep.subr.mxu0 0.0
        %490 = vmatpush1.msra.mxu0 %v313
        %491 = vmatprep.subr.mxu0 0.0
        %492 = vmatpush1.msra.mxu0 %v316
        %493 = vmatprep.subr.mxu0 0.0
        %494 = vmatpush1.msra.mxu0 %v319
        %495 = vmatprep.subr.mxu0 0.0
        %496 = vmatpush1.msra.mxu0 %v322
        %497 = vmatprep.subr.mxu0 0.0
        %498 = vmatpush1.msra.mxu0 %v325
        %499 = vmatprep.subr.mxu0 0.0
        %500 = vmatpush1.msra.mxu0 %v328
        %501 = vmatprep.subr.mxu0 0.0
        %502 = vmatpush1.msra.mxu0 %v331
        %503 = vmatprep.subr.mxu0 0.0
        %504 = vmatpush1.msra.mxu0 %v334
        %505 = vmatprep.subr.mxu0 0.0
        %506 = vmatpush1.msra.mxu0 %v337
        %507 = vmatprep.subr.mxu0 0.0
        %508 = vmatpush1.msra.mxu0 %v340
        %509 = vmatprep.subr.mxu0 0.0
        %510 = vmatpush1.msra.mxu0 %v343
        %511 = vmatprep.subr.mxu0 0.0
        %512 = vmatpush1.msra.mxu0 %v346
        %513 = vmatprep.subr.mxu0 0.0
        %514 = vmatpush1.msra.mxu0 %v349
        %515 = vmatprep.subr.mxu0 0.0
        %516 = vmatpush1.msra.mxu0 %v352
        %517 = vmatprep.subr.mxu0 0.0
        %518 = vmatpush1.msra.mxu0 %v355
        %519 = vmatprep.subr.mxu0 0.0
        %520 = vmatpush1.msra.mxu0 %v358
        %521 = vmatprep.subr.mxu0 0.0
        %522 = vmatpush1.msra.mxu0 0.0
        %523 = vmatprep.subr.mxu0 0.0
        %524 = vmatpush1.msra.mxu0 0.0
        %525 = vmatprep.subr.mxu0 0.0
        %526 = vmatpush1.msra.mxu0 0.0
        %527 = vmatprep.subr.mxu0 0.0
        %528 = vmatpush1.msra.mxu0 0.0
        %529 = vmatprep.subr.mxu0 0.0
        %530 = vmatpush1.msra.mxu0 0.0
        %531 = vmatprep.subr.mxu0 0.0
        %532 = vmatpush1.msra.mxu0 0.0
        %533 = vmatprep.subr.mxu0 0.0
        %534 = vmatpush1.msra.mxu0 0.0
        %535 = vmatprep.subr.mxu0 0.0
        %536 = vmatpush1.msra.mxu0 0.0
        %537 = vmatprep.subr.mxu0 0.0
        %538 = vmatpush1.msra.mxu0 0.0
        %539 = vmatprep.subr.mxu0 0.0
        %540 = vmatpush1.msra.mxu0 0.0
        %541 = vmatprep.subr.mxu0 0.0
        %542 = vmatpush1.msra.mxu0 0.0
        %543 = vmatprep.subr.mxu0 0.0
        %544 = vmatpush1.msra.mxu0 0.0
        %545 = vmatprep.subr.mxu0 0.0
        %546 = vmatpush1.msra.mxu0 0.0
        %547 = vmatprep.subr.mxu0 0.0
        %548 = vmatpush1.msra.mxu0 0.0
        %549 = vmatprep.subr.mxu0 0.0
        %550 = vmatpush1.msra.mxu0 0.0
        %551 = vmatprep.subr.mxu0 0.0
        %552 = vmatpush1.msra.mxu0 0.0
        %553 = vmatprep.mubr.f32.mxu0 0.0
        %554 = vmatmul.mubr.f32.gmra.mrb[0].mxu0 %v303
        %v555 = vpop.f32.mrb[0].mxu0
        %v556 = vadd.f32 %v372, %v555
        %v557 = vpop.f32.mrb[0].mxu0
        %558 = vmatprep.mubr.f32.mxu0 0.0
        %559 = vmatmul.mubr.f32.gmra.mrb[0].mxu0 %v304
        %v560 = vpop.f32.mrb[0].mxu0
        %v561 = vadd.f32 %v372, %v560
        %v562 = vpop.f32.mrb[0].mxu0
        %563 = vmatprep.mubr.f32.mxu0 0.0
        %564 = vmatmul.mubr.f32.gmra.mrb[0].mxu0 %v305
        %v565 = vpop.f32.mrb[0].mxu0
        %v566 = vadd.f32 %v372, %v565
        %v567 = vpop.f32.mrb[0].mxu0
        %568 = vmatprep.mubr.f32.mxu0 0.0
        %569 = vmatmul.mubr.f32.gmra.mrb[0].mxu0 %v306
        %v570 = vpop.f32.mrb[0].mxu0
        %v571 = vadd.f32 %v372, %v570
        %v572 = vpop.f32.mrb[0].mxu0
        %573 = vmatprep.mubr.f32.mxu0 0.0
        %574 = vmatmul.mubr.f32.gmra.mrb[0].mxu0 %v307
        %v575 = vpop.f32.mrb[0].mxu0
        %v576 = vadd.f32 %v372, %v575
        %v577 = vpop.f32.mrb[0].mxu0
        %578 = vmatprep.mubr.f32.mxu0 0.0
        %579 = vmatmul.mubr.f32.gmra.mrb[0].mxu0 %v308
        %v580 = vpop.f32.mrb[0].mxu0
        %v581 = vadd.f32 %v372, %v580
        %v582 = vpop.f32.mrb[0].mxu0
        %583 = vmatprep.mubr.f32.mxu0 0.0
        %584 = vmatmul.mubr.f32.gmra.mrb[0].mxu0 %v309
        %v585 = vpop.f32.mrb[0].mxu0
        %v586 = vadd.f32 %v372, %v585
        %v587 = vpop.f32.mrb[0].mxu0
        %588 = vmatprep.mubr.f32.mxu0 0.0
        %589 = vmatmul.mubr.f32.gmra.mrb[0].mxu0 %v310
        %v590 = vpop.f32.mrb[0].mxu0
        %v591 = vadd.f32 %v372, %v590
        %v592 = vpop.f32.mrb[0].mxu0
        %593 = vdwg.mxu0
        %594 = vst [vmem:[#allocation2] sm:$0xff] %v443
        %595 = vst [vmem:[#allocation2 + $0x8] sm:$0xff] %v445
        %596 = vst [vmem:[#allocation2 + $0x10] sm:$0xff] %v556
        %597 = vst [vmem:[#allocation2 + $0x18] sm:$0xff] %v449
        %598 = vst [vmem:[#allocation2 + $0x20] sm:$0xff] %v451
        %599 = vst [vmem:[#allocation2 + $0x28] sm:$0xff] %v561
        %600 = vst [vmem:[#allocation2 + $0x30] sm:$0xff] %v455
        %601 = vst [vmem:[#allocation2 + $0x38] sm:$0xff] %v457
        %602 = vst [vmem:[#allocation2 + $0x40] sm:$0xff] %v566
        %603 = vst [vmem:[#allocation2 + $0x48] sm:$0xff] %v461
        %604 = vst [vmem:[#allocation2 + $0x50] sm:$0xff] %v463
        %605 = vst [vmem:[#allocation2 + $0x58] sm:$0xff] %v571
        %606 = vst [vmem:[#allocation2 + $0x60] sm:$0xff] %v467
        %607 = vst [vmem:[#allocation2 + $0x68] sm:$0xff] %v469
        %608 = vst [vmem:[#allocation2 + $0x70] sm:$0xff] %v576
        %609 = vst [vmem:[#allocation2 + $0x78] sm:$0xff] %v473
        %610 = vst [vmem:[#allocation2 + $0x80] sm:$0xff] %v475
        %611 = vst [vmem:[#allocation2 + $0x88] sm:$0xff] %v581
        %612 = vst [vmem:[#allocation2 + $0x90] sm:$0xff] %v479
        %613 = vst [vmem:[#allocation2 + $0x98] sm:$0xff] %v481
        %614 = vst [vmem:[#allocation2 + $0xa0] sm:$0xff] %v586
        %615 = vst [vmem:[#allocation2 + $0xa8] sm:$0xff] %v485
        %616 = vst [vmem:[#allocation2 + $0xb0] sm:$0xff] %v487
        %617 = vst [vmem:[#allocation2 + $0xb8] sm:$0xff] %v591
        %v618 = vld [vmem:[#allocation8] sm:$0xff]
        %v619 = vld [vmem:[#allocation8 + $0x8] sm:$0xff]
        %v620 = vld [vmem:[#allocation8 + $0x10] sm:$0xff]
        %v621 = vld [vmem:[#allocation8 + $0x18] sm:$0xff]
        %v622 = vld [vmem:[#allocation8 + $0x20] sm:$0xff]
        %v623 = vld [vmem:[#allocation8 + $0x28] sm:$0xff]
        %v624 = vld [vmem:[#allocation8 + $0x30] sm:$0xff]
        %v625 = vld [vmem:[#allocation8 + $0x38] sm:$0xff]
        %v626 = vld [vmem:[#allocation8 + $0x40] sm:$0xff]
        %v627 = vld [vmem:[#allocation8 + $0x48] sm:$0xff]
        %v628 = vld [vmem:[#allocation8 + $0x50] sm:$0xff]
        %v629 = vld [vmem:[#allocation8 + $0x58] sm:$0xff]
        %v630 = vld [vmem:[#allocation8 + $0x60] sm:$0xff]
        %v631 = vld [vmem:[#allocation8 + $0x68] sm:$0xff]
        %v632 = vld [vmem:[#allocation8 + $0x70] sm:$0xff]
        %v633 = vld [vmem:[#allocation8 + $0x78] sm:$0xff]
        %v634 = vld [vmem:[#allocation8 + $0x80] sm:$0xff]
        %v635 = vld [vmem:[#allocation8 + $0x88] sm:$0xff]
        %v636 = vld [vmem:[#allocation8 + $0x90] sm:$0xff]
        %v637 = vld [vmem:[#allocation8 + $0x98] sm:$0xff]
        %v638 = vld [vmem:[#allocation8 + $0xa0] sm:$0xff]
        %v639 = vld [vmem:[#allocation8 + $0xa8] sm:$0xff]
        %v640 = vld [vmem:[#allocation8 + $0xb0] sm:$0xff]
        %v641 = vld [vmem:[#allocation8 + $0xb8] sm:$0xff]
        %v642 = vld [vmem:[#allocation8 + $0xc0] sm:$0xff]
        %v643 = vld [vmem:[#allocation8 + $0xc8] sm:$0xff]
        %v644 = vld [vmem:[#allocation8 + $0xd0] sm:$0xff]
        %v645 = vld [vmem:[#allocation8 + $0xd8] sm:$0xff]
        %v646 = vld [vmem:[#allocation8 + $0xe0] sm:$0xff]
        %v647 = vld [vmem:[#allocation8 + $0xe8] sm:$0xff]
        %v648 = vld [vmem:[#allocation8 + $0xf0] sm:$0xff]
        %v649 = vld [vmem:[#allocation8 + $0xf8] sm:$0xff]
        %v650 = vld [vmem:[#allocation8 + $0x100] sm:$0xff]
        %v651 = vld [vmem:[#allocation8 + $0x108] sm:$0xff]
        %v652 = vld [vmem:[#allocation8 + $0x110] sm:$0xff]
        %v653 = vld [vmem:[#allocation8 + $0x118] sm:$0xff]
        %v654 = vld [vmem:[#allocation8 + $0x120] sm:$0xff]
        %v655 = vld [vmem:[#allocation8 + $0x128] sm:$0xff]
        %v656 = vld [vmem:[#allocation8 + $0x130] sm:$0xff]
        %v657 = vld [vmem:[#allocation8 + $0x138] sm:$0xff]
        %v658 = vld [vmem:[#allocation8 + $0x140] sm:$0xff]
        %v659 = vld [vmem:[#allocation8 + $0x148] sm:$0xff]
        %v660 = vld [vmem:[#allocation8 + $0x150] sm:$0xff]
        %v661 = vld [vmem:[#allocation8 + $0x158] sm:$0xff]
        %v662 = vld [vmem:[#allocation8 + $0x160] sm:$0xff]
        %v663 = vld [vmem:[#allocation8 + $0x168] sm:$0xff]
        %v664 = vld [vmem:[#allocation8 + $0x170] sm:$0xff]
        %v665 = vld [vmem:[#allocation8 + $0x178] sm:$0xff]
        %v666 = vld [vmem:[#allocation11] sm:$0x1]
        %v668 = vlaneseq
        %v669 = vshrl.u32 %v668, 7
        %v670 = vsub.s32 0, %v669
        %v671 = vrot.slane %v666, %v670
        %p673 = scmp.eq.s32.totalorder %s22, 0
        %s674 = scalar_select %p673, 0, 7
        %s675 = smul.u32 %s674, 8
        %s676 = sshra.s32 %s675, 3
        %s677 = sand.u32 %s675, 7
        %s678 = smul.u32 %s676, 3
        %s679 = smul.addr %s678, 8
        %s680 = scalar_lea.vmem [#allocation2], %s679
        %v681 = vld [vmem:[%s680] sm:$0xff]
        %v682 = vld [vmem:[%s680 + $0x8] sm:$0xff]
        %v683 = vld [vmem:[%s680 + $0x10] sm:$0xff]
        %684 = vmatprep.subr.mxu0 %v619
        %685 = vmatpush1.msra.mxu0 %v618
        %686 = vmatprep.subr.mxu0 %v622
        %687 = vmatpush1.msra.mxu0 %v621
        %688 = vmatprep.subr.mxu0 %v625
        %689 = vmatpush1.msra.mxu0 %v624
        %690 = vmatprep.subr.mxu0 %v628
        %691 = vmatpush1.msra.mxu0 %v627
        %692 = vmatprep.subr.mxu0 %v631
        %693 = vmatpush1.msra.mxu0 %v630
        %694 = vmatprep.subr.mxu0 %v634
        %695 = vmatpush1.msra.mxu0 %v633
        %696 = vmatprep.subr.mxu0 %v637
        %697 = vmatpush1.msra.mxu0 %v636
        %698 = vmatprep.subr.mxu0 %v640
        %699 = vmatpush1.msra.mxu0 %v639
        %700 = vmatprep.subr.mxu0 %v643
        %701 = vmatpush1.msra.mxu0 %v642
        %702 = vmatprep.subr.mxu0 %v646
        %703 = vmatpush1.msra.mxu0 %v645
        %704 = vmatprep.subr.mxu0 %v649
        %705 = vmatpush1.msra.mxu0 %v648
        %706 = vmatprep.subr.mxu0 %v652
        %707 = vmatpush1.msra.mxu0 %v651
        %708 = vmatprep.subr.mxu0 %v655
        %709 = vmatpush1.msra.mxu0 %v654
        %710 = vmatprep.subr.mxu0 %v658
        %711 = vmatpush1.msra.mxu0 %v657
        %712 = vmatprep.subr.mxu0 %v661
        %713 = vmatpush1.msra.mxu0 %v660
        %714 = vmatprep.subr.mxu0 %v664
        %715 = vmatpush1.msra.mxu0 %v663
        %716 = vmatprep.subr.mxu0 0.0
        %717 = vmatpush1.msra.mxu0 0.0
        %718 = vmatprep.subr.mxu0 0.0
        %719 = vmatpush1.msra.mxu0 0.0
        %720 = vmatprep.subr.mxu0 0.0
        %721 = vmatpush1.msra.mxu0 0.0
        %722 = vmatprep.subr.mxu0 0.0
        %723 = vmatpush1.msra.mxu0 0.0
        %724 = vmatprep.subr.mxu0 0.0
        %725 = vmatpush1.msra.mxu0 0.0
        %726 = vmatprep.subr.mxu0 0.0
        %727 = vmatpush1.msra.mxu0 0.0
        %728 = vmatprep.subr.mxu0 0.0
        %729 = vmatpush1.msra.mxu0 0.0
        %730 = vmatprep.subr.mxu0 0.0
        %731 = vmatpush1.msra.mxu0 0.0
        %732 = vmatprep.subr.mxu0 0.0
        %733 = vmatpush1.msra.mxu0 0.0
        %734 = vmatprep.subr.mxu0 0.0
        %735 = vmatpush1.msra.mxu0 0.0
        %736 = vmatprep.subr.mxu0 0.0
        %737 = vmatpush1.msra.mxu0 0.0
        %738 = vmatprep.subr.mxu0 0.0
        %739 = vmatpush1.msra.mxu0 0.0
        %740 = vmatprep.subr.mxu0 0.0
        %741 = vmatpush1.msra.mxu0 0.0
        %742 = vmatprep.subr.mxu0 0.0
        %743 = vmatpush1.msra.mxu0 0.0
        %744 = vmatprep.subr.mxu0 0.0
        %745 = vmatpush1.msra.mxu0 0.0
        %746 = vmatprep.subr.mxu0 0.0
        %747 = vmatpush1.msra.mxu0 0.0
        %748 = vmatprep.mubr.f32.mxu0 0.0
        %749 = vmatmul.mubr.f32.gmra.mrb[0].mxu0 0.0
        %v750 = vpop.f32.mrb[0].mxu0
        %v751 = vadd.f32 0.0, %v750
        %v752 = vpop.f32.mrb[0].mxu0
        %v753 = vadd.f32 0.0, %v752
        %754 = vdwg.mxu0
        %755 = vmatprep.subr.mxu0 0.0
        %756 = vmatpush1.msra.mxu0 %v620
        %757 = vmatprep.subr.mxu0 0.0
        %758 = vmatpush1.msra.mxu0 %v623
        %759 = vmatprep.subr.mxu0 0.0
        %760 = vmatpush1.msra.mxu0 %v626
        %761 = vmatprep.subr.mxu0 0.0
        %762 = vmatpush1.msra.mxu0 %v629
        %763 = vmatprep.subr.mxu0 0.0
        %764 = vmatpush1.msra.mxu0 %v632
        %765 = vmatprep.subr.mxu0 0.0
        %766 = vmatpush1.msra.mxu0 %v635
        %767 = vmatprep.subr.mxu0 0.0
        %768 = vmatpush1.msra.mxu0 %v638
        %769 = vmatprep.subr.mxu0 0.0
        %770 = vmatpush1.msra.mxu0 %v641
        %771 = vmatprep.subr.mxu0 0.0
        %772 = vmatpush1.msra.mxu0 %v644
        %773 = vmatprep.subr.mxu0 0.0
        %774 = vmatpush1.msra.mxu0 %v647
        %775 = vmatprep.subr.mxu0 0.0
        %776 = vmatpush1.msra.mxu0 %v650
        %777 = vmatprep.subr.mxu0 0.0
        %778 = vmatpush1.msra.mxu0 %v653
        %779 = vmatprep.subr.mxu0 0.0
        %780 = vmatpush1.msra.mxu0 %v656
        %781 = vmatprep.subr.mxu0 0.0
        %782 = vmatpush1.msra.mxu0 %v659
        %783 = vmatprep.subr.mxu0 0.0
        %784 = vmatpush1.msra.mxu0 %v662
        %785 = vmatprep.subr.mxu0 0.0
        %786 = vmatpush1.msra.mxu0 %v665
        %787 = vmatprep.subr.mxu0 0.0
        %788 = vmatpush1.msra.mxu0 0.0
        %789 = vmatprep.subr.mxu0 0.0
        %790 = vmatpush1.msra.mxu0 0.0
        %791 = vmatprep.subr.mxu0 0.0
        %792 = vmatpush1.msra.mxu0 0.0
        %793 = vmatprep.subr.mxu0 0.0
        %794 = vmatpush1.msra.mxu0 0.0
        %795 = vmatprep.subr.mxu0 0.0
        %796 = vmatpush1.msra.mxu0 0.0
        %797 = vmatprep.subr.mxu0 0.0
        %798 = vmatpush1.msra.mxu0 0.0
        %799 = vmatprep.subr.mxu0 0.0
        %800 = vmatpush1.msra.mxu0 0.0
        %801 = vmatprep.subr.mxu0 0.0
        %802 = vmatpush1.msra.mxu0 0.0
        %803 = vmatprep.subr.mxu0 0.0
        %804 = vmatpush1.msra.mxu0 0.0
        %805 = vmatprep.subr.mxu0 0.0
        %806 = vmatpush1.msra.mxu0 0.0
        %807 = vmatprep.subr.mxu0 0.0
        %808 = vmatpush1.msra.mxu0 0.0
        %809 = vmatprep.subr.mxu0 0.0
        %810 = vmatpush1.msra.mxu0 0.0
        %811 = vmatprep.subr.mxu0 0.0
        %812 = vmatpush1.msra.mxu0 0.0
        %813 = vmatprep.subr.mxu0 0.0
        %814 = vmatpush1.msra.mxu0 0.0
        %815 = vmatprep.subr.mxu0 0.0
        %816 = vmatpush1.msra.mxu0 0.0
        %817 = vmatprep.subr.mxu0 0.0
        %818 = vmatpush1.msra.mxu0 0.0
        %819 = vmatprep.mubr.f32.mxu0 0.0
        %820 = vmatmul.mubr.f32.gmra.mrb[0].mxu0 0.0
        %v821 = vpop.f32.mrb[0].mxu0
        %v822 = vadd.f32 0.0, %v821
        %v823 = vpop.f32.mrb[0].mxu0
        %824 = vdwg.mxu0
        %v825 = vadd.f32 %v681, %v751
        %v826 = vxor.u32 %v825, 2147483648
        %v827 = vmul.f32 %v826, 1.442695
        %v828 = vpow.pop %v827
        %v829 = vadd.f32 %v828, 1.0
        %v830 = vrcp.pop %v829
        %v831 = vmul.f32 1.0, %v830
        %v832 = vadd.f32 %v682, %v753
        %v833 = vxor.u32 %v832, 2147483648
        %v834 = vmul.f32 %v833, 1.442695
        %v835 = vpow.pop %v834
        %v836 = vadd.f32 %v835, 1.0
        %v837 = vrcp.pop %v836
        %v838 = vmul.f32 1.0, %v837
        %v839 = vadd.f32 %v822, %v671
        %v840 = vmul.f32 %v831, %v839
        %v841 = vadd.f32 %v683, %v840
        %v842 = vtanh.pop %v841
        %v843 = vsub.f32 0.0, %v842
        %v844 = vmul.f32 %v838, %v843
        %v845 = vadd.f32 %v842, %v844
        %s846 = scalar_lea.vmem %s302, %s675 [#allocation12]
        %847 = vst [vmem:[%s846] sm:$0xff] %v845
        %s848 = scalar_select %p673, 1, 6
        %s849 = smul.u32 %s848, 8
        %s850 = sshra.s32 %s849, 3
        %s851 = sand.u32 %s849, 7
        %s852 = smul.u32 %s850, 3
        %s853 = smul.addr %s852, 8
        %s854 = scalar_lea.vmem [#allocation2], %s853
        %v855 = vld [vmem:[%s854] sm:$0xff]
        %v856 = vld [vmem:[%s854 + $0x8] sm:$0xff]
        %v857 = vld [vmem:[%s854 + $0x10] sm:$0xff]
        %858 = vmatprep.subr.mxu0 %v619
        %859 = vmatpush1.msra.mxu0 %v618
        %860 = vmatprep.subr.mxu0 %v622
        %861 = vmatpush1.msra.mxu0 %v621
        %862 = vmatprep.subr.mxu0 %v625
        %863 = vmatpush1.msra.mxu0 %v624
        %864 = vmatprep.subr.mxu0 %v628
        %865 = vmatpush1.msra.mxu0 %v627
        %866 = vmatprep.subr.mxu0 %v631
        %867 = vmatpush1.msra.mxu0 %v630
        %868 = vmatprep.subr.mxu0 %v634
        %869 = vmatpush1.msra.mxu0 %v633
        %870 = vmatprep.subr.mxu0 %v637
        %871 = vmatpush1.msra.mxu0 %v636
        %872 = vmatprep.subr.mxu0 %v640
        %873 = vmatpush1.msra.mxu0 %v639
        %874 = vmatprep.subr.mxu0 %v643
        %875 = vmatpush1.msra.mxu0 %v642
        %876 = vmatprep.subr.mxu0 %v646
        %877 = vmatpush1.msra.mxu0 %v645
        %878 = vmatprep.subr.mxu0 %v649
        %879 = vmatpush1.msra.mxu0 %v648
        %880 = vmatprep.subr.mxu0 %v652
        %881 = vmatpush1.msra.mxu0 %v651
        %882 = vmatprep.subr.mxu0 %v655
        %883 = vmatpush1.msra.mxu0 %v654
        %884 = vmatprep.subr.mxu0 %v658
        %885 = vmatpush1.msra.mxu0 %v657
        %886 = vmatprep.subr.mxu0 %v661
        %887 = vmatpush1.msra.mxu0 %v660
        %888 = vmatprep.subr.mxu0 %v664
        %889 = vmatpush1.msra.mxu0 %v663
        %890 = vmatprep.subr.mxu0 0.0
        %891 = vmatpush1.msra.mxu0 0.0
        %892 = vmatprep.subr.mxu0 0.0
        %893 = vmatpush1.msra.mxu0 0.0
        %894 = vmatprep.subr.mxu0 0.0
        %895 = vmatpush1.msra.mxu0 0.0
        %896 = vmatprep.subr.mxu0 0.0
        %897 = vmatpush1.msra.mxu0 0.0
        %898 = vmatprep.subr.mxu0 0.0
        %899 = vmatpush1.msra.mxu0 0.0
        %900 = vmatprep.subr.mxu0 0.0
        %901 = vmatpush1.msra.mxu0 0.0
        %902 = vmatprep.subr.mxu0 0.0
        %903 = vmatpush1.msra.mxu0 0.0
        %904 = vmatprep.subr.mxu0 0.0
        %905 = vmatpush1.msra.mxu0 0.0
        %906 = vmatprep.subr.mxu0 0.0
        %907 = vmatpush1.msra.mxu0 0.0
        %908 = vmatprep.subr.mxu0 0.0
        %909 = vmatpush1.msra.mxu0 0.0
        %910 = vmatprep.subr.mxu0 0.0
        %911 = vmatpush1.msra.mxu0 0.0
        %912 = vmatprep.subr.mxu0 0.0
        %913 = vmatpush1.msra.mxu0 0.0
        %914 = vmatprep.subr.mxu0 0.0
        %915 = vmatpush1.msra.mxu0 0.0
        %916 = vmatprep.subr.mxu0 0.0
        %917 = vmatpush1.msra.mxu0 0.0
        %918 = vmatprep.subr.mxu0 0.0
        %919 = vmatpush1.msra.mxu0 0.0
        %920 = vmatprep.subr.mxu0 0.0
        %921 = vmatpush1.msra.mxu0 0.0
        %922 = vmatprep.mubr.f32.mxu0 0.0
        %923 = vmatmul.mubr.f32.gmra.mrb[0].mxu0 %v845
        %v924 = vpop.f32.mrb[0].mxu0
        %v925 = vadd.f32 0.0, %v924
        %v926 = vpop.f32.mrb[0].mxu0
        %v927 = vadd.f32 0.0, %v926
        %928 = vdwg.mxu0
        %929 = vmatprep.subr.mxu0 0.0
        %930 = vmatpush1.msra.mxu0 %v620
        %931 = vmatprep.subr.mxu0 0.0
        %932 = vmatpush1.msra.mxu0 %v623
        %933 = vmatprep.subr.mxu0 0.0
        %934 = vmatpush1.msra.mxu0 %v626
        %935 = vmatprep.subr.mxu0 0.0
        %936 = vmatpush1.msra.mxu0 %v629
        %937 = vmatprep.subr.mxu0 0.0
        %938 = vmatpush1.msra.mxu0 %v632
        %939 = vmatprep.subr.mxu0 0.0
        %940 = vmatpush1.msra.mxu0 %v635
        %941 = vmatprep.subr.mxu0 0.0
        %942 = vmatpush1.msra.mxu0 %v638
        %943 = vmatprep.subr.mxu0 0.0
        %944 = vmatpush1.msra.mxu0 %v641
        %945 = vmatprep.subr.mxu0 0.0
        %946 = vmatpush1.msra.mxu0 %v644
        %947 = vmatprep.subr.mxu0 0.0
        %948 = vmatpush1.msra.mxu0 %v647
        %949 = vmatprep.subr.mxu0 0.0
        %950 = vmatpush1.msra.mxu0 %v650
        %951 = vmatprep.subr.mxu0 0.0
        %952 = vmatpush1.msra.mxu0 %v653
        %953 = vmatprep.subr.mxu0 0.0
        %954 = vmatpush1.msra.mxu0 %v656
        %955 = vmatprep.subr.mxu0 0.0
        %956 = vmatpush1.msra.mxu0 %v659
        %957 = vmatprep.subr.mxu0 0.0
        %958 = vmatpush1.msra.mxu0 %v662
        %959 = vmatprep.subr.mxu0 0.0
        %960 = vmatpush1.msra.mxu0 %v665
        %961 = vmatprep.subr.mxu0 0.0
        %962 = vmatpush1.msra.mxu0 0.0
        %963 = vmatprep.subr.mxu0 0.0
        %964 = vmatpush1.msra.mxu0 0.0
        %965 = vmatprep.subr.mxu0 0.0
        %966 = vmatpush1.msra.mxu0 0.0
        %967 = vmatprep.subr.mxu0 0.0
        %968 = vmatpush1.msra.mxu0 0.0
        %969 = vmatprep.subr.mxu0 0.0
        %970 = vmatpush1.msra.mxu0 0.0
        %971 = vmatprep.subr.mxu0 0.0
        %972 = vmatpush1.msra.mxu0 0.0
        %973 = vmatprep.subr.mxu0 0.0
        %974 = vmatpush1.msra.mxu0 0.0
        %975 = vmatprep.subr.mxu0 0.0
        %976 = vmatpush1.msra.mxu0 0.0
        %977 = vmatprep.subr.mxu0 0.0
        %978 = vmatpush1.msra.mxu0 0.0
        %979 = vmatprep.subr.mxu0 0.0
        %980 = vmatpush1.msra.mxu0 0.0
        %981 = vmatprep.subr.mxu0 0.0
        %982 = vmatpush1.msra.mxu0 0.0
        %983 = vmatprep.subr.mxu0 0.0
        %984 = vmatpush1.msra.mxu0 0.0
        %985 = vmatprep.subr.mxu0 0.0
        %986 = vmatpush1.msra.mxu0 0.0
        %987 = vmatprep.subr.mxu0 0.0
        %988 = vmatpush1.msra.mxu0 0.0
        %989 = vmatprep.subr.mxu0 0.0
        %990 = vmatpush1.msra.mxu0 0.0
        %991 = vmatprep.subr.mxu0 0.0
        %992 = vmatpush1.msra.mxu0 0.0
        %993 = vmatprep.mubr.f32.mxu0 0.0
        %994 = vmatmul.mubr.f32.gmra.mrb[0].mxu0 %v845
        %v995 = vpop.f32.mrb[0].mxu0
        %v996 = vadd.f32 0.0, %v995
        %v997 = vpop.f32.mrb[0].mxu0
        %998 = vdwg.mxu0
        %v999 = vadd.f32 %v855, %v925
        %v1000 = vxor.u32 %v999, 2147483648
        %v1001 = vmul.f32 %v1000, 1.442695
        %v1002 = vpow.pop %v1001
        %v1003 = vadd.f32 %v1002, 1.0
        %v1004 = vrcp.pop %v1003
        %v1005 = vmul.f32 1.0, %v1004
        %v1006 = vadd.f32 %v856, %v927
        %v1007 = vxor.u32 %v1006, 2147483648
        %v1008 = vmul.f32 %v1007, 1.442695
        %v1009 = vpow.pop %v1008
        %v1010 = vadd.f32 %v1009, 1.0
        %v1011 = vrcp.pop %v1010
        %v1012 = vmul.f32 1.0, %v1011
        %v1013 = vadd.f32 %v996, %v671
        %v1014 = vmul.f32 %v1005, %v1013
        %v1015 = vadd.f32 %v857, %v1014
        %v1016 = vtanh.pop %v1015
        %v1017 = vsub.f32 %v845, %v1016
        %v1018 = vmul.f32 %v1012, %v1017
        %v1019 = vadd.f32 %v1016, %v1018
        %s1020 = scalar_lea.vmem %s302, %s849 [#allocation12]
        %1021 = vst [vmem:[%s1020] sm:$0xff] %v1019
        %s1022 = scalar_select %p673, 2, 5
        %s1023 = smul.u32 %s1022, 8
        %s1024 = sshra.s32 %s1023, 3
        %s1025 = sand.u32 %s1023, 7
        %s1026 = smul.u32 %s1024, 3
        %s1027 = smul.addr %s1026, 8
        %s1028 = scalar_lea.vmem [#allocation2], %s1027
        %v1029 = vld [vmem:[%s1028] sm:$0xff]
        %v1030 = vld [vmem:[%s1028 + $0x8] sm:$0xff]
        %v1031 = vld [vmem:[%s1028 + $0x10] sm:$0xff]
        %1032 = vmatprep.subr.mxu0 %v619
        %1033 = vmatpush1.msra.mxu0 %v618
        %1034 = vmatprep.subr.mxu0 %v622
        %1035 = vmatpush1.msra.mxu0 %v621
        %1036 = vmatprep.subr.mxu0 %v625
        %1037 = vmatpush1.msra.mxu0 %v624
        %1038 = vmatprep.subr.mxu0 %v628
        %1039 = vmatpush1.msra.mxu0 %v627
        %1040 = vmatprep.subr.mxu0 %v631
        %1041 = vmatpush1.msra.mxu0 %v630
        %1042 = vmatprep.subr.mxu0 %v634
        %1043 = vmatpush1.msra.mxu0 %v633
        %1044 = vmatprep.subr.mxu0 %v637
        %1045 = vmatpush1.msra.mxu0 %v636
        %1046 = vmatprep.subr.mxu0 %v640
        %1047 = vmatpush1.msra.mxu0 %v639
        %1048 = vmatprep.subr.mxu0 %v643
        %1049 = vmatpush1.msra.mxu0 %v642
        %1050 = vmatprep.subr.mxu0 %v646
        %1051 = vmatpush1.msra.mxu0 %v645
        %1052 = vmatprep.subr.mxu0 %v649
        %1053 = vmatpush1.msra.mxu0 %v648
        %1054 = vmatprep.subr.mxu0 %v652
        %1055 = vmatpush1.msra.mxu0 %v651
        %1056 = vmatprep.subr.mxu0 %v655
        %1057 = vmatpush1.msra.mxu0 %v654
        %1058 = vmatprep.subr.mxu0 %v658
        %1059 = vmatpush1.msra.mxu0 %v657
        %1060 = vmatprep.subr.mxu0 %v661
        %1061 = vmatpush1.msra.mxu0 %v660
        %1062 = vmatprep.subr.mxu0 %v664
        %1063 = vmatpush1.msra.mxu0 %v663
        %1064 = vmatprep.subr.mxu0 0.0
        %1065 = vmatpush1.msra.mxu0 0.0
        %1066 = vmatprep.subr.mxu0 0.0
        %1067 = vmatpush1.msra.mxu0 0.0
        %1068 = vmatprep.subr.mxu0 0.0
        %1069 = vmatpush1.msra.mxu0 0.0
        %1070 = vmatprep.subr.mxu0 0.0
        %1071 = vmatpush1.msra.mxu0 0.0
        %1072 = vmatprep.subr.mxu0 0.0
        %1073 = vmatpush1.msra.mxu0 0.0
        %1074 = vmatprep.subr.mxu0 0.0
        %1075 = vmatpush1.msra.mxu0 0.0
        %1076 = vmatprep.subr.mxu0 0.0
        %1077 = vmatpush1.msra.mxu0 0.0
        %1078 = vmatprep.subr.mxu0 0.0
        %1079 = vmatpush1.msra.mxu0 0.0
        %1080 = vmatprep.subr.mxu0 0.0
        %1081 = vmatpush1.msra.mxu0 0.0
        %1082 = vmatprep.subr.mxu0 0.0
        %1083 = vmatpush1.msra.mxu0 0.0
        %1084 = vmatprep.subr.mxu0 0.0
        %1085 = vmatpush1.msra.mxu0 0.0
        %1086 = vmatprep.subr.mxu0 0.0
        %1087 = vmatpush1.msra.mxu0 0.0
        %1088 = vmatprep.subr.mxu0 0.0
        %1089 = vmatpush1.msra.mxu0 0.0
        %1090 = vmatprep.subr.mxu0 0.0
        %1091 = vmatpush1.msra.mxu0 0.0
        %1092 = vmatprep.subr.mxu0 0.0
        %1093 = vmatpush1.msra.mxu0 0.0
        %1094 = vmatprep.subr.mxu0 0.0
        %1095 = vmatpush1.msra.mxu0 0.0
        %1096 = vmatprep.mubr.f32.mxu0 0.0
        %1097 = vmatmul.mubr.f32.gmra.mrb[0].mxu0 %v1019
        %v1098 = vpop.f32.mrb[0].mxu0
        %v1099 = vadd.f32 0.0, %v1098
        %v1100 = vpop.f32.mrb[0].mxu0
        %v1101 = vadd.f32 0.0, %v1100
        %1102 = vdwg.mxu0
        %1103 = vmatprep.subr.mxu0 0.0
        %1104 = vmatpush1.msra.mxu0 %v620
        %1105 = vmatprep.subr.mxu0 0.0
        %1106 = vmatpush1.msra.mxu0 %v623
        %1107 = vmatprep.subr.mxu0 0.0
        %1108 = vmatpush1.msra.mxu0 %v626
        %1109 = vmatprep.subr.mxu0 0.0
        %1110 = vmatpush1.msra.mxu0 %v629
        %1111 = vmatprep.subr.mxu0 0.0
        %1112 = vmatpush1.msra.mxu0 %v632
        %1113 = vmatprep.subr.mxu0 0.0
        %1114 = vmatpush1.msra.mxu0 %v635
        %1115 = vmatprep.subr.mxu0 0.0
        %1116 = vmatpush1.msra.mxu0 %v638
        %1117 = vmatprep.subr.mxu0 0.0
        %1118 = vmatpush1.msra.mxu0 %v641
        %1119 = vmatprep.subr.mxu0 0.0
        %1120 = vmatpush1.msra.mxu0 %v644
        %1121 = vmatprep.subr.mxu0 0.0
        %1122 = vmatpush1.msra.mxu0 %v647
        %1123 = vmatprep.subr.mxu0 0.0
        %1124 = vmatpush1.msra.mxu0 %v650
        %1125 = vmatprep.subr.mxu0 0.0
        %1126 = vmatpush1.msra.mxu0 %v653
        %1127 = vmatprep.subr.mxu0 0.0
        %1128 = vmatpush1.msra.mxu0 %v656
        %1129 = vmatprep.subr.mxu0 0.0
        %1130 = vmatpush1.msra.mxu0 %v659
        %1131 = vmatprep.subr.mxu0 0.0
        %1132 = vmatpush1.msra.mxu0 %v662
        %1133 = vmatprep.subr.mxu0 0.0
        %1134 = vmatpush1.msra.mxu0 %v665
        %1135 = vmatprep.subr.mxu0 0.0
        %1136 = vmatpush1.msra.mxu0 0.0
        %1137 = vmatprep.subr.mxu0 0.0
        %1138 = vmatpush1.msra.mxu0 0.0
        %1139 = vmatprep.subr.mxu0 0.0
        %1140 = vmatpush1.msra.mxu0 0.0
        %1141 = vmatprep.subr.mxu0 0.0
        %1142 = vmatpush1.msra.mxu0 0.0
        %1143 = vmatprep.subr.mxu0 0.0
        %1144 = vmatpush1.msra.mxu0 0.0
        %1145 = vmatprep.subr.mxu0 0.0
        %1146 = vmatpush1.msra.mxu0 0.0
        %1147 = vmatprep.subr.mxu0 0.0
        %1148 = vmatpush1.msra.mxu0 0.0
        %1149 = vmatprep.subr.mxu0 0.0
        %1150 = vmatpush1.msra.mxu0 0.0
        %1151 = vmatprep.subr.mxu0 0.0
        %1152 = vmatpush1.msra.mxu0 0.0
        %1153 = vmatprep.subr.mxu0 0.0
        %1154 = vmatpush1.msra.mxu0 0.0
        %1155 = vmatprep.subr.mxu0 0.0
        %1156 = vmatpush1.msra.mxu0 0.0
        %1157 = vmatprep.subr.mxu0 0.0
        %1158 = vmatpush1.msra.mxu0 0.0
        %1159 = vmatprep.subr.mxu0 0.0
        %1160 = vmatpush1.msra.mxu0 0.0
        %1161 = vmatprep.subr.mxu0 0.0
        %1162 = vmatpush1.msra.mxu0 0.0
        %1163 = vmatprep.subr.mxu0 0.0
        %1164 = vmatpush1.msra.mxu0 0.0
        %1165 = vmatprep.subr.mxu0 0.0
        %1166 = vmatpush1.msra.mxu0 0.0
        %1167 = vmatprep.mubr.f32.mxu0 0.0
        %1168 = vmatmul.mubr.f32.gmra.mrb[0].mxu0 %v1019
        %v1169 = vpop.f32.mrb[0].mxu0
        %v1170 = vadd.f32 0.0, %v1169
        %v1171 = vpop.f32.mrb[0].mxu0
        %1172 = vdwg.mxu0
        %v1173 = vadd.f32 %v1029, %v1099
        %v1174 = vxor.u32 %v1173, 2147483648
        %v1175 = vmul.f32 %v1174, 1.442695
        %v1176 = vpow.pop %v1175
        %v1177 = vadd.f32 %v1176, 1.0
        %v1178 = vrcp.pop %v1177
        %v1179 = vmul.f32 1.0, %v1178
        %v1180 = vadd.f32 %v1030, %v1101
        %v1181 = vxor.u32 %v1180, 2147483648
        %v1182 = vmul.f32 %v1181, 1.442695
        %v1183 = vpow.pop %v1182
        %v1184 = vadd.f32 %v1183, 1.0
        %v1185 = vrcp.pop %v1184
        %v1186 = vmul.f32 1.0, %v1185
        %v1187 = vadd.f32 %v1170, %v671
        %v1188 = vmul.f32 %v1179, %v1187
        %v1189 = vadd.f32 %v1031, %v1188
        %v1190 = vtanh.pop %v1189
        %v1191 = vsub.f32 %v1019, %v1190
        %v1192 = vmul.f32 %v1186, %v1191
        %v1193 = vadd.f32 %v1190, %v1192
        %s1194 = scalar_lea.vmem %s302, %s1023 [#allocation12]
        %1195 = vst [vmem:[%s1194] sm:$0xff] %v1193
        %s1196 = scalar_select %p673, 3, 4
        %s1197 = smul.u32 %s1196, 8
        %s1198 = sshra.s32 %s1197, 3
        %s1199 = sand.u32 %s1197, 7
        %s1200 = smul.u32 %s1198, 3
        %s1201 = smul.addr %s1200, 8
        %s1202 = scalar_lea.vmem [#allocation2], %s1201
        %v1203 = vld [vmem:[%s1202] sm:$0xff]
        %v1204 = vld [vmem:[%s1202 + $0x8] sm:$0xff]
        %v1205 = vld [vmem:[%s1202 + $0x10] sm:$0xff]
        %1206 = vmatprep.subr.mxu0 %v619
        %1207 = vmatpush1.msra.mxu0 %v618
        %1208 = vmatprep.subr.mxu0 %v622
        %1209 = vmatpush1.msra.mxu0 %v621
        %1210 = vmatprep.subr.mxu0 %v625
        %1211 = vmatpush1.msra.mxu0 %v624
        %1212 = vmatprep.subr.mxu0 %v628
        %1213 = vmatpush1.msra.mxu0 %v627
        %1214 = vmatprep.subr.mxu0 %v631
        %1215 = vmatpush1.msra.mxu0 %v630
        %1216 = vmatprep.subr.mxu0 %v634
        %1217 = vmatpush1.msra.mxu0 %v633
        %1218 = vmatprep.subr.mxu0 %v637
        %1219 = vmatpush1.msra.mxu0 %v636
        %1220 = vmatprep.subr.mxu0 %v640
        %1221 = vmatpush1.msra.mxu0 %v639
        %1222 = vmatprep.subr.mxu0 %v643
        %1223 = vmatpush1.msra.mxu0 %v642
        %1224 = vmatprep.subr.mxu0 %v646
        %1225 = vmatpush1.msra.mxu0 %v645
        %1226 = vmatprep.subr.mxu0 %v649
        %1227 = vmatpush1.msra.mxu0 %v648
        %1228 = vmatprep.subr.mxu0 %v652
        %1229 = vmatpush1.msra.mxu0 %v651
        %1230 = vmatprep.subr.mxu0 %v655
        %1231 = vmatpush1.msra.mxu0 %v654
        %1232 = vmatprep.subr.mxu0 %v658
        %1233 = vmatpush1.msra.mxu0 %v657
        %1234 = vmatprep.subr.mxu0 %v661
        %1235 = vmatpush1.msra.mxu0 %v660
        %1236 = vmatprep.subr.mxu0 %v664
        %1237 = vmatpush1.msra.mxu0 %v663
        %1238 = vmatprep.subr.mxu0 0.0
        %1239 = vmatpush1.msra.mxu0 0.0
        %1240 = vmatprep.subr.mxu0 0.0
        %1241 = vmatpush1.msra.mxu0 0.0
        %1242 = vmatprep.subr.mxu0 0.0
        %1243 = vmatpush1.msra.mxu0 0.0
        %1244 = vmatprep.subr.mxu0 0.0
        %1245 = vmatpush1.msra.mxu0 0.0
        %1246 = vmatprep.subr.mxu0 0.0
        %1247 = vmatpush1.msra.mxu0 0.0
        %1248 = vmatprep.subr.mxu0 0.0
        %1249 = vmatpush1.msra.mxu0 0.0
        %1250 = vmatprep.subr.mxu0 0.0
        %1251 = vmatpush1.msra.mxu0 0.0
        %1252 = vmatprep.subr.mxu0 0.0
        %1253 = vmatpush1.msra.mxu0 0.0
        %1254 = vmatprep.subr.mxu0 0.0
        %1255 = vmatpush1.msra.mxu0 0.0
        %1256 = vmatprep.subr.mxu0 0.0
        %1257 = vmatpush1.msra.mxu0 0.0
        %1258 = vmatprep.subr.mxu0 0.0
        %1259 = vmatpush1.msra.mxu0 0.0
        %1260 = vmatprep.subr.mxu0 0.0
        %1261 = vmatpush1.msra.mxu0 0.0
        %1262 = vmatprep.subr.mxu0 0.0
        %1263 = vmatpush1.msra.mxu0 0.0
        %1264 = vmatprep.subr.mxu0 0.0
        %1265 = vmatpush1.msra.mxu0 0.0
        %1266 = vmatprep.subr.mxu0 0.0
        %1267 = vmatpush1.msra.mxu0 0.0
        %1268 = vmatprep.subr.mxu0 0.0
        %1269 = vmatpush1.msra.mxu0 0.0
        %1270 = vmatprep.mubr.f32.mxu0 0.0
        %1271 = vmatmul.mubr.f32.gmra.mrb[0].mxu0 %v1193
        %v1272 = vpop.f32.mrb[0].mxu0
        %v1273 = vadd.f32 0.0, %v1272
        %v1274 = vpop.f32.mrb[0].mxu0
        %v1275 = vadd.f32 0.0, %v1274
        %1276 = vdwg.mxu0
        %1277 = vmatprep.subr.mxu0 0.0
        %1278 = vmatpush1.msra.mxu0 %v620
        %1279 = vmatprep.subr.mxu0 0.0
        %1280 = vmatpush1.msra.mxu0 %v623
        %1281 = vmatprep.subr.mxu0 0.0
        %1282 = vmatpush1.msra.mxu0 %v626
        %1283 = vmatprep.subr.mxu0 0.0
        %1284 = vmatpush1.msra.mxu0 %v629
        %1285 = vmatprep.subr.mxu0 0.0
        %1286 = vmatpush1.msra.mxu0 %v632
        %1287 = vmatprep.subr.mxu0 0.0
        %1288 = vmatpush1.msra.mxu0 %v635
        %1289 = vmatprep.subr.mxu0 0.0
        %1290 = vmatpush1.msra.mxu0 %v638
        %1291 = vmatprep.subr.mxu0 0.0
        %1292 = vmatpush1.msra.mxu0 %v641
        %1293 = vmatprep.subr.mxu0 0.0
        %1294 = vmatpush1.msra.mxu0 %v644
        %1295 = vmatprep.subr.mxu0 0.0
        %1296 = vmatpush1.msra.mxu0 %v647
        %1297 = vmatprep.subr.mxu0 0.0
        %1298 = vmatpush1.msra.mxu0 %v650
        %1299 = vmatprep.subr.mxu0 0.0
        %1300 = vmatpush1.msra.mxu0 %v653
        %1301 = vmatprep.subr.mxu0 0.0
        %1302 = vmatpush1.msra.mxu0 %v656
        %1303 = vmatprep.subr.mxu0 0.0
        %1304 = vmatpush1.msra.mxu0 %v659
        %1305 = vmatprep.subr.mxu0 0.0
        %1306 = vmatpush1.msra.mxu0 %v662
        %1307 = vmatprep.subr.mxu0 0.0
        %1308 = vmatpush1.msra.mxu0 %v665
        %1309 = vmatprep.subr.mxu0 0.0
        %1310 = vmatpush1.msra.mxu0 0.0
        %1311 = vmatprep.subr.mxu0 0.0
        %1312 = vmatpush1.msra.mxu0 0.0
        %1313 = vmatprep.subr.mxu0 0.0
        %1314 = vmatpush1.msra.mxu0 0.0
        %1315 = vmatprep.subr.mxu0 0.0
        %1316 = vmatpush1.msra.mxu0 0.0
        %1317 = vmatprep.subr.mxu0 0.0
        %1318 = vmatpush1.msra.mxu0 0.0
        %1319 = vmatprep.subr.mxu0 0.0
        %1320 = vmatpush1.msra.mxu0 0.0
        %1321 = vmatprep.subr.mxu0 0.0
        %1322 = vmatpush1.msra.mxu0 0.0
        %1323 = vmatprep.subr.mxu0 0.0
        %1324 = vmatpush1.msra.mxu0 0.0
        %1325 = vmatprep.subr.mxu0 0.0
        %1326 = vmatpush1.msra.mxu0 0.0
        %1327 = vmatprep.subr.mxu0 0.0
        %1328 = vmatpush1.msra.mxu0 0.0
        %1329 = vmatprep.subr.mxu0 0.0
        %1330 = vmatpush1.msra.mxu0 0.0
        %1331 = vmatprep.subr.mxu0 0.0
        %1332 = vmatpush1.msra.mxu0 0.0
        %1333 = vmatprep.subr.mxu0 0.0
        %1334 = vmatpush1.msra.mxu0 0.0
        %1335 = vmatprep.subr.mxu0 0.0
        %1336 = vmatpush1.msra.mxu0 0.0
        %1337 = vmatprep.subr.mxu0 0.0
        %1338 = vmatpush1.msra.mxu0 0.0
        %1339 = vmatprep.subr.mxu0 0.0
        %1340 = vmatpush1.msra.mxu0 0.0
        %1341 = vmatprep.mubr.f32.mxu0 0.0
        %1342 = vmatmul.mubr.f32.gmra.mrb[0].mxu0 %v1193
        %v1343 = vpop.f32.mrb[0].mxu0
        %v1344 = vadd.f32 0.0, %v1343
        %v1345 = vpop.f32.mrb[0].mxu0
        %1346 = vdwg.mxu0
        %v1347 = vadd.f32 %v1203, %v1273
        %v1348 = vxor.u32 %v1347, 2147483648
        %v1349 = vmul.f32 %v1348, 1.442695
        %v1350 = vpow.pop %v1349
        %v1351 = vadd.f32 %v1350, 1.0
        %v1352 = vrcp.pop %v1351
        %v1353 = vmul.f32 1.0, %v1352
        %v1354 = vadd.f32 %v1204, %v1275
        %v1355 = vxor.u32 %v1354, 2147483648
        %v1356 = vmul.f32 %v1355, 1.442695
        %v1357 = vpow.pop %v1356
        %v1358 = vadd.f32 %v1357, 1.0
        %v1359 = vrcp.pop %v1358
        %v1360 = vmul.f32 1.0, %v1359
        %v1361 = vadd.f32 %v1344, %v671
        %v1362 = vmul.f32 %v1353, %v1361
        %v1363 = vadd.f32 %v1205, %v1362
        %v1364 = vtanh.pop %v1363
        %v1365 = vsub.f32 %v1193, %v1364
        %v1366 = vmul.f32 %v1360, %v1365
        %v1367 = vadd.f32 %v1364, %v1366
        %s1368 = scalar_lea.vmem %s302, %s1197 [#allocation12]
        %1369 = vst [vmem:[%s1368] sm:$0xff] %v1367
        %s1370 = scalar_select %p673, 4, 3
        %s1371 = smul.u32 %s1370, 8
        %s1372 = sshra.s32 %s1371, 3
        %s1373 = sand.u32 %s1371, 7
        %s1374 = smul.u32 %s1372, 3
        %s1375 = smul.addr %s1374, 8
        %s1376 = scalar_lea.vmem [#allocation2], %s1375
        %v1377 = vld [vmem:[%s1376] sm:$0xff]
        %v1378 = vld [vmem:[%s1376 + $0x8] sm:$0xff]
        %v1379 = vld [vmem:[%s1376 + $0x10] sm:$0xff]
        %1380 = vmatprep.subr.mxu0 %v619
        %1381 = vmatpush1.msra.mxu0 %v618
        %1382 = vmatprep.subr.mxu0 %v622
        %1383 = vmatpush1.msra.mxu0 %v621
        %1384 = vmatprep.subr.mxu0 %v625
        %1385 = vmatpush1.msra.mxu0 %v624
        %1386 = vmatprep.subr.mxu0 %v628
        %1387 = vmatpush1.msra.mxu0 %v627
        %1388 = vmatprep.subr.mxu0 %v631
        %1389 = vmatpush1.msra.mxu0 %v630
        %1390 = vmatprep.subr.mxu0 %v634
        %1391 = vmatpush1.msra.mxu0 %v633
        %1392 = vmatprep.subr.mxu0 %v637
        %1393 = vmatpush1.msra.mxu0 %v636
        %1394 = vmatprep.subr.mxu0 %v640
        %1395 = vmatpush1.msra.mxu0 %v639
        %1396 = vmatprep.subr.mxu0 %v643
        %1397 = vmatpush1.msra.mxu0 %v642
        %1398 = vmatprep.subr.mxu0 %v646
        %1399 = vmatpush1.msra.mxu0 %v645
        %1400 = vmatprep.subr.mxu0 %v649
        %1401 = vmatpush1.msra.mxu0 %v648
        %1402 = vmatprep.subr.mxu0 %v652
        %1403 = vmatpush1.msra.mxu0 %v651
        %1404 = vmatprep.subr.mxu0 %v655
        %1405 = vmatpush1.msra.mxu0 %v654
        %1406 = vmatprep.subr.mxu0 %v658
        %1407 = vmatpush1.msra.mxu0 %v657
        %1408 = vmatprep.subr.mxu0 %v661
        %1409 = vmatpush1.msra.mxu0 %v660
        %1410 = vmatprep.subr.mxu0 %v664
        %1411 = vmatpush1.msra.mxu0 %v663
        %1412 = vmatprep.subr.mxu0 0.0
        %1413 = vmatpush1.msra.mxu0 0.0
        %1414 = vmatprep.subr.mxu0 0.0
        %1415 = vmatpush1.msra.mxu0 0.0
        %1416 = vmatprep.subr.mxu0 0.0
        %1417 = vmatpush1.msra.mxu0 0.0
        %1418 = vmatprep.subr.mxu0 0.0
        %1419 = vmatpush1.msra.mxu0 0.0
        %1420 = vmatprep.subr.mxu0 0.0
        %1421 = vmatpush1.msra.mxu0 0.0
        %1422 = vmatprep.subr.mxu0 0.0
        %1423 = vmatpush1.msra.mxu0 0.0
        %1424 = vmatprep.subr.mxu0 0.0
        %1425 = vmatpush1.msra.mxu0 0.0
        %1426 = vmatprep.subr.mxu0 0.0
        %1427 = vmatpush1.msra.mxu0 0.0
        %1428 = vmatprep.subr.mxu0 0.0
        %1429 = vmatpush1.msra.mxu0 0.0
        %1430 = vmatprep.subr.mxu0 0.0
        %1431 = vmatpush1.msra.mxu0 0.0
        %1432 = vmatprep.subr.mxu0 0.0
        %1433 = vmatpush1.msra.mxu0 0.0
        %1434 = vmatprep.subr.mxu0 0.0
        %1435 = vmatpush1.msra.mxu0 0.0
        %1436 = vmatprep.subr.mxu0 0.0
        %1437 = vmatpush1.msra.mxu0 0.0
        %1438 = vmatprep.subr.mxu0 0.0
        %1439 = vmatpush1.msra.mxu0 0.0
        %1440 = vmatprep.subr.mxu0 0.0
        %1441 = vmatpush1.msra.mxu0 0.0
        %1442 = vmatprep.subr.mxu0 0.0
        %1443 = vmatpush1.msra.mxu0 0.0
        %1444 = vmatprep.mubr.f32.mxu0 0.0
        %1445 = vmatmul.mubr.f32.gmra.mrb[0].mxu0 %v1367
        %v1446 = vpop.f32.mrb[0].mxu0
        %v1447 = vadd.f32 0.0, %v1446
        %v1448 = vpop.f32.mrb[0].mxu0
        %v1449 = vadd.f32 0.0, %v1448
        %1450 = vdwg.mxu0
        %1451 = vmatprep.subr.mxu0 0.0
        %1452 = vmatpush1.msra.mxu0 %v620
        %1453 = vmatprep.subr.mxu0 0.0
        %1454 = vmatpush1.msra.mxu0 %v623
        %1455 = vmatprep.subr.mxu0 0.0
        %1456 = vmatpush1.msra.mxu0 %v626
        %1457 = vmatprep.subr.mxu0 0.0
        %1458 = vmatpush1.msra.mxu0 %v629
        %1459 = vmatprep.subr.mxu0 0.0
        %1460 = vmatpush1.msra.mxu0 %v632
        %1461 = vmatprep.subr.mxu0 0.0
        %1462 = vmatpush1.msra.mxu0 %v635
        %1463 = vmatprep.subr.mxu0 0.0
        %1464 = vmatpush1.msra.mxu0 %v638
        %1465 = vmatprep.subr.mxu0 0.0
        %1466 = vmatpush1.msra.mxu0 %v641
        %1467 = vmatprep.subr.mxu0 0.0
        %1468 = vmatpush1.msra.mxu0 %v644
        %1469 = vmatprep.subr.mxu0 0.0
        %1470 = vmatpush1.msra.mxu0 %v647
        %1471 = vmatprep.subr.mxu0 0.0
        %1472 = vmatpush1.msra.mxu0 %v650
        %1473 = vmatprep.subr.mxu0 0.0
        %1474 = vmatpush1.msra.mxu0 %v653
        %1475 = vmatprep.subr.mxu0 0.0
        %1476 = vmatpush1.msra.mxu0 %v656
        %1477 = vmatprep.subr.mxu0 0.0
        %1478 = vmatpush1.msra.mxu0 %v659
        %1479 = vmatprep.subr.mxu0 0.0
        %1480 = vmatpush1.msra.mxu0 %v662
        %1481 = vmatprep.subr.mxu0 0.0
        %1482 = vmatpush1.msra.mxu0 %v665
        %1483 = vmatprep.subr.mxu0 0.0
        %1484 = vmatpush1.msra.mxu0 0.0
        %1485 = vmatprep.subr.mxu0 0.0
        %1486 = vmatpush1.msra.mxu0 0.0
        %1487 = vmatprep.subr.mxu0 0.0
        %1488 = vmatpush1.msra.mxu0 0.0
        %1489 = vmatprep.subr.mxu0 0.0
        %1490 = vmatpush1.msra.mxu0 0.0
        %1491 = vmatprep.subr.mxu0 0.0
        %1492 = vmatpush1.msra.mxu0 0.0
        %1493 = vmatprep.subr.mxu0 0.0
        %1494 = vmatpush1.msra.mxu0 0.0
        %1495 = vmatprep.subr.mxu0 0.0
        %1496 = vmatpush1.msra.mxu0 0.0
        %1497 = vmatprep.subr.mxu0 0.0
        %1498 = vmatpush1.msra.mxu0 0.0
        %1499 = vmatprep.subr.mxu0 0.0
        %1500 = vmatpush1.msra.mxu0 0.0
        %1501 = vmatprep.subr.mxu0 0.0
        %1502 = vmatpush1.msra.mxu0 0.0
        %1503 = vmatprep.subr.mxu0 0.0
        %1504 = vmatpush1.msra.mxu0 0.0
        %1505 = vmatprep.subr.mxu0 0.0
        %1506 = vmatpush1.msra.mxu0 0.0
        %1507 = vmatprep.subr.mxu0 0.0
        %1508 = vmatpush1.msra.mxu0 0.0
        %1509 = vmatprep.subr.mxu0 0.0
        %1510 = vmatpush1.msra.mxu0 0.0
        %1511 = vmatprep.subr.mxu0 0.0
        %1512 = vmatpush1.msra.mxu0 0.0
        %1513 = vmatprep.subr.mxu0 0.0
        %1514 = vmatpush1.msra.mxu0 0.0
        %1515 = vmatprep.mubr.f32.mxu0 0.0
        %1516 = vmatmul.mubr.f32.gmra.mrb[0].mxu0 %v1367
        %v1517 = vpop.f32.mrb[0].mxu0
        %v1518 = vadd.f32 0.0, %v1517
        %v1519 = vpop.f32.mrb[0].mxu0
        %1520 = vdwg.mxu0
        %v1521 = vadd.f32 %v1377, %v1447
        %v1522 = vxor.u32 %v1521, 2147483648
        %v1523 = vmul.f32 %v1522, 1.442695
        %v1524 = vpow.pop %v1523
        %v1525 = vadd.f32 %v1524, 1.0
        %v1526 = vrcp.pop %v1525
        %v1527 = vmul.f32 1.0, %v1526
        %v1528 = vadd.f32 %v1378, %v1449
        %v1529 = vxor.u32 %v1528, 2147483648
        %v1530 = vmul.f32 %v1529, 1.442695
        %v1531 = vpow.pop %v1530
        %v1532 = vadd.f32 %v1531, 1.0
        %v1533 = vrcp.pop %v1532
        %v1534 = vmul.f32 1.0, %v1533
        %v1535 = vadd.f32 %v1518, %v671
        %v1536 = vmul.f32 %v1527, %v1535
        %v1537 = vadd.f32 %v1379, %v1536
        %v1538 = vtanh.pop %v1537
        %v1539 = vsub.f32 %v1367, %v1538
        %v1540 = vmul.f32 %v1534, %v1539
        %v1541 = vadd.f32 %v1538, %v1540
        %s1542 = scalar_lea.vmem %s302, %s1371 [#allocation12]
        %1543 = vst [vmem:[%s1542] sm:$0xff] %v1541
        %s1544 = scalar_select %p673, 5, 2
        %s1545 = smul.u32 %s1544, 8
        %s1546 = sshra.s32 %s1545, 3
        %s1547 = sand.u32 %s1545, 7
        %s1548 = smul.u32 %s1546, 3
        %s1549 = smul.addr %s1548, 8
        %s1550 = scalar_lea.vmem [#allocation2], %s1549
        %v1551 = vld [vmem:[%s1550] sm:$0xff]
        %v1552 = vld [vmem:[%s1550 + $0x8] sm:$0xff]
        %v1553 = vld [vmem:[%s1550 + $0x10] sm:$0xff]
        %1554 = vmatprep.subr.mxu0 %v619
        %1555 = vmatpush1.msra.mxu0 %v618
        %1556 = vmatprep.subr.mxu0 %v622
        %1557 = vmatpush1.msra.mxu0 %v621
        %1558 = vmatprep.subr.mxu0 %v625
        %1559 = vmatpush1.msra.mxu0 %v624
        %1560 = vmatprep.subr.mxu0 %v628
        %1561 = vmatpush1.msra.mxu0 %v627
        %1562 = vmatprep.subr.mxu0 %v631
        %1563 = vmatpush1.msra.mxu0 %v630
        %1564 = vmatprep.subr.mxu0 %v634
        %1565 = vmatpush1.msra.mxu0 %v633
        %1566 = vmatprep.subr.mxu0 %v637
        %1567 = vmatpush1.msra.mxu0 %v636
        %1568 = vmatprep.subr.mxu0 %v640
        %1569 = vmatpush1.msra.mxu0 %v639
        %1570 = vmatprep.subr.mxu0 %v643
        %1571 = vmatpush1.msra.mxu0 %v642
        %1572 = vmatprep.subr.mxu0 %v646
        %1573 = vmatpush1.msra.mxu0 %v645
        %1574 = vmatprep.subr.mxu0 %v649
        %1575 = vmatpush1.msra.mxu0 %v648
        %1576 = vmatprep.subr.mxu0 %v652
        %1577 = vmatpush1.msra.mxu0 %v651
        %1578 = vmatprep.subr.mxu0 %v655
        %1579 = vmatpush1.msra.mxu0 %v654
        %1580 = vmatprep.subr.mxu0 %v658
        %1581 = vmatpush1.msra.mxu0 %v657
        %1582 = vmatprep.subr.mxu0 %v661
        %1583 = vmatpush1.msra.mxu0 %v660
        %1584 = vmatprep.subr.mxu0 %v664
        %1585 = vmatpush1.msra.mxu0 %v663
        %1586 = vmatprep.subr.mxu0 0.0
        %1587 = vmatpush1.msra.mxu0 0.0
        %1588 = vmatprep.subr.mxu0 0.0
        %1589 = vmatpush1.msra.mxu0 0.0
        %1590 = vmatprep.subr.mxu0 0.0
        %1591 = vmatpush1.msra.mxu0 0.0
        %1592 = vmatprep.subr.mxu0 0.0
        %1593 = vmatpush1.msra.mxu0 0.0
        %1594 = vmatprep.subr.mxu0 0.0
        %1595 = vmatpush1.msra.mxu0 0.0
        %1596 = vmatprep.subr.mxu0 0.0
        %1597 = vmatpush1.msra.mxu0 0.0
        %1598 = vmatprep.subr.mxu0 0.0
        %1599 = vmatpush1.msra.mxu0 0.0
        %1600 = vmatprep.subr.mxu0 0.0
        %1601 = vmatpush1.msra.mxu0 0.0
        %1602 = vmatprep.subr.mxu0 0.0
        %1603 = vmatpush1.msra.mxu0 0.0
        %1604 = vmatprep.subr.mxu0 0.0
        %1605 = vmatpush1.msra.mxu0 0.0
        %1606 = vmatprep.subr.mxu0 0.0
        %1607 = vmatpush1.msra.mxu0 0.0
        %1608 = vmatprep.subr.mxu0 0.0
        %1609 = vmatpush1.msra.mxu0 0.0
        %1610 = vmatprep.subr.mxu0 0.0
        %1611 = vmatpush1.msra.mxu0 0.0
        %1612 = vmatprep.subr.mxu0 0.0
        %1613 = vmatpush1.msra.mxu0 0.0
        %1614 = vmatprep.subr.mxu0 0.0
        %1615 = vmatpush1.msra.mxu0 0.0
        %1616 = vmatprep.subr.mxu0 0.0
        %1617 = vmatpush1.msra.mxu0 0.0
        %1618 = vmatprep.mubr.f32.mxu0 0.0
        %1619 = vmatmul.mubr.f32.gmra.mrb[0].mxu0 %v1541
        %v1620 = vpop.f32.mrb[0].mxu0
        %v1621 = vadd.f32 0.0, %v1620
        %v1622 = vpop.f32.mrb[0].mxu0
        %v1623 = vadd.f32 0.0, %v1622
        %1624 = vdwg.mxu0
        %1625 = vmatprep.subr.mxu0 0.0
        %1626 = vmatpush1.msra.mxu0 %v620
        %1627 = vmatprep.subr.mxu0 0.0
        %1628 = vmatpush1.msra.mxu0 %v623
        %1629 = vmatprep.subr.mxu0 0.0
        %1630 = vmatpush1.msra.mxu0 %v626
        %1631 = vmatprep.subr.mxu0 0.0
        %1632 = vmatpush1.msra.mxu0 %v629
        %1633 = vmatprep.subr.mxu0 0.0
        %1634 = vmatpush1.msra.mxu0 %v632
        %1635 = vmatprep.subr.mxu0 0.0
        %1636 = vmatpush1.msra.mxu0 %v635
        %1637 = vmatprep.subr.mxu0 0.0
        %1638 = vmatpush1.msra.mxu0 %v638
        %1639 = vmatprep.subr.mxu0 0.0
        %1640 = vmatpush1.msra.mxu0 %v641
        %1641 = vmatprep.subr.mxu0 0.0
        %1642 = vmatpush1.msra.mxu0 %v644
        %1643 = vmatprep.subr.mxu0 0.0
        %1644 = vmatpush1.msra.mxu0 %v647
        %1645 = vmatprep.subr.mxu0 0.0
        %1646 = vmatpush1.msra.mxu0 %v650
        %1647 = vmatprep.subr.mxu0 0.0
        %1648 = vmatpush1.msra.mxu0 %v653
        %1649 = vmatprep.subr.mxu0 0.0
        %1650 = vmatpush1.msra.mxu0 %v656
        %1651 = vmatprep.subr.mxu0 0.0
        %1652 = vmatpush1.msra.mxu0 %v659
        %1653 = vmatprep.subr.mxu0 0.0
        %1654 = vmatpush1.msra.mxu0 %v662
        %1655 = vmatprep.subr.mxu0 0.0
        %1656 = vmatpush1.msra.mxu0 %v665
        %1657 = vmatprep.subr.mxu0 0.0
        %1658 = vmatpush1.msra.mxu0 0.0
        %1659 = vmatprep.subr.mxu0 0.0
        %1660 = vmatpush1.msra.mxu0 0.0
        %1661 = vmatprep.subr.mxu0 0.0
        %1662 = vmatpush1.msra.mxu0 0.0
        %1663 = vmatprep.subr.mxu0 0.0
        %1664 = vmatpush1.msra.mxu0 0.0
        %1665 = vmatprep.subr.mxu0 0.0
        %1666 = vmatpush1.msra.mxu0 0.0
        %1667 = vmatprep.subr.mxu0 0.0
        %1668 = vmatpush1.msra.mxu0 0.0
        %1669 = vmatprep.subr.mxu0 0.0
        %1670 = vmatpush1.msra.mxu0 0.0
        %1671 = vmatprep.subr.mxu0 0.0
        %1672 = vmatpush1.msra.mxu0 0.0
        %1673 = vmatprep.subr.mxu0 0.0
        %1674 = vmatpush1.msra.mxu0 0.0
        %1675 = vmatprep.subr.mxu0 0.0
        %1676 = vmatpush1.msra.mxu0 0.0
        %1677 = vmatprep.subr.mxu0 0.0
        %1678 = vmatpush1.msra.mxu0 0.0
        %1679 = vmatprep.subr.mxu0 0.0
        %1680 = vmatpush1.msra.mxu0 0.0
        %1681 = vmatprep.subr.mxu0 0.0
        %1682 = vmatpush1.msra.mxu0 0.0
        %1683 = vmatprep.subr.mxu0 0.0
        %1684 = vmatpush1.msra.mxu0 0.0
        %1685 = vmatprep.subr.mxu0 0.0
        %1686 = vmatpush1.msra.mxu0 0.0
        %1687 = vmatprep.subr.mxu0 0.0
        %1688 = vmatpush1.msra.mxu0 0.0
        %1689 = vmatprep.mubr.f32.mxu0 0.0
        %1690 = vmatmul.mubr.f32.gmra.mrb[0].mxu0 %v1541
        %v1691 = vpop.f32.mrb[0].mxu0
        %v1692 = vadd.f32 0.0, %v1691
        %v1693 = vpop.f32.mrb[0].mxu0
        %1694 = vdwg.mxu0
        %v1695 = vadd.f32 %v1551, %v1621
        %v1696 = vxor.u32 %v1695, 2147483648
        %v1697 = vmul.f32 %v1696, 1.442695
        %v1698 = vpow.pop %v1697
        %v1699 = vadd.f32 %v1698, 1.0
        %v1700 = vrcp.pop %v1699
        %v1701 = vmul.f32 1.0, %v1700
        %v1702 = vadd.f32 %v1552, %v1623
        %v1703 = vxor.u32 %v1702, 2147483648
        %v1704 = vmul.f32 %v1703, 1.442695
        %v1705 = vpow.pop %v1704
        %v1706 = vadd.f32 %v1705, 1.0
        %v1707 = vrcp.pop %v1706
        %v1708 = vmul.f32 1.0, %v1707
        %v1709 = vadd.f32 %v1692, %v671
        %v1710 = vmul.f32 %v1701, %v1709
        %v1711 = vadd.f32 %v1553, %v1710
        %v1712 = vtanh.pop %v1711
        %v1713 = vsub.f32 %v1541, %v1712
        %v1714 = vmul.f32 %v1708, %v1713
        %v1715 = vadd.f32 %v1712, %v1714
        %s1716 = scalar_lea.vmem %s302, %s1545 [#allocation12]
        %1717 = vst [vmem:[%s1716] sm:$0xff] %v1715
        %s1718 = scalar_select %p673, 6, 1
        %s1719 = smul.u32 %s1718, 8
        %s1720 = sshra.s32 %s1719, 3
        %s1721 = sand.u32 %s1719, 7
        %s1722 = smul.u32 %s1720, 3
        %s1723 = smul.addr %s1722, 8
        %s1724 = scalar_lea.vmem [#allocation2], %s1723
        %v1725 = vld [vmem:[%s1724] sm:$0xff]
        %v1726 = vld [vmem:[%s1724 + $0x8] sm:$0xff]
        %v1727 = vld [vmem:[%s1724 + $0x10] sm:$0xff]
        %1728 = vmatprep.subr.mxu0 %v619
        %1729 = vmatpush1.msra.mxu0 %v618
        %1730 = vmatprep.subr.mxu0 %v622
        %1731 = vmatpush1.msra.mxu0 %v621
        %1732 = vmatprep.subr.mxu0 %v625
        %1733 = vmatpush1.msra.mxu0 %v624
        %1734 = vmatprep.subr.mxu0 %v628
        %1735 = vmatpush1.msra.mxu0 %v627
        %1736 = vmatprep.subr.mxu0 %v631
        %1737 = vmatpush1.msra.mxu0 %v630
        %1738 = vmatprep.subr.mxu0 %v634
        %1739 = vmatpush1.msra.mxu0 %v633
        %1740 = vmatprep.subr.mxu0 %v637
        %1741 = vmatpush1.msra.mxu0 %v636
        %1742 = vmatprep.subr.mxu0 %v640
        %1743 = vmatpush1.msra.mxu0 %v639
        %1744 = vmatprep.subr.mxu0 %v643
        %1745 = vmatpush1.msra.mxu0 %v642
        %1746 = vmatprep.subr.mxu0 %v646
        %1747 = vmatpush1.msra.mxu0 %v645
        %1748 = vmatprep.subr.mxu0 %v649
        %1749 = vmatpush1.msra.mxu0 %v648
        %1750 = vmatprep.subr.mxu0 %v652
        %1751 = vmatpush1.msra.mxu0 %v651
        %1752 = vmatprep.subr.mxu0 %v655
        %1753 = vmatpush1.msra.mxu0 %v654
        %1754 = vmatprep.subr.mxu0 %v658
        %1755 = vmatpush1.msra.mxu0 %v657
        %1756 = vmatprep.subr.mxu0 %v661
        %1757 = vmatpush1.msra.mxu0 %v660
        %1758 = vmatprep.subr.mxu0 %v664
        %1759 = vmatpush1.msra.mxu0 %v663
        %1760 = vmatprep.subr.mxu0 0.0
        %1761 = vmatpush1.msra.mxu0 0.0
        %1762 = vmatprep.subr.mxu0 0.0
        %1763 = vmatpush1.msra.mxu0 0.0
        %1764 = vmatprep.subr.mxu0 0.0
        %1765 = vmatpush1.msra.mxu0 0.0
        %1766 = vmatprep.subr.mxu0 0.0
        %1767 = vmatpush1.msra.mxu0 0.0
        %1768 = vmatprep.subr.mxu0 0.0
        %1769 = vmatpush1.msra.mxu0 0.0
        %1770 = vmatprep.subr.mxu0 0.0
        %1771 = vmatpush1.msra.mxu0 0.0
        %1772 = vmatprep.subr.mxu0 0.0
        %1773 = vmatpush1.msra.mxu0 0.0
        %1774 = vmatprep.subr.mxu0 0.0
        %1775 = vmatpush1.msra.mxu0 0.0
        %1776 = vmatprep.subr.mxu0 0.0
        %1777 = vmatpush1.msra.mxu0 0.0
        %1778 = vmatprep.subr.mxu0 0.0
        %1779 = vmatpush1.msra.mxu0 0.0
        %1780 = vmatprep.subr.mxu0 0.0
        %1781 = vmatpush1.msra.mxu0 0.0
        %1782 = vmatprep.subr.mxu0 0.0
        %1783 = vmatpush1.msra.mxu0 0.0
        %1784 = vmatprep.subr.mxu0 0.0
        %1785 = vmatpush1.msra.mxu0 0.0
        %1786 = vmatprep.subr.mxu0 0.0
        %1787 = vmatpush1.msra.mxu0 0.0
        %1788 = vmatprep.subr.mxu0 0.0
        %1789 = vmatpush1.msra.mxu0 0.0
        %1790 = vmatprep.subr.mxu0 0.0
        %1791 = vmatpush1.msra.mxu0 0.0
        %1792 = vmatprep.mubr.f32.mxu0 0.0
        %1793 = vmatmul.mubr.f32.gmra.mrb[0].mxu0 %v1715
        %v1794 = vpop.f32.mrb[0].mxu0
        %v1795 = vadd.f32 0.0, %v1794
        %v1796 = vpop.f32.mrb[0].mxu0
        %v1797 = vadd.f32 0.0, %v1796
        %1798 = vdwg.mxu0
        %1799 = vmatprep.subr.mxu0 0.0
        %1800 = vmatpush1.msra.mxu0 %v620
        %1801 = vmatprep.subr.mxu0 0.0
        %1802 = vmatpush1.msra.mxu0 %v623
        %1803 = vmatprep.subr.mxu0 0.0
        %1804 = vmatpush1.msra.mxu0 %v626
        %1805 = vmatprep.subr.mxu0 0.0
        %1806 = vmatpush1.msra.mxu0 %v629
        %1807 = vmatprep.subr.mxu0 0.0
        %1808 = vmatpush1.msra.mxu0 %v632
        %1809 = vmatprep.subr.mxu0 0.0
        %1810 = vmatpush1.msra.mxu0 %v635
        %1811 = vmatprep.subr.mxu0 0.0
        %1812 = vmatpush1.msra.mxu0 %v638
        %1813 = vmatprep.subr.mxu0 0.0
        %1814 = vmatpush1.msra.mxu0 %v641
        %1815 = vmatprep.subr.mxu0 0.0
        %1816 = vmatpush1.msra.mxu0 %v644
        %1817 = vmatprep.subr.mxu0 0.0
        %1818 = vmatpush1.msra.mxu0 %v647
        %1819 = vmatprep.subr.mxu0 0.0
        %1820 = vmatpush1.msra.mxu0 %v650
        %1821 = vmatprep.subr.mxu0 0.0
        %1822 = vmatpush1.msra.mxu0 %v653
        %1823 = vmatprep.subr.mxu0 0.0
        %1824 = vmatpush1.msra.mxu0 %v656
        %1825 = vmatprep.subr.mxu0 0.0
        %1826 = vmatpush1.msra.mxu0 %v659
        %1827 = vmatprep.subr.mxu0 0.0
        %1828 = vmatpush1.msra.mxu0 %v662
        %1829 = vmatprep.subr.mxu0 0.0
        %1830 = vmatpush1.msra.mxu0 %v665
        %1831 = vmatprep.subr.mxu0 0.0
        %1832 = vmatpush1.msra.mxu0 0.0
        %1833 = vmatprep.subr.mxu0 0.0
        %1834 = vmatpush1.msra.mxu0 0.0
        %1835 = vmatprep.subr.mxu0 0.0
        %1836 = vmatpush1.msra.mxu0 0.0
        %1837 = vmatprep.subr.mxu0 0.0
        %1838 = vmatpush1.msra.mxu0 0.0
        %1839 = vmatprep.subr.mxu0 0.0
        %1840 = vmatpush1.msra.mxu0 0.0
        %1841 = vmatprep.subr.mxu0 0.0
        %1842 = vmatpush1.msra.mxu0 0.0
        %1843 = vmatprep.subr.mxu0 0.0
        %1844 = vmatpush1.msra.mxu0 0.0
        %1845 = vmatprep.subr.mxu0 0.0
        %1846 = vmatpush1.msra.mxu0 0.0
        %1847 = vmatprep.subr.mxu0 0.0
        %1848 = vmatpush1.msra.mxu0 0.0
        %1849 = vmatprep.subr.mxu0 0.0
        %1850 = vmatpush1.msra.mxu0 0.0
        %1851 = vmatprep.subr.mxu0 0.0
        %1852 = vmatpush1.msra.mxu0 0.0
        %1853 = vmatprep.subr.mxu0 0.0
        %1854 = vmatpush1.msra.mxu0 0.0
        %1855 = vmatprep.subr.mxu0 0.0
        %1856 = vmatpush1.msra.mxu0 0.0
        %1857 = vmatprep.subr.mxu0 0.0
        %1858 = vmatpush1.msra.mxu0 0.0
        %1859 = vmatprep.subr.mxu0 0.0
        %1860 = vmatpush1.msra.mxu0 0.0
        %1861 = vmatprep.subr.mxu0 0.0
        %1862 = vmatpush1.msra.mxu0 0.0
        %1863 = vmatprep.mubr.f32.mxu0 0.0
        %1864 = vmatmul.mubr.f32.gmra.mrb[0].mxu0 %v1715
        %v1865 = vpop.f32.mrb[0].mxu0
        %v1866 = vadd.f32 0.0, %v1865
        %v1867 = vpop.f32.mrb[0].mxu0
        %1868 = vdwg.mxu0
        %v1869 = vadd.f32 %v1725, %v1795
        %v1870 = vxor.u32 %v1869, 2147483648
        %v1871 = vmul.f32 %v1870, 1.442695
        %v1872 = vpow.pop %v1871
        %v1873 = vadd.f32 %v1872, 1.0
        %v1874 = vrcp.pop %v1873
        %v1875 = vmul.f32 1.0, %v1874
        %v1876 = vadd.f32 %v1726, %v1797
        %v1877 = vxor.u32 %v1876, 2147483648
        %v1878 = vmul.f32 %v1877, 1.442695
        %v1879 = vpow.pop %v1878
        %v1880 = vadd.f32 %v1879, 1.0
        %v1881 = vrcp.pop %v1880
        %v1882 = vmul.f32 1.0, %v1881
        %v1883 = vadd.f32 %v1866, %v671
        %v1884 = vmul.f32 %v1875, %v1883
        %v1885 = vadd.f32 %v1727, %v1884
        %v1886 = vtanh.pop %v1885
        %v1887 = vsub.f32 %v1715, %v1886
        %v1888 = vmul.f32 %v1882, %v1887
        %v1889 = vadd.f32 %v1886, %v1888
        %s1890 = scalar_lea.vmem %s302, %s1719 [#allocation12]
        %1891 = vst [vmem:[%s1890] sm:$0xff] %v1889
        %s1892 = scalar_select %p673, 7, 0
        %s1893 = smul.u32 %s1892, 8
        %s1894 = sshra.s32 %s1893, 3
        %s1895 = sand.u32 %s1893, 7
        %s1896 = smul.u32 %s1894, 3
        %s1897 = smul.addr %s1896, 8
        %s1898 = scalar_lea.vmem [#allocation2], %s1897
        %v1899 = vld [vmem:[%s1898] sm:$0xff]
        %v1900 = vld [vmem:[%s1898 + $0x8] sm:$0xff]
        %v1901 = vld [vmem:[%s1898 + $0x10] sm:$0xff]
        %1902 = vmatprep.subr.mxu0 %v619
        %1903 = vmatpush1.msra.mxu0 %v618
        %1904 = vmatprep.subr.mxu0 %v622
        %1905 = vmatpush1.msra.mxu0 %v621
        %1906 = vmatprep.subr.mxu0 %v625
        %1907 = vmatpush1.msra.mxu0 %v624
        %1908 = vmatprep.subr.mxu0 %v628
        %1909 = vmatpush1.msra.mxu0 %v627
        %1910 = vmatprep.subr.mxu0 %v631
        %1911 = vmatpush1.msra.mxu0 %v630
        %1912 = vmatprep.subr.mxu0 %v634
        %1913 = vmatpush1.msra.mxu0 %v633
        %1914 = vmatprep.subr.mxu0 %v637
        %1915 = vmatpush1.msra.mxu0 %v636
        %1916 = vmatprep.subr.mxu0 %v640
        %1917 = vmatpush1.msra.mxu0 %v639
        %1918 = vmatprep.subr.mxu0 %v643
        %1919 = vmatpush1.msra.mxu0 %v642
        %1920 = vmatprep.subr.mxu0 %v646
        %1921 = vmatpush1.msra.mxu0 %v645
        %1922 = vmatprep.subr.mxu0 %v649
        %1923 = vmatpush1.msra.mxu0 %v648
        %1924 = vmatprep.subr.mxu0 %v652
        %1925 = vmatpush1.msra.mxu0 %v651
        %1926 = vmatprep.subr.mxu0 %v655
        %1927 = vmatpush1.msra.mxu0 %v654
        %1928 = vmatprep.subr.mxu0 %v658
        %1929 = vmatpush1.msra.mxu0 %v657
        %1930 = vmatprep.subr.mxu0 %v661
        %1931 = vmatpush1.msra.mxu0 %v660
        %1932 = vmatprep.subr.mxu0 %v664
        %1933 = vmatpush1.msra.mxu0 %v663
        %1934 = vmatprep.subr.mxu0 0.0
        %1935 = vmatpush1.msra.mxu0 0.0
        %1936 = vmatprep.subr.mxu0 0.0
        %1937 = vmatpush1.msra.mxu0 0.0
        %1938 = vmatprep.subr.mxu0 0.0
        %1939 = vmatpush1.msra.mxu0 0.0
        %1940 = vmatprep.subr.mxu0 0.0
        %1941 = vmatpush1.msra.mxu0 0.0
        %1942 = vmatprep.subr.mxu0 0.0
        %1943 = vmatpush1.msra.mxu0 0.0
        %1944 = vmatprep.subr.mxu0 0.0
        %1945 = vmatpush1.msra.mxu0 0.0
        %1946 = vmatprep.subr.mxu0 0.0
        %1947 = vmatpush1.msra.mxu0 0.0
        %1948 = vmatprep.subr.mxu0 0.0
        %1949 = vmatpush1.msra.mxu0 0.0
        %1950 = vmatprep.subr.mxu0 0.0
        %1951 = vmatpush1.msra.mxu0 0.0
        %1952 = vmatprep.subr.mxu0 0.0
        %1953 = vmatpush1.msra.mxu0 0.0
        %1954 = vmatprep.subr.mxu0 0.0
        %1955 = vmatpush1.msra.mxu0 0.0
        %1956 = vmatprep.subr.mxu0 0.0
        %1957 = vmatpush1.msra.mxu0 0.0
        %1958 = vmatprep.subr.mxu0 0.0
        %1959 = vmatpush1.msra.mxu0 0.0
        %1960 = vmatprep.subr.mxu0 0.0
        %1961 = vmatpush1.msra.mxu0 0.0
        %1962 = vmatprep.subr.mxu0 0.0
        %1963 = vmatpush1.msra.mxu0 0.0
        %1964 = vmatprep.subr.mxu0 0.0
        %1965 = vmatpush1.msra.mxu0 0.0
        %1966 = vmatprep.mubr.f32.mxu0 0.0
        %1967 = vmatmul.mubr.f32.gmra.mrb[0].mxu0 %v1889
        %v1968 = vpop.f32.mrb[0].mxu0
        %v1969 = vadd.f32 0.0, %v1968
        %v1970 = vpop.f32.mrb[0].mxu0
        %v1971 = vadd.f32 0.0, %v1970
        %1972 = vdwg.mxu0
        %1973 = vmatprep.subr.mxu0 0.0
        %1974 = vmatpush1.msra.mxu0 %v620
        %1975 = vmatprep.subr.mxu0 0.0
        %1976 = vmatpush1.msra.mxu0 %v623
        %1977 = vmatprep.subr.mxu0 0.0
        %1978 = vmatpush1.msra.mxu0 %v626
        %1979 = vmatprep.subr.mxu0 0.0
        %1980 = vmatpush1.msra.mxu0 %v629
        %1981 = vmatprep.subr.mxu0 0.0
        %1982 = vmatpush1.msra.mxu0 %v632
        %1983 = vmatprep.subr.mxu0 0.0
        %1984 = vmatpush1.msra.mxu0 %v635
        %1985 = vmatprep.subr.mxu0 0.0
        %1986 = vmatpush1.msra.mxu0 %v638
        %1987 = vmatprep.subr.mxu0 0.0
        %1988 = vmatpush1.msra.mxu0 %v641
        %1989 = vmatprep.subr.mxu0 0.0
        %1990 = vmatpush1.msra.mxu0 %v644
        %1991 = vmatprep.subr.mxu0 0.0
        %1992 = vmatpush1.msra.mxu0 %v647
        %1993 = vmatprep.subr.mxu0 0.0
        %1994 = vmatpush1.msra.mxu0 %v650
        %1995 = vmatprep.subr.mxu0 0.0
        %1996 = vmatpush1.msra.mxu0 %v653
        %1997 = vmatprep.subr.mxu0 0.0
        %1998 = vmatpush1.msra.mxu0 %v656
        %1999 = vmatprep.subr.mxu0 0.0
        %2000 = vmatpush1.msra.mxu0 %v659
        %2001 = vmatprep.subr.mxu0 0.0
        %2002 = vmatpush1.msra.mxu0 %v662
        %2003 = vmatprep.subr.mxu0 0.0
        %2004 = vmatpush1.msra.mxu0 %v665
        %2005 = vmatprep.subr.mxu0 0.0
        %2006 = vmatpush1.msra.mxu0 0.0
        %2007 = vmatprep.subr.mxu0 0.0
        %2008 = vmatpush1.msra.mxu0 0.0
        %2009 = vmatprep.subr.mxu0 0.0
        %2010 = vmatpush1.msra.mxu0 0.0
        %2011 = vmatprep.subr.mxu0 0.0
        %2012 = vmatpush1.msra.mxu0 0.0
        %2013 = vmatprep.subr.mxu0 0.0
        %2014 = vmatpush1.msra.mxu0 0.0
        %2015 = vmatprep.subr.mxu0 0.0
        %2016 = vmatpush1.msra.mxu0 0.0
        %2017 = vmatprep.subr.mxu0 0.0
        %2018 = vmatpush1.msra.mxu0 0.0
        %2019 = vmatprep.subr.mxu0 0.0
        %2020 = vmatpush1.msra.mxu0 0.0
        %2021 = vmatprep.subr.mxu0 0.0
        %2022 = vmatpush1.msra.mxu0 0.0
        %2023 = vmatprep.subr.mxu0 0.0
        %2024 = vmatpush1.msra.mxu0 0.0
        %2025 = vmatprep.subr.mxu0 0.0
        %2026 = vmatpush1.msra.mxu0 0.0
        %2027 = vmatprep.subr.mxu0 0.0
        %2028 = vmatpush1.msra.mxu0 0.0
        %2029 = vmatprep.subr.mxu0 0.0
        %2030 = vmatpush1.msra.mxu0 0.0
        %2031 = vmatprep.subr.mxu0 0.0
        %2032 = vmatpush1.msra.mxu0 0.0
        %2033 = vmatprep.subr.mxu0 0.0
        %2034 = vmatpush1.msra.mxu0 0.0
        %2035 = vmatprep.subr.mxu0 0.0
        %2036 = vmatpush1.msra.mxu0 0.0
        %2037 = vmatprep.mubr.f32.mxu0 0.0
        %2038 = vmatmul.mubr.f32.gmra.mrb[0].mxu0 %v1889
        %v2039 = vpop.f32.mrb[0].mxu0
        %v2040 = vadd.f32 0.0, %v2039
        %v2041 = vpop.f32.mrb[0].mxu0
        %2042 = vdwg.mxu0
        %v2043 = vadd.f32 %v1899, %v1969
        %v2044 = vxor.u32 %v2043, 2147483648
        %v2045 = vmul.f32 %v2044, 1.442695
        %v2046 = vpow.pop %v2045
        %v2047 = vadd.f32 %v2046, 1.0
        %v2048 = vrcp.pop %v2047
        %v2049 = vmul.f32 1.0, %v2048
        %v2050 = vadd.f32 %v1900, %v1971
        %v2051 = vxor.u32 %v2050, 2147483648
        %v2052 = vmul.f32 %v2051, 1.442695
        %v2053 = vpow.pop %v2052
        %v2054 = vadd.f32 %v2053, 1.0
        %v2055 = vrcp.pop %v2054
        %v2056 = vmul.f32 1.0, %v2055
        %v2057 = vadd.f32 %v2040, %v671
        %v2058 = vmul.f32 %v2049, %v2057
        %v2059 = vadd.f32 %v1901, %v2058
        %v2060 = vtanh.pop %v2059
        %v2061 = vsub.f32 %v1889, %v2060
        %v2062 = vmul.f32 %v2056, %v2061
        %v2063 = vadd.f32 %v2060, %v2062
        %s2064 = scalar_lea.vmem %s302, %s1893 [#allocation12]
        %2065 = vst [vmem:[%s2064] sm:$0xff] %v2063
        %s2066 = sand.u32 %s155, 1
        %s2067 = scalar_lea.sflag [#allocation5], %s2066
        %s2068 = sand.u32 %s155, 1
        %s2069 = smul.addr %s2068, 64
        %s2070 = scalar_lea.vmem [#allocation12], %s2069
        // Predicated region
        $region61: #{tpu_custom_call.1} parent=39 // pred_check
          %p2071 = pneg %p165
        $region62: #{tpu_custom_call.1} parent=39 // pred_check_branch
          %2073 = sbr.rel (%p2071) target = $region64
        $region63: #{tpu_custom_call.1} parent=39 // pred_region
          %s2075 = ssub.s32 1024, 1024
          %2076 = vsyncadd %s2067, %s2075
          %s2077 = smul.addr %s22, 8
          %s2078 = smul.addr %s2077, 128
          %s2079 = scalar_lea.hbm %s5, %s2078
          %s2080 = sshll.u32 %s2070, 4
          %s2081 = int_to_ptr.vmem [resolvable:$true] %s2080
          %2086 = dma.vmem_to_hbm [thread:$0]  %s2081, 1024, %s2079, %s2067, 128, 128, 8
        $region64: #{tpu_custom_call.1} parent=39 // pred_fallthru
          _
      $region40: #{tpu_custom_call.1} parent=5 // pred_fallthru
        _
      %p2087 = scmp.le.s32.totalorder 2, %s17
      // Predicated region
      $region65: #{tpu_custom_call.1} parent=5 // pred_check
        %p2088 = pneg %p2087
      $region66: #{tpu_custom_call.1} parent=5 // pred_check_branch
        %2090 = sbr.rel (%p2088) target = $region68
      $region67: #{tpu_custom_call.1} parent=5 // pred_region
        %s2091 = ssub.s32 %s17, 2
        // Predicated region
        $region69: #{tpu_custom_call.1} parent=67 // pred_check
          %p2092 = pneg %p171
        $region70: #{tpu_custom_call.1} parent=67 // pred_check_branch
          %2094 = sbr.rel (%p2092) target = $region72
        $region71: #{tpu_custom_call.1} parent=67 // pred_region
          %s2095 = sand.u32 %s156, 1
          %s2096 = scalar_lea.sflag [#allocation5], %s2095
          %s2097 = sand.u32 %s156, 1
          %s2098 = smul.addr %s2097, 64
          %s2099 = scalar_lea.vmem [#allocation12], %s2098
          %2100 = dma.done %s2096, 1024
        $region72: #{tpu_custom_call.1} parent=67 // pred_fallthru
          _
      $region68: #{tpu_custom_call.1} parent=5 // pred_fallthru
        _
    $region6: #{tpu_custom_call.1} parent=1 // loop_footer
      %s21 = sadd.s32 1, %s17
    $region7: #{tpu_custom_call.1} parent=1 // loop_footer_branch
      %16 = sbr.rel target = $region3
    $region8: #{tpu_custom_call.1} parent=1 // loop_exit
      _
    %2101 = vsyncpa [#allocation4], 1
    %s2102 = scalar_lea.sflag [#allocation4], 1
    %2103 = vsyncpa %s2102, 1
    %2104 = vsyncpa [#allocation7], 1
    %2105 = vsyncpa [#allocation10], 1
    %2106 = vsyncpa [#allocation5], 1
    %s2107 = scalar_lea.sflag [#allocation5], 1
    %2108 = vsyncpa %s2107, 1

// kernel: tpu_custom_call.1
$region0: #{tpu_custom_call.1}
  #allocation0 [shape = 'u32[]', space=smem, size = 0x4, offset = 0x4, fixed_abs, tag = 'smem constant byte address 0x4 - core index']
  #allocation1 [shape = 'u32[144,128]{1,0:T(1,128)}', space=vmem, size = 0x12000, scoped, tag = 'internal scratch']
  #allocation2 [shape = 'f32[64,384]{1,0:T(8,128)}', space=vmem, size = 0x18000, scoped, tag = 'scratch operand']
  %s0 = inlined_call_operand.hbm [shape: f32[64,128], index: 0, kind: input, shape index: {}]
  %s1 = inlined_call_operand.hbm [shape: f32[2,128,384], index: 1, kind: input, shape index: {}]
  %s2 = inlined_call_operand.hbm [shape: f32[2,128,384], index: 2, kind: input, shape index: {}]
  %s3 = inlined_call_operand.hbm [shape: f32[2,1,384], index: 3, kind: input, shape index: {}]
  %s4 = inlined_call_operand.hbm [shape: f32[2,1,128], index: 4, kind: input, shape index: {}]
  %s5 = inlined_call_operand.hbm [shape: f32[2,8,8,128], index: 5, kind: output, shape index: {}]
  %s6 = sld [smem:[#allocation0]]
  $region73: #{tpu_custom_call.1} parent=0
    _
  %s8 = ssub.s32 1, %s6
  %s9 = scalar_select 0, %s8, %s6
  $region1: #{tpu_custom_call.1} parent=0
    #allocation3 [shape = 'u8[32768]{0}', space=vmem, size = 0x8000, scoped, tag = 'input window, operand 0, single buffered']
    #allocation4 [shape = 's32[2]{0}', space=sflag, size = 0x8, scoped, tag = 'scoped memory for tpu_custom_call.1']
    #allocation5 [shape = 's32[2]{0}', space=sflag, size = 0x8, scoped, tag = 'scoped memory for tpu_custom_call.1']
    #allocation6 [shape = 'u8[393216]{0}', space=vmem, size = 0x60000, scoped, tag = 'input window, operand 1']
    #allocation7 [shape = 's32[2]{0}', space=sflag, size = 0x8, scoped, tag = 'scoped memory for tpu_custom_call.1']
    #allocation8 [shape = 'u8[393216]{0}', space=vmem, size = 0x60000, scoped, tag = 'input window, operand 2']
    #allocation9 [shape = 'u8[3072]{0}', space=vmem, size = 0xc00, scoped, tag = 'input window, operand 3']
    #allocation10 [shape = 's32[2]{0}', space=sflag, size = 0x8, scoped, tag = 'scoped memory for tpu_custom_call.1']
    #allocation11 [shape = 'u8[1024]{0}', space=vmem, size = 0x400, scoped, tag = 'input window, operand 4']
    #allocation12 [shape = 'u8[65536]{0}', space=vmem, size = 0x10000, scoped, tag = 'output window, operand 0']
    %10 = vsyncpa [#allocation4], 0
    %11 = vsyncpa [#allocation7], 0
    %s12 = scalar_lea.sflag [#allocation7], 1
    %13 = vsyncpa %s12, 0
    %14 = vsyncpa [#allocation10], 0
    %s15 = scalar_lea.sflag [#allocation10], 1
    %16 = vsyncpa %s15, 0
    %17 = vsyncpa [#allocation5], 0
    %s18 = scalar_lea.sflag [#allocation5], 1
    %19 = vsyncpa %s18, 0
    loop: start=0, step=1, limit=4
    $region2: #{tpu_custom_call.1} parent=1 // loop_pre_header
      _
    $region3: #{tpu_custom_call.1} parent=1 // loop_header
      %s21 = sphi 0, %s25
      %p22 = scmp.ge.s32.totalorder %s21, 4
      %s29 = sphi 0, %s29
      %s31 = sphi 0, %s29
      %s32 = sphi 0, %s31
      %s46 = sphi 0, %s32
      %s52 = sphi 0, %s54
      %s55 = sphi 0, %s52
      %s56 = sphi 0, %s55
      %s72 = sphi 0, %s56
      %s78 = sphi 0, %s80
      %s81 = sphi 0, %s78
      %s82 = sphi 0, %s81
      %s98 = sphi 0, %s82
      %s104 = sphi 0, %s106
      %s107 = sphi 0, %s104
      %s108 = sphi 0, %s107
      %s124 = sphi 0, %s108
      %s130 = sphi 0, %s132
      %s133 = sphi 0, %s130
      %s134 = sphi 0, %s133
      %s150 = sphi 0, %s134
      %s156 = sphi 0, %s158
      %s159 = sphi 0, %s156
      %s160 = sphi 0, %s159
      %s176 = sphi 0, %s160
    $region4: #{tpu_custom_call.1} parent=1 // loop_header_branch
      %24 = sbr.rel (%p22) target = $region8
    $region5: #{tpu_custom_call.1} parent=1 // loop_body
      %s26 = ssub.s32 %s21, 1
      %s27 = ssub.s32 %s21, 2
      %s28 = sadd.s32 %s21, 1
      %s30 = sadd.s32 %s29, 1
      %p33 = scmp.eq.s32.totalorder %s21, 1
      %p34 = scmp.ne.s32.totalorder %s29, %s31
      %p35 = scmp.eq.s32.totalorder %s21, 0
      %p36 = por %p34, %p35
      %p37 = scmp.ne.s32.totalorder %s29, %s31
      %p38 = scmp.eq.s32.totalorder %s26, 1
      %p39 = por %p37, %p38
      %p40 = scmp.ne.s32.totalorder %s31, %s32
      %p41 = scmp.eq.s32.totalorder %s26, 0
      %p42 = por %p40, %p41
      %p43 = scmp.ne.s32.totalorder %s31, %s32
      %p44 = scmp.eq.s32.totalorder %s27, 1
      %p45 = por %p43, %p44
      %p47 = scmp.ne.s32.totalorder %s32, %s46
      %p48 = scmp.eq.s32.totalorder %s27, 0
      %p49 = por %p47, %p48
      %s50 = ssub.s32 %s21, %s28
      %p51 = scmp.eq.s32.totalorder %s50, 0
      %s53 = sadd.s32 %s52, 1
      %s54 = scalar_select %p51, %s52, %s53
      %p57 = pneg %p51
      %p58 = scmp.eq.s32.totalorder %s21, 1
      %p59 = por %p57, %p58
      %p60 = scmp.ne.s32.totalorder %s52, %s55
      %p61 = scmp.eq.s32.totalorder %s21, 0
      %p62 = por %p60, %p61
      %p63 = scmp.ne.s32.totalorder %s52, %s55
      %p64 = scmp.eq.s32.totalorder %s26, 1
      %p65 = por %p63, %p64
      %p66 = scmp.ne.s32.totalorder %s55, %s56
      %p67 = scmp.eq.s32.totalorder %s26, 0
      %p68 = por %p66, %p67
      %p69 = scmp.ne.s32.totalorder %s55, %s56
      %p70 = scmp.eq.s32.totalorder %s27, 1
      %p71 = por %p69, %p70
      %p73 = scmp.ne.s32.totalorder %s56, %s72
      %p74 = scmp.eq.s32.totalorder %s27, 0
      %p75 = por %p73, %p74
      %s76 = ssub.s32 %s21, %s28
      %p77 = scmp.eq.s32.totalorder %s76, 0
      %s79 = sadd.s32 %s78, 1
      %s80 = scalar_select %p77, %s78, %s79
      %p83 = pneg %p77
      %p84 = scmp.eq.s32.totalorder %s21, 1
      %p85 = por %p83, %p84
      %p86 = scmp.ne.s32.totalorder %s78, %s81
      %p87 = scmp.eq.s32.totalorder %s21, 0
      %p88 = por %p86, %p87
      %p89 = scmp.ne.s32.totalorder %s78, %s81
      %p90 = scmp.eq.s32.totalorder %s26, 1
      %p91 = por %p89, %p90
      %p92 = scmp.ne.s32.totalorder %s81, %s82
      %p93 = scmp.eq.s32.totalorder %s26, 0
      %p94 = por %p92, %p93
      %p95 = scmp.ne.s32.totalorder %s81, %s82
      %p96 = scmp.eq.s32.totalorder %s27, 1
      %p97 = por %p95, %p96
      %p99 = scmp.ne.s32.totalorder %s82, %s98
      %p100 = scmp.eq.s32.totalorder %s27, 0
      %p101 = por %p99, %p100
      %s102 = ssub.s32 %s21, %s28
      %p103 = scmp.eq.s32.totalorder %s102, 0
      %s105 = sadd.s32 %s104, 1
      %s106 = scalar_select %p103, %s104, %s105
      %p109 = pneg %p103
      %p110 = scmp.eq.s32.totalorder %s21, 1
      %p111 = por %p109, %p110
      %p112 = scmp.ne.s32.totalorder %s104, %s107
      %p113 = scmp.eq.s32.totalorder %s21, 0
      %p114 = por %p112, %p113
      %p115 = scmp.ne.s32.totalorder %s104, %s107
      %p116 = scmp.eq.s32.totalorder %s26, 1
      %p117 = por %p115, %p116
      %p118 = scmp.ne.s32.totalorder %s107, %s108
      %p119 = scmp.eq.s32.totalorder %s26, 0
      %p120 = por %p118, %p119
      %p121 = scmp.ne.s32.totalorder %s107, %s108
      %p122 = scmp.eq.s32.totalorder %s27, 1
      %p123 = por %p121, %p122
      %p125 = scmp.ne.s32.totalorder %s108, %s124
      %p126 = scmp.eq.s32.totalorder %s27, 0
      %p127 = por %p125, %p126
      %s128 = ssub.s32 %s21, %s28
      %p129 = scmp.eq.s32.totalorder %s128, 0
      %s131 = sadd.s32 %s130, 1
      %s132 = scalar_select %p129, %s130, %s131
      %p135 = pneg %p129
      %p136 = scmp.eq.s32.totalorder %s21, 1
      %p137 = por %p135, %p136
      %p138 = scmp.ne.s32.totalorder %s130, %s133
      %p139 = scmp.eq.s32.totalorder %s21, 0
      %p140 = por %p138, %p139
      %p141 = scmp.ne.s32.totalorder %s130, %s133
      %p142 = scmp.eq.s32.totalorder %s26, 1
      %p143 = por %p141, %p142
      %p144 = scmp.ne.s32.totalorder %s133, %s134
      %p145 = scmp.eq.s32.totalorder %s26, 0
      %p146 = por %p144, %p145
      %p147 = scmp.ne.s32.totalorder %s133, %s134
      %p148 = scmp.eq.s32.totalorder %s27, 1
      %p149 = por %p147, %p148
      %p151 = scmp.ne.s32.totalorder %s134, %s150
      %p152 = scmp.eq.s32.totalorder %s27, 0
      %p153 = por %p151, %p152
      %s154 = ssub.s32 %s21, %s28
      %p155 = scmp.eq.s32.totalorder %s154, 0
      %s157 = sadd.s32 %s156, 1
      %s158 = scalar_select %p155, %s156, %s157
      %p161 = pneg %p155
      %p162 = scmp.eq.s32.totalorder %s21, 1
      %p163 = por %p161, %p162
      %p164 = scmp.ne.s32.totalorder %s156, %s159
      %p165 = scmp.eq.s32.totalorder %s21, 0
      %p166 = por %p164, %p165
      %p167 = scmp.ne.s32.totalorder %s156, %s159
      %p168 = scmp.eq.s32.totalorder %s26, 1
      %p169 = por %p167, %p168
      %p170 = scmp.ne.s32.totalorder %s159, %s160
      %p171 = scmp.eq.s32.totalorder %s26, 0
      %p172 = por %p170, %p171
      %p173 = scmp.ne.s32.totalorder %s159, %s160
      %p174 = scmp.eq.s32.totalorder %s27, 1
      %p175 = por %p173, %p174
      %p177 = scmp.ne.s32.totalorder %s160, %s176
      %p178 = scmp.eq.s32.totalorder %s27, 0
      %p179 = por %p177, %p178
      %p180 = scmp.le.s32.totalorder 1, %s21
      %p181 = scmp.lt.s32.totalorder %s21, 3
      %p182 = pnand %p180, %p181
      %p183 = pneg %p182
      // Predicated region
      $region9: #{tpu_custom_call.1} parent=5 // pred_check
        _
      $region10: #{tpu_custom_call.1} parent=5 // pred_check_branch
        %185 = sbr.rel (%p182) target = $region12
      $region11: #{tpu_custom_call.1} parent=5 // pred_region
        %s186 = ssub.s32 %s21, 1
        // Predicated region
        $region13: #{tpu_custom_call.1} parent=11 // pred_check
          %p187 = pneg %p42
        $region14: #{tpu_custom_call.1} parent=11 // pred_check_branch
          %189 = sbr.rel (%p187) target = $region16
        $region15: #{tpu_custom_call.1} parent=11 // pred_region
          %s191 = ssub.s32 1024, 1024
          %192 = vsyncadd [#allocation4], %s191
          %s193 = sshll.u32 [#allocation3], 4
          %s194 = int_to_ptr.vmem [resolvable:$true] %s193
          %199 = dma.hbm_to_vmem [thread:$0]  %s0, 1024, %s194, [#allocation4], 128, 128, 8
        $region16: #{tpu_custom_call.1} parent=11 // pred_fallthru
          _
      $region12: #{tpu_custom_call.1} parent=5 // pred_fallthru
        _
      %p200 = scmp.lt.s32.totalorder %s21, 2
      // Predicated region
      $region17: #{tpu_custom_call.1} parent=5 // pred_check
        %p201 = pneg %p200
      $region18: #{tpu_custom_call.1} parent=5 // pred_check_branch
        %203 = sbr.rel (%p201) target = $region20
      $region19: #{tpu_custom_call.1} parent=5 // pred_region
        // Predicated region
        $region21: #{tpu_custom_call.1} parent=19 // pred_check
          %p204 = pneg %p62
        $region22: #{tpu_custom_call.1} parent=19 // pred_check_branch
          %206 = sbr.rel (%p204) target = $region24
        $region23: #{tpu_custom_call.1} parent=19 // pred_region
          %s207 = sand.u32 %s21, 1
          %s208 = scalar_lea.sflag [#allocation7], %s207
          %s209 = sand.u32 %s52, 1
          %s210 = smul.addr %s209, 384
          %s211 = scalar_lea.vmem [#allocation6], %s210
          %s213 = ssub.s32 6144, 6144
          %214 = vsyncadd %s208, %s213
          %s215 = smul.addr %s21, 48
          %s216 = smul.addr %s215, 128
          %s217 = scalar_lea.hbm %s1, %s216
          %s218 = sshll.u32 %s211, 4
          %s219 = int_to_ptr.vmem [resolvable:$true] %s218
          %224 = dma.hbm_to_vmem [thread:$0]  %s217, 6144, %s219, %s208, 384, 384, 24
        $region24: #{tpu_custom_call.1} parent=19 // pred_fallthru
          _
        // Predicated region
        $region25: #{tpu_custom_call.1} parent=19 // pred_check
          %p225 = pneg %p88
        $region26: #{tpu_custom_call.1} parent=19 // pred_check_branch
          %227 = sbr.rel (%p225) target = $region28
        $region27: #{tpu_custom_call.1} parent=19 // pred_region
          %s228 = sand.u32 %s21, 1
          %s229 = scalar_lea.sflag [#allocation7], %s228
          %s230 = sand.u32 %s78, 1
          %s231 = smul.addr %s230, 384
          %s232 = scalar_lea.vmem [#allocation8], %s231
          %s234 = ssub.s32 6144, 6144
          %235 = vsyncadd %s229, %s234
          %s236 = smul.addr %s21, 48
          %s237 = smul.addr %s236, 128
          %s238 = scalar_lea.hbm %s2, %s237
          %s239 = sshll.u32 %s232, 4
          %s240 = int_to_ptr.vmem [resolvable:$true] %s239
          %245 = dma.hbm_to_vmem [thread:$0]  %s238, 6144, %s240, %s229, 384, 384, 24
        $region28: #{tpu_custom_call.1} parent=19 // pred_fallthru
          _
        // Predicated region
        $region29: #{tpu_custom_call.1} parent=19 // pred_check
          %p246 = pneg %p114
        $region30: #{tpu_custom_call.1} parent=19 // pred_check_branch
          %248 = sbr.rel (%p246) target = $region32
        $region31: #{tpu_custom_call.1} parent=19 // pred_region
          %s249 = sand.u32 %s21, 1
          %s250 = scalar_lea.sflag [#allocation10], %s249
          %s251 = sand.u32 %s104, 1
          %s252 = smul.addr %s251, 3
          %s253 = scalar_lea.vmem [#allocation9], %s252
          %s255 = ssub.s32 48, 48
          %256 = vsyncadd %s250, %s255
          %s257 = smul.addr %s21, 3
          %s258 = smul.addr %s257, 16
          %s259 = scalar_lea.hbm %s3, %s258
          %s261 = sshll.u32 %s253, 4
          %s262 = int_to_ptr.vmem [resolvable:$true] %s261
          %264 = dma.hbm_to_vmem [thread:$0]  %s259, 48, %s262, %s250
        $region32: #{tpu_custom_call.1} parent=19 // pred_fallthru
          _
        // Predicated region
        $region33: #{tpu_custom_call.1} parent=19 // pred_check
          %p265 = pneg %p140
        $region34: #{tpu_custom_call.1} parent=19 // pred_check_branch
          %267 = sbr.rel (%p265) target = $region36
        $region35: #{tpu_custom_call.1} parent=19 // pred_region
          %s268 = sand.u32 %s21, 1
          %s269 = scalar_lea.sflag [#allocation10], %s268
          %s270 = sand.u32 %s130, 1
          %s271 = scalar_lea.vmem [#allocation11], %s270
          %s273 = ssub.s32 16, 16
          %274 = vsyncadd %s269, %s273
          %s275 = smul.addr %s21, 16
          %s276 = scalar_lea.hbm %s4, %s275
          %s278 = sshll.u32 %s271, 4
          %s279 = int_to_ptr.vmem [resolvable:$true] %s278
          %281 = dma.hbm_to_vmem [thread:$0]  %s276, 16, %s279, %s269
        $region36: #{tpu_custom_call.1} parent=19 // pred_fallthru
          _
      $region20: #{tpu_custom_call.1} parent=5 // pred_fallthru
        _
      %p282 = scmp.le.s32.totalorder 1, %s21
      %p283 = scmp.lt.s32.totalorder %s21, 3
      %p284 = pnand %p282, %p283
      %p285 = pneg %p284
      // Predicated region
      $region37: #{tpu_custom_call.1} parent=5 // pred_check
        _
      $region38: #{tpu_custom_call.1} parent=5 // pred_check_branch
        %287 = sbr.rel (%p284) target = $region40
      $region39: #{tpu_custom_call.1} parent=5 // pred_region
        %s288 = ssub.s32 %s21, 1
        // Predicated region
        $region41: #{tpu_custom_call.1} parent=39 // pred_check
          %p289 = pneg %p42
        $region42: #{tpu_custom_call.1} parent=39 // pred_check_branch
          %291 = sbr.rel (%p289) target = $region44
        $region43: #{tpu_custom_call.1} parent=39 // pred_region
          %292 = dma.done [#allocation4], 1024
        $region44: #{tpu_custom_call.1} parent=39 // pred_fallthru
          _
        %s293 = sand.u32 %s26, 1
        %s294 = scalar_lea.sflag [#allocation7], %s293
        %s295 = sand.u32 %s55, 1
        %s296 = smul.addr %s295, 384
        %s297 = scalar_lea.vmem [#allocation6], %s296
        // Predicated region
        $region45: #{tpu_custom_call.1} parent=39 // pred_check
          %p298 = pneg %p68
        $region46: #{tpu_custom_call.1} parent=39 // pred_check_branch
          %300 = sbr.rel (%p298) target = $region48
        $region47: #{tpu_custom_call.1} parent=39 // pred_region
          %301 = dma.done %s294, 6144
        $region48: #{tpu_custom_call.1} parent=39 // pred_fallthru
          _
        %s302 = sand.u32 %s26, 1
        %s303 = scalar_lea.sflag [#allocation7], %s302
        %s304 = sand.u32 %s81, 1
        %s305 = smul.addr %s304, 384
        %s306 = scalar_lea.vmem [#allocation8], %s305
        // Predicated region
        $region49: #{tpu_custom_call.1} parent=39 // pred_check
          %p307 = pneg %p94
        $region50: #{tpu_custom_call.1} parent=39 // pred_check_branch
          %309 = sbr.rel (%p307) target = $region52
        $region51: #{tpu_custom_call.1} parent=39 // pred_region
          %310 = dma.done %s303, 6144
        $region52: #{tpu_custom_call.1} parent=39 // pred_fallthru
          _
        %s311 = sand.u32 %s26, 1
        %s312 = scalar_lea.sflag [#allocation10], %s311
        %s313 = sand.u32 %s107, 1
        %s314 = smul.addr %s313, 3
        %s315 = scalar_lea.vmem [#allocation9], %s314
        // Predicated region
        $region53: #{tpu_custom_call.1} parent=39 // pred_check
          %p316 = pneg %p120
        $region54: #{tpu_custom_call.1} parent=39 // pred_check_branch
          %318 = sbr.rel (%p316) target = $region56
        $region55: #{tpu_custom_call.1} parent=39 // pred_region
          %319 = dma.done %s312, 48
        $region56: #{tpu_custom_call.1} parent=39 // pred_fallthru
          _
        %s320 = sand.u32 %s26, 1
        %s321 = scalar_lea.sflag [#allocation10], %s320
        %s322 = sand.u32 %s133, 1
        %s323 = scalar_lea.vmem [#allocation11], %s322
        // Predicated region
        $region57: #{tpu_custom_call.1} parent=39 // pred_check
          %p324 = pneg %p146
        $region58: #{tpu_custom_call.1} parent=39 // pred_check_branch
          %326 = sbr.rel (%p324) target = $region60
        $region59: #{tpu_custom_call.1} parent=39 // pred_region
          %327 = dma.done %s321, 16
        $region60: #{tpu_custom_call.1} parent=39 // pred_fallthru
          _
        %p328 = pneg %p42
        %p329 = pneg %p39
        %s330 = sand.u32 %s26, 1
        %s331 = scalar_lea.sflag [#allocation7], %s330
        %s332 = sand.u32 %s55, 1
        %s333 = smul.addr %s332, 384
        %s334 = scalar_lea.vmem [#allocation6], %s333
        %p335 = pneg %p68
        %p336 = pneg %p65
        %s337 = sand.u32 %s26, 1
        %s338 = scalar_lea.sflag [#allocation7], %s337
        %s339 = sand.u32 %s81, 1
        %s340 = smul.addr %s339, 384
        %s341 = scalar_lea.vmem [#allocation8], %s340
        %p342 = pneg %p94
        %p343 = pneg %p91
        %s344 = sand.u32 %s26, 1
        %s345 = scalar_lea.sflag [#allocation10], %s344
        %s346 = sand.u32 %s107, 1
        %s347 = smul.addr %s346, 3
        %s348 = scalar_lea.vmem [#allocation9], %s347
        %p349 = pneg %p120
        %p350 = pneg %p117
        %s351 = sand.u32 %s26, 1
        %s352 = scalar_lea.sflag [#allocation10], %s351
        %s353 = sand.u32 %s133, 1
        %s354 = scalar_lea.vmem [#allocation11], %s353
        %p355 = pneg %p146
        %p356 = pneg %p143
        %p357 = pneg %p172
        %p358 = pneg %p169
        %s359 = sand.u32 %s159, 1
        %s360 = scalar_lea.sflag [#allocation5], %s359
        %s361 = sand.u32 %s159, 1
        %s362 = smul.addr %s361, 64
        %s363 = scalar_lea.vmem [#allocation12], %s362
        %v364 = vld [vmem:[#allocation3] sm:$0xff]
        %v365 = vld [vmem:[#allocation3 + $0x8] sm:$0xff]
        %v366 = vld [vmem:[#allocation3 + $0x10] sm:$0xff]
        %v367 = vld [vmem:[#allocation3 + $0x18] sm:$0xff]
        %v368 = vld [vmem:[#allocation3 + $0x20] sm:$0xff]
        %v369 = vld [vmem:[#allocation3 + $0x28] sm:$0xff]
        %v370 = vld [vmem:[#allocation3 + $0x30] sm:$0xff]
        %v371 = vld [vmem:[#allocation3 + $0x38] sm:$0xff]
        %v372 = vld [vmem:[%s297] sm:$0xff]
        %v373 = vld [vmem:[%s297 + $0x8] sm:$0xff]
        %v374 = vld [vmem:[%s297 + $0x10] sm:$0xff]
        %v375 = vld [vmem:[%s297 + $0x18] sm:$0xff]
        %v376 = vld [vmem:[%s297 + $0x20] sm:$0xff]
        %v377 = vld [vmem:[%s297 + $0x28] sm:$0xff]
        %v378 = vld [vmem:[%s297 + $0x30] sm:$0xff]
        %v379 = vld [vmem:[%s297 + $0x38] sm:$0xff]
        %v380 = vld [vmem:[%s297 + $0x40] sm:$0xff]
        %v381 = vld [vmem:[%s297 + $0x48] sm:$0xff]
        %v382 = vld [vmem:[%s297 + $0x50] sm:$0xff]
        %v383 = vld [vmem:[%s297 + $0x58] sm:$0xff]
        %v384 = vld [vmem:[%s297 + $0x60] sm:$0xff]
        %v385 = vld [vmem:[%s297 + $0x68] sm:$0xff]
        %v386 = vld [vmem:[%s297 + $0x70] sm:$0xff]
        %v387 = vld [vmem:[%s297 + $0x78] sm:$0xff]
        %v388 = vld [vmem:[%s297 + $0x80] sm:$0xff]
        %v389 = vld [vmem:[%s297 + $0x88] sm:$0xff]
        %v390 = vld [vmem:[%s297 + $0x90] sm:$0xff]
        %v391 = vld [vmem:[%s297 + $0x98] sm:$0xff]
        %v392 = vld [vmem:[%s297 + $0xa0] sm:$0xff]
        %v393 = vld [vmem:[%s297 + $0xa8] sm:$0xff]
        %v394 = vld [vmem:[%s297 + $0xb0] sm:$0xff]
        %v395 = vld [vmem:[%s297 + $0xb8] sm:$0xff]
        %v396 = vld [vmem:[%s297 + $0xc0] sm:$0xff]
        %v397 = vld [vmem:[%s297 + $0xc8] sm:$0xff]
        %v398 = vld [vmem:[%s297 + $0xd0] sm:$0xff]
        %v399 = vld [vmem:[%s297 + $0xd8] sm:$0xff]
        %v400 = vld [vmem:[%s297 + $0xe0] sm:$0xff]
        %v401 = vld [vmem:[%s297 + $0xe8] sm:$0xff]
        %v402 = vld [vmem:[%s297 + $0xf0] sm:$0xff]
        %v403 = vld [vmem:[%s297 + $0xf8] sm:$0xff]
        %v404 = vld [vmem:[%s297 + $0x100] sm:$0xff]
        %v405 = vld [vmem:[%s297 + $0x108] sm:$0xff]
        %v406 = vld [vmem:[%s297 + $0x110] sm:$0xff]
        %v407 = vld [vmem:[%s297 + $0x118] sm:$0xff]
        %v408 = vld [vmem:[%s297 + $0x120] sm:$0xff]
        %v409 = vld [vmem:[%s297 + $0x128] sm:$0xff]
        %v410 = vld [vmem:[%s297 + $0x130] sm:$0xff]
        %v411 = vld [vmem:[%s297 + $0x138] sm:$0xff]
        %v412 = vld [vmem:[%s297 + $0x140] sm:$0xff]
        %v413 = vld [vmem:[%s297 + $0x148] sm:$0xff]
        %v414 = vld [vmem:[%s297 + $0x150] sm:$0xff]
        %v415 = vld [vmem:[%s297 + $0x158] sm:$0xff]
        %v416 = vld [vmem:[%s297 + $0x160] sm:$0xff]
        %v417 = vld [vmem:[%s297 + $0x168] sm:$0xff]
        %v418 = vld [vmem:[%s297 + $0x170] sm:$0xff]
        %v419 = vld [vmem:[%s297 + $0x178] sm:$0xff]
        %v420 = vld [vmem:[%s315] sm:$0x7]
        %v422 = vlaneseq
        %v423 = vshrl.u32 %v422, 7
        %v424 = vsub.s32 0, %v423
        %v425 = vrot.slane %v420, %v424
        %v426 = vlaneseq
        %v427 = vshrl.u32 %v426, 7
        %v428 = vsub.s32 1, %v427
        %v429 = vrot.slane %v420, %v428
        %v430 = vlaneseq
        %v431 = vshrl.u32 %v430, 7
        %v432 = vsub.s32 2, %v431
        %v433 = vrot.slane %v420, %v432
        %437 = vmatprep.subr.mxu0 %v373
        %438 = vmatpush1.msra.mxu0 %v372
        %439 = vmatprep.subr.mxu0 %v376
        %440 = vmatpush1.msra.mxu0 %v375
        %441 = vmatprep.subr.mxu0 %v379
        %442 = vmatpush1.msra.mxu0 %v378
        %443 = vmatprep.subr.mxu0 %v382
        %444 = vmatpush1.msra.mxu0 %v381
        %445 = vmatprep.subr.mxu0 %v385
        %446 = vmatpush1.msra.mxu0 %v384
        %447 = vmatprep.subr.mxu0 %v388
        %448 = vmatpush1.msra.mxu0 %v387
        %449 = vmatprep.subr.mxu0 %v391
        %450 = vmatpush1.msra.mxu0 %v390
        %451 = vmatprep.subr.mxu0 %v394
        %452 = vmatpush1.msra.mxu0 %v393
        %453 = vmatprep.subr.mxu0 %v397
        %454 = vmatpush1.msra.mxu0 %v396
        %455 = vmatprep.subr.mxu0 %v400
        %456 = vmatpush1.msra.mxu0 %v399
        %457 = vmatprep.subr.mxu0 %v403
        %458 = vmatpush1.msra.mxu0 %v402
        %459 = vmatprep.subr.mxu0 %v406
        %460 = vmatpush1.msra.mxu0 %v405
        %461 = vmatprep.subr.mxu0 %v409
        %462 = vmatpush1.msra.mxu0 %v408
        %463 = vmatprep.subr.mxu0 %v412
        %464 = vmatpush1.msra.mxu0 %v411
        %465 = vmatprep.subr.mxu0 %v415
        %466 = vmatpush1.msra.mxu0 %v414
        %467 = vmatprep.subr.mxu0 %v418
        %468 = vmatpush1.msra.mxu0 %v417
        %469 = vmatprep.subr.mxu0 0.0
        %470 = vmatpush1.msra.mxu0 0.0
        %471 = vmatprep.subr.mxu0 0.0
        %472 = vmatpush1.msra.mxu0 0.0
        %473 = vmatprep.subr.mxu0 0.0
        %474 = vmatpush1.msra.mxu0 0.0
        %475 = vmatprep.subr.mxu0 0.0
        %476 = vmatpush1.msra.mxu0 0.0
        %477 = vmatprep.subr.mxu0 0.0
        %478 = vmatpush1.msra.mxu0 0.0
        %479 = vmatprep.subr.mxu0 0.0
        %480 = vmatpush1.msra.mxu0 0.0
        %481 = vmatprep.subr.mxu0 0.0
        %482 = vmatpush1.msra.mxu0 0.0
        %483 = vmatprep.subr.mxu0 0.0
        %484 = vmatpush1.msra.mxu0 0.0
        %485 = vmatprep.subr.mxu0 0.0
        %486 = vmatpush1.msra.mxu0 0.0
        %487 = vmatprep.subr.mxu0 0.0
        %488 = vmatpush1.msra.mxu0 0.0
        %489 = vmatprep.subr.mxu0 0.0
        %490 = vmatpush1.msra.mxu0 0.0
        %491 = vmatprep.subr.mxu0 0.0
        %492 = vmatpush1.msra.mxu0 0.0
        %493 = vmatprep.subr.mxu0 0.0
        %494 = vmatpush1.msra.mxu0 0.0
        %495 = vmatprep.subr.mxu0 0.0
        %496 = vmatpush1.msra.mxu0 0.0
        %497 = vmatprep.subr.mxu0 0.0
        %498 = vmatpush1.msra.mxu0 0.0
        %499 = vmatprep.subr.mxu0 0.0
        %500 = vmatpush1.msra.mxu0 0.0
        %501 = vmatprep.mubr.f32.mxu0 0.0
        %502 = vmatmul.mubr.f32.gmra.mrb[0].mxu0 %v364
        %v503 = vpop.f32.mrb[0].mxu0
        %v504 = vadd.f32 %v425, %v503
        %v505 = vpop.f32.mrb[0].mxu0
        %v506 = vadd.f32 %v429, %v505
        %507 = vmatprep.mubr.f32.mxu0 0.0
        %508 = vmatmul.mubr.f32.gmra.mrb[0].mxu0 %v365
        %v509 = vpop.f32.mrb[0].mxu0
        %v510 = vadd.f32 %v425, %v509
        %v511 = vpop.f32.mrb[0].mxu0
        %v512 = vadd.f32 %v429, %v511
        %513 = vmatprep.mubr.f32.mxu0 0.0
        %514 = vmatmul.mubr.f32.gmra.mrb[0].mxu0 %v366
        %v515 = vpop.f32.mrb[0].mxu0
        %v516 = vadd.f32 %v425, %v515
        %v517 = vpop.f32.mrb[0].mxu0
        %v518 = vadd.f32 %v429, %v517
        %519 = vmatprep.mubr.f32.mxu0 0.0
        %520 = vmatmul.mubr.f32.gmra.mrb[0].mxu0 %v367
        %v521 = vpop.f32.mrb[0].mxu0
        %v522 = vadd.f32 %v425, %v521
        %v523 = vpop.f32.mrb[0].mxu0
        %v524 = vadd.f32 %v429, %v523
        %525 = vmatprep.mubr.f32.mxu0 0.0
        %526 = vmatmul.mubr.f32.gmra.mrb[0].mxu0 %v368
        %v527 = vpop.f32.mrb[0].mxu0
        %v528 = vadd.f32 %v425, %v527
        %v529 = vpop.f32.mrb[0].mxu0
        %v530 = vadd.f32 %v429, %v529
        %531 = vmatprep.mubr.f32.mxu0 0.0
        %532 = vmatmul.mubr.f32.gmra.mrb[0].mxu0 %v369
        %v533 = vpop.f32.mrb[0].mxu0
        %v534 = vadd.f32 %v425, %v533
        %v535 = vpop.f32.mrb[0].mxu0
        %v536 = vadd.f32 %v429, %v535
        %537 = vmatprep.mubr.f32.mxu0 0.0
        %538 = vmatmul.mubr.f32.gmra.mrb[0].mxu0 %v370
        %v539 = vpop.f32.mrb[0].mxu0
        %v540 = vadd.f32 %v425, %v539
        %v541 = vpop.f32.mrb[0].mxu0
        %v542 = vadd.f32 %v429, %v541
        %543 = vmatprep.mubr.f32.mxu0 0.0
        %544 = vmatmul.mubr.f32.gmra.mrb[0].mxu0 %v371
        %v545 = vpop.f32.mrb[0].mxu0
        %v546 = vadd.f32 %v425, %v545
        %v547 = vpop.f32.mrb[0].mxu0
        %v548 = vadd.f32 %v429, %v547
        %549 = vdwg.mxu0
        %550 = vmatprep.subr.mxu0 0.0
        %551 = vmatpush1.msra.mxu0 %v374
        %552 = vmatprep.subr.mxu0 0.0
        %553 = vmatpush1.msra.mxu0 %v377
        %554 = vmatprep.subr.mxu0 0.0
        %555 = vmatpush1.msra.mxu0 %v380
        %556 = vmatprep.subr.mxu0 0.0
        %557 = vmatpush1.msra.mxu0 %v383
        %558 = vmatprep.subr.mxu0 0.0
        %559 = vmatpush1.msra.mxu0 %v386
        %560 = vmatprep.subr.mxu0 0.0
        %561 = vmatpush1.msra.mxu0 %v389
        %562 = vmatprep.subr.mxu0 0.0
        %563 = vmatpush1.msra.mxu0 %v392
        %564 = vmatprep.subr.mxu0 0.0
        %565 = vmatpush1.msra.mxu0 %v395
        %566 = vmatprep.subr.mxu0 0.0
        %567 = vmatpush1.msra.mxu0 %v398
        %568 = vmatprep.subr.mxu0 0.0
        %569 = vmatpush1.msra.mxu0 %v401
        %570 = vmatprep.subr.mxu0 0.0
        %571 = vmatpush1.msra.mxu0 %v404
        %572 = vmatprep.subr.mxu0 0.0
        %573 = vmatpush1.msra.mxu0 %v407
        %574 = vmatprep.subr.mxu0 0.0
        %575 = vmatpush1.msra.mxu0 %v410
        %576 = vmatprep.subr.mxu0 0.0
        %577 = vmatpush1.msra.mxu0 %v413
        %578 = vmatprep.subr.mxu0 0.0
        %579 = vmatpush1.msra.mxu0 %v416
        %580 = vmatprep.subr.mxu0 0.0
        %581 = vmatpush1.msra.mxu0 %v419
        %582 = vmatprep.subr.mxu0 0.0
        %583 = vmatpush1.msra.mxu0 0.0
        %584 = vmatprep.subr.mxu0 0.0
        %585 = vmatpush1.msra.mxu0 0.0
        %586 = vmatprep.subr.mxu0 0.0
        %587 = vmatpush1.msra.mxu0 0.0
        %588 = vmatprep.subr.mxu0 0.0
        %589 = vmatpush1.msra.mxu0 0.0
        %590 = vmatprep.subr.mxu0 0.0
        %591 = vmatpush1.msra.mxu0 0.0
        %592 = vmatprep.subr.mxu0 0.0
        %593 = vmatpush1.msra.mxu0 0.0
        %594 = vmatprep.subr.mxu0 0.0
        %595 = vmatpush1.msra.mxu0 0.0
        %596 = vmatprep.subr.mxu0 0.0
        %597 = vmatpush1.msra.mxu0 0.0
        %598 = vmatprep.subr.mxu0 0.0
        %599 = vmatpush1.msra.mxu0 0.0
        %600 = vmatprep.subr.mxu0 0.0
        %601 = vmatpush1.msra.mxu0 0.0
        %602 = vmatprep.subr.mxu0 0.0
        %603 = vmatpush1.msra.mxu0 0.0
        %604 = vmatprep.subr.mxu0 0.0
        %605 = vmatpush1.msra.mxu0 0.0
        %606 = vmatprep.subr.mxu0 0.0
        %607 = vmatpush1.msra.mxu0 0.0
        %608 = vmatprep.subr.mxu0 0.0
        %609 = vmatpush1.msra.mxu0 0.0
        %610 = vmatprep.subr.mxu0 0.0
        %611 = vmatpush1.msra.mxu0 0.0
        %612 = vmatprep.subr.mxu0 0.0
        %613 = vmatpush1.msra.mxu0 0.0
        %614 = vmatprep.mubr.f32.mxu0 0.0
        %615 = vmatmul.mubr.f32.gmra.mrb[0].mxu0 %v364
        %v616 = vpop.f32.mrb[0].mxu0
        %v617 = vadd.f32 %v433, %v616
        %v618 = vpop.f32.mrb[0].mxu0
        %619 = vmatprep.mubr.f32.mxu0 0.0
        %620 = vmatmul.mubr.f32.gmra.mrb[0].mxu0 %v365
        %v621 = vpop.f32.mrb[0].mxu0
        %v622 = vadd.f32 %v433, %v621
        %v623 = vpop.f32.mrb[0].mxu0
        %624 = vmatprep.mubr.f32.mxu0 0.0
        %625 = vmatmul.mubr.f32.gmra.mrb[0].mxu0 %v366
        %v626 = vpop.f32.mrb[0].mxu0
        %v627 = vadd.f32 %v433, %v626
        %v628 = vpop.f32.mrb[0].mxu0
        %629 = vmatprep.mubr.f32.mxu0 0.0
        %630 = vmatmul.mubr.f32.gmra.mrb[0].mxu0 %v367
        %v631 = vpop.f32.mrb[0].mxu0
        %v632 = vadd.f32 %v433, %v631
        %v633 = vpop.f32.mrb[0].mxu0
        %634 = vmatprep.mubr.f32.mxu0 0.0
        %635 = vmatmul.mubr.f32.gmra.mrb[0].mxu0 %v368
        %v636 = vpop.f32.mrb[0].mxu0
        %v637 = vadd.f32 %v433, %v636
        %v638 = vpop.f32.mrb[0].mxu0
        %639 = vmatprep.mubr.f32.mxu0 0.0
        %640 = vmatmul.mubr.f32.gmra.mrb[0].mxu0 %v369
        %v641 = vpop.f32.mrb[0].mxu0
        %v642 = vadd.f32 %v433, %v641
        %v643 = vpop.f32.mrb[0].mxu0
        %644 = vmatprep.mubr.f32.mxu0 0.0
        %645 = vmatmul.mubr.f32.gmra.mrb[0].mxu0 %v370
        %v646 = vpop.f32.mrb[0].mxu0
        %v647 = vadd.f32 %v433, %v646
        %v648 = vpop.f32.mrb[0].mxu0
        %649 = vmatprep.mubr.f32.mxu0 0.0
        %650 = vmatmul.mubr.f32.gmra.mrb[0].mxu0 %v371
        %v651 = vpop.f32.mrb[0].mxu0
        %v652 = vadd.f32 %v433, %v651
        %v653 = vpop.f32.mrb[0].mxu0
        %654 = vdwg.mxu0
        %655 = vst [vmem:[#allocation2] sm:$0xff] %v504
        %656 = vst [vmem:[#allocation2 + $0x8] sm:$0xff] %v506
        %657 = vst [vmem:[#allocation2 + $0x10] sm:$0xff] %v617
        %658 = vst [vmem:[#allocation2 + $0x18] sm:$0xff] %v510
        %659 = vst [vmem:[#allocation2 + $0x20] sm:$0xff] %v512
        %660 = vst [vmem:[#allocation2 + $0x28] sm:$0xff] %v622
        %661 = vst [vmem:[#allocation2 + $0x30] sm:$0xff] %v516
        %662 = vst [vmem:[#allocation2 + $0x38] sm:$0xff] %v518
        %663 = vst [vmem:[#allocation2 + $0x40] sm:$0xff] %v627
        %664 = vst [vmem:[#allocation2 + $0x48] sm:$0xff] %v522
        %665 = vst [vmem:[#allocation2 + $0x50] sm:$0xff] %v524
        %666 = vst [vmem:[#allocation2 + $0x58] sm:$0xff] %v632
        %667 = vst [vmem:[#allocation2 + $0x60] sm:$0xff] %v528
        %668 = vst [vmem:[#allocation2 + $0x68] sm:$0xff] %v530
        %669 = vst [vmem:[#allocation2 + $0x70] sm:$0xff] %v637
        %670 = vst [vmem:[#allocation2 + $0x78] sm:$0xff] %v534
        %671 = vst [vmem:[#allocation2 + $0x80] sm:$0xff] %v536
        %672 = vst [vmem:[#allocation2 + $0x88] sm:$0xff] %v642
        %673 = vst [vmem:[#allocation2 + $0x90] sm:$0xff] %v540
        %674 = vst [vmem:[#allocation2 + $0x98] sm:$0xff] %v542
        %675 = vst [vmem:[#allocation2 + $0xa0] sm:$0xff] %v647
        %676 = vst [vmem:[#allocation2 + $0xa8] sm:$0xff] %v546
        %677 = vst [vmem:[#allocation2 + $0xb0] sm:$0xff] %v548
        %678 = vst [vmem:[#allocation2 + $0xb8] sm:$0xff] %v652
        %v679 = vld [vmem:[%s306] sm:$0xff]
        %v680 = vld [vmem:[%s306 + $0x8] sm:$0xff]
        %v681 = vld [vmem:[%s306 + $0x10] sm:$0xff]
        %v682 = vld [vmem:[%s306 + $0x18] sm:$0xff]
        %v683 = vld [vmem:[%s306 + $0x20] sm:$0xff]
        %v684 = vld [vmem:[%s306 + $0x28] sm:$0xff]
        %v685 = vld [vmem:[%s306 + $0x30] sm:$0xff]
        %v686 = vld [vmem:[%s306 + $0x38] sm:$0xff]
        %v687 = vld [vmem:[%s306 + $0x40] sm:$0xff]
        %v688 = vld [vmem:[%s306 + $0x48] sm:$0xff]
        %v689 = vld [vmem:[%s306 + $0x50] sm:$0xff]
        %v690 = vld [vmem:[%s306 + $0x58] sm:$0xff]
        %v691 = vld [vmem:[%s306 + $0x60] sm:$0xff]
        %v692 = vld [vmem:[%s306 + $0x68] sm:$0xff]
        %v693 = vld [vmem:[%s306 + $0x70] sm:$0xff]
        %v694 = vld [vmem:[%s306 + $0x78] sm:$0xff]
        %v695 = vld [vmem:[%s306 + $0x80] sm:$0xff]
        %v696 = vld [vmem:[%s306 + $0x88] sm:$0xff]
        %v697 = vld [vmem:[%s306 + $0x90] sm:$0xff]
        %v698 = vld [vmem:[%s306 + $0x98] sm:$0xff]
        %v699 = vld [vmem:[%s306 + $0xa0] sm:$0xff]
        %v700 = vld [vmem:[%s306 + $0xa8] sm:$0xff]
        %v701 = vld [vmem:[%s306 + $0xb0] sm:$0xff]
        %v702 = vld [vmem:[%s306 + $0xb8] sm:$0xff]
        %v703 = vld [vmem:[%s306 + $0xc0] sm:$0xff]
        %v704 = vld [vmem:[%s306 + $0xc8] sm:$0xff]
        %v705 = vld [vmem:[%s306 + $0xd0] sm:$0xff]
        %v706 = vld [vmem:[%s306 + $0xd8] sm:$0xff]
        %v707 = vld [vmem:[%s306 + $0xe0] sm:$0xff]
        %v708 = vld [vmem:[%s306 + $0xe8] sm:$0xff]
        %v709 = vld [vmem:[%s306 + $0xf0] sm:$0xff]
        %v710 = vld [vmem:[%s306 + $0xf8] sm:$0xff]
        %v711 = vld [vmem:[%s306 + $0x100] sm:$0xff]
        %v712 = vld [vmem:[%s306 + $0x108] sm:$0xff]
        %v713 = vld [vmem:[%s306 + $0x110] sm:$0xff]
        %v714 = vld [vmem:[%s306 + $0x118] sm:$0xff]
        %v715 = vld [vmem:[%s306 + $0x120] sm:$0xff]
        %v716 = vld [vmem:[%s306 + $0x128] sm:$0xff]
        %v717 = vld [vmem:[%s306 + $0x130] sm:$0xff]
        %v718 = vld [vmem:[%s306 + $0x138] sm:$0xff]
        %v719 = vld [vmem:[%s306 + $0x140] sm:$0xff]
        %v720 = vld [vmem:[%s306 + $0x148] sm:$0xff]
        %v721 = vld [vmem:[%s306 + $0x150] sm:$0xff]
        %v722 = vld [vmem:[%s306 + $0x158] sm:$0xff]
        %v723 = vld [vmem:[%s306 + $0x160] sm:$0xff]
        %v724 = vld [vmem:[%s306 + $0x168] sm:$0xff]
        %v725 = vld [vmem:[%s306 + $0x170] sm:$0xff]
        %v726 = vld [vmem:[%s306 + $0x178] sm:$0xff]
        %v727 = vld [vmem:[%s323] sm:$0x1]
        %v729 = vlaneseq
        %v730 = vshrl.u32 %v729, 7
        %v731 = vsub.s32 0, %v730
        %v732 = vrot.slane %v727, %v731
        %p734 = scmp.eq.s32.totalorder %s26, 0
        %s735 = scalar_select %p734, 0, 7
        %s736 = smul.u32 %s735, 8
        %s737 = sshra.s32 %s736, 3
        %s738 = sand.u32 %s736, 7
        %s739 = smul.u32 %s737, 3
        %s740 = smul.addr %s739, 8
        %s741 = scalar_lea.vmem [#allocation2], %s740
        %v742 = vld [vmem:[%s741] sm:$0xff]
        %v743 = vld [vmem:[%s741 + $0x8] sm:$0xff]
        %v744 = vld [vmem:[%s741 + $0x10] sm:$0xff]
        %745 = vmatprep.subr.mxu0 %v680
        %746 = vmatpush1.msra.mxu0 %v679
        %747 = vmatprep.subr.mxu0 %v683
        %748 = vmatpush1.msra.mxu0 %v682
        %749 = vmatprep.subr.mxu0 %v686
        %750 = vmatpush1.msra.mxu0 %v685
        %751 = vmatprep.subr.mxu0 %v689
        %752 = vmatpush1.msra.mxu0 %v688
        %753 = vmatprep.subr.mxu0 %v692
        %754 = vmatpush1.msra.mxu0 %v691
        %755 = vmatprep.subr.mxu0 %v695
        %756 = vmatpush1.msra.mxu0 %v694
        %757 = vmatprep.subr.mxu0 %v698
        %758 = vmatpush1.msra.mxu0 %v697
        %759 = vmatprep.subr.mxu0 %v701
        %760 = vmatpush1.msra.mxu0 %v700
        %761 = vmatprep.subr.mxu0 %v704
        %762 = vmatpush1.msra.mxu0 %v703
        %763 = vmatprep.subr.mxu0 %v707
        %764 = vmatpush1.msra.mxu0 %v706
        %765 = vmatprep.subr.mxu0 %v710
        %766 = vmatpush1.msra.mxu0 %v709
        %767 = vmatprep.subr.mxu0 %v713
        %768 = vmatpush1.msra.mxu0 %v712
        %769 = vmatprep.subr.mxu0 %v716
        %770 = vmatpush1.msra.mxu0 %v715
        %771 = vmatprep.subr.mxu0 %v719
        %772 = vmatpush1.msra.mxu0 %v718
        %773 = vmatprep.subr.mxu0 %v722
        %774 = vmatpush1.msra.mxu0 %v721
        %775 = vmatprep.subr.mxu0 %v725
        %776 = vmatpush1.msra.mxu0 %v724
        %777 = vmatprep.subr.mxu0 0.0
        %778 = vmatpush1.msra.mxu0 0.0
        %779 = vmatprep.subr.mxu0 0.0
        %780 = vmatpush1.msra.mxu0 0.0
        %781 = vmatprep.subr.mxu0 0.0
        %782 = vmatpush1.msra.mxu0 0.0
        %783 = vmatprep.subr.mxu0 0.0
        %784 = vmatpush1.msra.mxu0 0.0
        %785 = vmatprep.subr.mxu0 0.0
        %786 = vmatpush1.msra.mxu0 0.0
        %787 = vmatprep.subr.mxu0 0.0
        %788 = vmatpush1.msra.mxu0 0.0
        %789 = vmatprep.subr.mxu0 0.0
        %790 = vmatpush1.msra.mxu0 0.0
        %791 = vmatprep.subr.mxu0 0.0
        %792 = vmatpush1.msra.mxu0 0.0
        %793 = vmatprep.subr.mxu0 0.0
        %794 = vmatpush1.msra.mxu0 0.0
        %795 = vmatprep.subr.mxu0 0.0
        %796 = vmatpush1.msra.mxu0 0.0
        %797 = vmatprep.subr.mxu0 0.0
        %798 = vmatpush1.msra.mxu0 0.0
        %799 = vmatprep.subr.mxu0 0.0
        %800 = vmatpush1.msra.mxu0 0.0
        %801 = vmatprep.subr.mxu0 0.0
        %802 = vmatpush1.msra.mxu0 0.0
        %803 = vmatprep.subr.mxu0 0.0
        %804 = vmatpush1.msra.mxu0 0.0
        %805 = vmatprep.subr.mxu0 0.0
        %806 = vmatpush1.msra.mxu0 0.0
        %807 = vmatprep.subr.mxu0 0.0
        %808 = vmatpush1.msra.mxu0 0.0
        %809 = vmatprep.mubr.f32.mxu0 0.0
        %810 = vmatmul.mubr.f32.gmra.mrb[0].mxu0 0.0
        %v811 = vpop.f32.mrb[0].mxu0
        %v812 = vadd.f32 0.0, %v811
        %v813 = vpop.f32.mrb[0].mxu0
        %v814 = vadd.f32 0.0, %v813
        %815 = vdwg.mxu0
        %816 = vmatprep.subr.mxu0 0.0
        %817 = vmatpush1.msra.mxu0 %v681
        %818 = vmatprep.subr.mxu0 0.0
        %819 = vmatpush1.msra.mxu0 %v684
        %820 = vmatprep.subr.mxu0 0.0
        %821 = vmatpush1.msra.mxu0 %v687
        %822 = vmatprep.subr.mxu0 0.0
        %823 = vmatpush1.msra.mxu0 %v690
        %824 = vmatprep.subr.mxu0 0.0
        %825 = vmatpush1.msra.mxu0 %v693
        %826 = vmatprep.subr.mxu0 0.0
        %827 = vmatpush1.msra.mxu0 %v696
        %828 = vmatprep.subr.mxu0 0.0
        %829 = vmatpush1.msra.mxu0 %v699
        %830 = vmatprep.subr.mxu0 0.0
        %831 = vmatpush1.msra.mxu0 %v702
        %832 = vmatprep.subr.mxu0 0.0
        %833 = vmatpush1.msra.mxu0 %v705
        %834 = vmatprep.subr.mxu0 0.0
        %835 = vmatpush1.msra.mxu0 %v708
        %836 = vmatprep.subr.mxu0 0.0
        %837 = vmatpush1.msra.mxu0 %v711
        %838 = vmatprep.subr.mxu0 0.0
        %839 = vmatpush1.msra.mxu0 %v714
        %840 = vmatprep.subr.mxu0 0.0
        %841 = vmatpush1.msra.mxu0 %v717
        %842 = vmatprep.subr.mxu0 0.0
        %843 = vmatpush1.msra.mxu0 %v720
        %844 = vmatprep.subr.mxu0 0.0
        %845 = vmatpush1.msra.mxu0 %v723
        %846 = vmatprep.subr.mxu0 0.0
        %847 = vmatpush1.msra.mxu0 %v726
        %848 = vmatprep.subr.mxu0 0.0
        %849 = vmatpush1.msra.mxu0 0.0
        %850 = vmatprep.subr.mxu0 0.0
        %851 = vmatpush1.msra.mxu0 0.0
        %852 = vmatprep.subr.mxu0 0.0
        %853 = vmatpush1.msra.mxu0 0.0
        %854 = vmatprep.subr.mxu0 0.0
        %855 = vmatpush1.msra.mxu0 0.0
        %856 = vmatprep.subr.mxu0 0.0
        %857 = vmatpush1.msra.mxu0 0.0
        %858 = vmatprep.subr.mxu0 0.0
        %859 = vmatpush1.msra.mxu0 0.0
        %860 = vmatprep.subr.mxu0 0.0
        %861 = vmatpush1.msra.mxu0 0.0
        %862 = vmatprep.subr.mxu0 0.0
        %863 = vmatpush1.msra.mxu0 0.0
        %864 = vmatprep.subr.mxu0 0.0
        %865 = vmatpush1.msra.mxu0 0.0
        %866 = vmatprep.subr.mxu0 0.0
        %867 = vmatpush1.msra.mxu0 0.0
        %868 = vmatprep.subr.mxu0 0.0
        %869 = vmatpush1.msra.mxu0 0.0
        %870 = vmatprep.subr.mxu0 0.0
        %871 = vmatpush1.msra.mxu0 0.0
        %872 = vmatprep.subr.mxu0 0.0
        %873 = vmatpush1.msra.mxu0 0.0
        %874 = vmatprep.subr.mxu0 0.0
        %875 = vmatpush1.msra.mxu0 0.0
        %876 = vmatprep.subr.mxu0 0.0
        %877 = vmatpush1.msra.mxu0 0.0
        %878 = vmatprep.subr.mxu0 0.0
        %879 = vmatpush1.msra.mxu0 0.0
        %880 = vmatprep.mubr.f32.mxu0 0.0
        %881 = vmatmul.mubr.f32.gmra.mrb[0].mxu0 0.0
        %v882 = vpop.f32.mrb[0].mxu0
        %v883 = vadd.f32 0.0, %v882
        %v884 = vpop.f32.mrb[0].mxu0
        %885 = vdwg.mxu0
        %v886 = vadd.f32 %v742, %v812
        %v887 = vxor.u32 %v886, 2147483648
        %v888 = vmul.f32 %v887, 1.442695
        %v889 = vpow.pop %v888
        %v890 = vadd.f32 %v889, 1.0
        %v891 = vrcp.pop %v890
        %v892 = vmul.f32 1.0, %v891
        %v893 = vadd.f32 %v743, %v814
        %v894 = vxor.u32 %v893, 2147483648
        %v895 = vmul.f32 %v894, 1.442695
        %v896 = vpow.pop %v895
        %v897 = vadd.f32 %v896, 1.0
        %v898 = vrcp.pop %v897
        %v899 = vmul.f32 1.0, %v898
        %v900 = vadd.f32 %v883, %v732
        %v901 = vmul.f32 %v892, %v900
        %v902 = vadd.f32 %v744, %v901
        %v903 = vtanh.pop %v902
        %v904 = vsub.f32 0.0, %v903
        %v905 = vmul.f32 %v899, %v904
        %v906 = vadd.f32 %v903, %v905
        %s907 = scalar_lea.vmem %s363, %s736 [#allocation12]
        %908 = vst [vmem:[%s907] sm:$0xff] %v906
        %s909 = scalar_select %p734, 1, 6
        %s910 = smul.u32 %s909, 8
        %s911 = sshra.s32 %s910, 3
        %s912 = sand.u32 %s910, 7
        %s913 = smul.u32 %s911, 3
        %s914 = smul.addr %s913, 8
        %s915 = scalar_lea.vmem [#allocation2], %s914
        %v916 = vld [vmem:[%s915] sm:$0xff]
        %v917 = vld [vmem:[%s915 + $0x8] sm:$0xff]
        %v918 = vld [vmem:[%s915 + $0x10] sm:$0xff]
        %919 = vmatprep.subr.mxu0 %v680
        %920 = vmatpush1.msra.mxu0 %v679
        %921 = vmatprep.subr.mxu0 %v683
        %922 = vmatpush1.msra.mxu0 %v682
        %923 = vmatprep.subr.mxu0 %v686
        %924 = vmatpush1.msra.mxu0 %v685
        %925 = vmatprep.subr.mxu0 %v689
        %926 = vmatpush1.msra.mxu0 %v688
        %927 = vmatprep.subr.mxu0 %v692
        %928 = vmatpush1.msra.mxu0 %v691
        %929 = vmatprep.subr.mxu0 %v695
        %930 = vmatpush1.msra.mxu0 %v694
        %931 = vmatprep.subr.mxu0 %v698
        %932 = vmatpush1.msra.mxu0 %v697
        %933 = vmatprep.subr.mxu0 %v701
        %934 = vmatpush1.msra.mxu0 %v700
        %935 = vmatprep.subr.mxu0 %v704
        %936 = vmatpush1.msra.mxu0 %v703
        %937 = vmatprep.subr.mxu0 %v707
        %938 = vmatpush1.msra.mxu0 %v706
        %939 = vmatprep.subr.mxu0 %v710
        %940 = vmatpush1.msra.mxu0 %v709
        %941 = vmatprep.subr.mxu0 %v713
        %942 = vmatpush1.msra.mxu0 %v712
        %943 = vmatprep.subr.mxu0 %v716
        %944 = vmatpush1.msra.mxu0 %v715
        %945 = vmatprep.subr.mxu0 %v719
        %946 = vmatpush1.msra.mxu0 %v718
        %947 = vmatprep.subr.mxu0 %v722
        %948 = vmatpush1.msra.mxu0 %v721
        %949 = vmatprep.subr.mxu0 %v725
        %950 = vmatpush1.msra.mxu0 %v724
        %951 = vmatprep.subr.mxu0 0.0
        %952 = vmatpush1.msra.mxu0 0.0
        %953 = vmatprep.subr.mxu0 0.0
        %954 = vmatpush1.msra.mxu0 0.0
        %955 = vmatprep.subr.mxu0 0.0
        %956 = vmatpush1.msra.mxu0 0.0
        %957 = vmatprep.subr.mxu0 0.0
        %958 = vmatpush1.msra.mxu0 0.0
        %959 = vmatprep.subr.mxu0 0.0
        %960 = vmatpush1.msra.mxu0 0.0
        %961 = vmatprep.subr.mxu0 0.0
        %962 = vmatpush1.msra.mxu0 0.0
        %963 = vmatprep.subr.mxu0 0.0
        %964 = vmatpush1.msra.mxu0 0.0
        %965 = vmatprep.subr.mxu0 0.0
        %966 = vmatpush1.msra.mxu0 0.0
        %967 = vmatprep.subr.mxu0 0.0
        %968 = vmatpush1.msra.mxu0 0.0
        %969 = vmatprep.subr.mxu0 0.0
        %970 = vmatpush1.msra.mxu0 0.0
        %971 = vmatprep.subr.mxu0 0.0
        %972 = vmatpush1.msra.mxu0 0.0
        %973 = vmatprep.subr.mxu0 0.0
        %974 = vmatpush1.msra.mxu0 0.0
        %975 = vmatprep.subr.mxu0 0.0
        %976 = vmatpush1.msra.mxu0 0.0
        %977 = vmatprep.subr.mxu0 0.0
        %978 = vmatpush1.msra.mxu0 0.0
        %979 = vmatprep.subr.mxu0 0.0
        %980 = vmatpush1.msra.mxu0 0.0
        %981 = vmatprep.subr.mxu0 0.0
        %982 = vmatpush1.msra.mxu0 0.0
        %983 = vmatprep.mubr.f32.mxu0 0.0
        %984 = vmatmul.mubr.f32.gmra.mrb[0].mxu0 %v906
        %v985 = vpop.f32.mrb[0].mxu0
        %v986 = vadd.f32 0.0, %v985
        %v987 = vpop.f32.mrb[0].mxu0
        %v988 = vadd.f32 0.0, %v987
        %989 = vdwg.mxu0
        %990 = vmatprep.subr.mxu0 0.0
        %991 = vmatpush1.msra.mxu0 %v681
        %992 = vmatprep.subr.mxu0 0.0
        %993 = vmatpush1.msra.mxu0 %v684
        %994 = vmatprep.subr.mxu0 0.0
        %995 = vmatpush1.msra.mxu0 %v687
        %996 = vmatprep.subr.mxu0 0.0
        %997 = vmatpush1.msra.mxu0 %v690
        %998 = vmatprep.subr.mxu0 0.0
        %999 = vmatpush1.msra.mxu0 %v693
        %1000 = vmatprep.subr.mxu0 0.0
        %1001 = vmatpush1.msra.mxu0 %v696
        %1002 = vmatprep.subr.mxu0 0.0
        %1003 = vmatpush1.msra.mxu0 %v699
        %1004 = vmatprep.subr.mxu0 0.0
        %1005 = vmatpush1.msra.mxu0 %v702
        %1006 = vmatprep.subr.mxu0 0.0
        %1007 = vmatpush1.msra.mxu0 %v705
        %1008 = vmatprep.subr.mxu0 0.0
        %1009 = vmatpush1.msra.mxu0 %v708
        %1010 = vmatprep.subr.mxu0 0.0
        %1011 = vmatpush1.msra.mxu0 %v711
        %1012 = vmatprep.subr.mxu0 0.0
        %1013 = vmatpush1.msra.mxu0 %v714
        %1014 = vmatprep.subr.mxu0 0.0
        %1015 = vmatpush1.msra.mxu0 %v717
        %1016 = vmatprep.subr.mxu0 0.0
        %1017 = vmatpush1.msra.mxu0 %v720
        %1018 = vmatprep.subr.mxu0 0.0
        %1019 = vmatpush1.msra.mxu0 %v723
        %1020 = vmatprep.subr.mxu0 0.0
        %1021 = vmatpush1.msra.mxu0 %v726
        %1022 = vmatprep.subr.mxu0 0.0
        %1023 = vmatpush1.msra.mxu0 0.0
        %1024 = vmatprep.subr.mxu0 0.0
        %1025 = vmatpush1.msra.mxu0 0.0
        %1026 = vmatprep.subr.mxu0 0.0
        %1027 = vmatpush1.msra.mxu0 0.0
        %1028 = vmatprep.subr.mxu0 0.0
        %1029 = vmatpush1.msra.mxu0 0.0
        %1030 = vmatprep.subr.mxu0 0.0
        %1031 = vmatpush1.msra.mxu0 0.0
        %1032 = vmatprep.subr.mxu0 0.0
        %1033 = vmatpush1.msra.mxu0 0.0
        %1034 = vmatprep.subr.mxu0 0.0
        %1035 = vmatpush1.msra.mxu0 0.0
        %1036 = vmatprep.subr.mxu0 0.0
        %1037 = vmatpush1.msra.mxu0 0.0
        %1038 = vmatprep.subr.mxu0 0.0
        %1039 = vmatpush1.msra.mxu0 0.0
        %1040 = vmatprep.subr.mxu0 0.0
        %1041 = vmatpush1.msra.mxu0 0.0
        %1042 = vmatprep.subr.mxu0 0.0
        %1043 = vmatpush1.msra.mxu0 0.0
        %1044 = vmatprep.subr.mxu0 0.0
        %1045 = vmatpush1.msra.mxu0 0.0
        %1046 = vmatprep.subr.mxu0 0.0
        %1047 = vmatpush1.msra.mxu0 0.0
        %1048 = vmatprep.subr.mxu0 0.0
        %1049 = vmatpush1.msra.mxu0 0.0
        %1050 = vmatprep.subr.mxu0 0.0
        %1051 = vmatpush1.msra.mxu0 0.0
        %1052 = vmatprep.subr.mxu0 0.0
        %1053 = vmatpush1.msra.mxu0 0.0
        %1054 = vmatprep.mubr.f32.mxu0 0.0
        %1055 = vmatmul.mubr.f32.gmra.mrb[0].mxu0 %v906
        %v1056 = vpop.f32.mrb[0].mxu0
        %v1057 = vadd.f32 0.0, %v1056
        %v1058 = vpop.f32.mrb[0].mxu0
        %1059 = vdwg.mxu0
        %v1060 = vadd.f32 %v916, %v986
        %v1061 = vxor.u32 %v1060, 2147483648
        %v1062 = vmul.f32 %v1061, 1.442695
        %v1063 = vpow.pop %v1062
        %v1064 = vadd.f32 %v1063, 1.0
        %v1065 = vrcp.pop %v1064
        %v1066 = vmul.f32 1.0, %v1065
        %v1067 = vadd.f32 %v917, %v988
        %v1068 = vxor.u32 %v1067, 2147483648
        %v1069 = vmul.f32 %v1068, 1.442695
        %v1070 = vpow.pop %v1069
        %v1071 = vadd.f32 %v1070, 1.0
        %v1072 = vrcp.pop %v1071
        %v1073 = vmul.f32 1.0, %v1072
        %v1074 = vadd.f32 %v1057, %v732
        %v1075 = vmul.f32 %v1066, %v1074
        %v1076 = vadd.f32 %v918, %v1075
        %v1077 = vtanh.pop %v1076
        %v1078 = vsub.f32 %v906, %v1077
        %v1079 = vmul.f32 %v1073, %v1078
        %v1080 = vadd.f32 %v1077, %v1079
        %s1081 = scalar_lea.vmem %s363, %s910 [#allocation12]
        %1082 = vst [vmem:[%s1081] sm:$0xff] %v1080
        %s1083 = scalar_select %p734, 2, 5
        %s1084 = smul.u32 %s1083, 8
        %s1085 = sshra.s32 %s1084, 3
        %s1086 = sand.u32 %s1084, 7
        %s1087 = smul.u32 %s1085, 3
        %s1088 = smul.addr %s1087, 8
        %s1089 = scalar_lea.vmem [#allocation2], %s1088
        %v1090 = vld [vmem:[%s1089] sm:$0xff]
        %v1091 = vld [vmem:[%s1089 + $0x8] sm:$0xff]
        %v1092 = vld [vmem:[%s1089 + $0x10] sm:$0xff]
        %1093 = vmatprep.subr.mxu0 %v680
        %1094 = vmatpush1.msra.mxu0 %v679
        %1095 = vmatprep.subr.mxu0 %v683
        %1096 = vmatpush1.msra.mxu0 %v682
        %1097 = vmatprep.subr.mxu0 %v686
        %1098 = vmatpush1.msra.mxu0 %v685
        %1099 = vmatprep.subr.mxu0 %v689
        %1100 = vmatpush1.msra.mxu0 %v688
        %1101 = vmatprep.subr.mxu0 %v692
        %1102 = vmatpush1.msra.mxu0 %v691
        %1103 = vmatprep.subr.mxu0 %v695
        %1104 = vmatpush1.msra.mxu0 %v694
        %1105 = vmatprep.subr.mxu0 %v698
        %1106 = vmatpush1.msra.mxu0 %v697
        %1107 = vmatprep.subr.mxu0 %v701
        %1108 = vmatpush1.msra.mxu0 %v700
        %1109 = vmatprep.subr.mxu0 %v704
        %1110 = vmatpush1.msra.mxu0 %v703
        %1111 = vmatprep.subr.mxu0 %v707
        %1112 = vmatpush1.msra.mxu0 %v706
        %1113 = vmatprep.subr.mxu0 %v710
        %1114 = vmatpush1.msra.mxu0 %v709
        %1115 = vmatprep.subr.mxu0 %v713
        %1116 = vmatpush1.msra.mxu0 %v712
        %1117 = vmatprep.subr.mxu0 %v716
        %1118 = vmatpush1.msra.mxu0 %v715
        %1119 = vmatprep.subr.mxu0 %v719
        %1120 = vmatpush1.msra.mxu0 %v718
        %1121 = vmatprep.subr.mxu0 %v722
        %1122 = vmatpush1.msra.mxu0 %v721
        %1123 = vmatprep.subr.mxu0 %v725
        %1124 = vmatpush1.msra.mxu0 %v724
        %1125 = vmatprep.subr.mxu0 0.0
        %1126 = vmatpush1.msra.mxu0 0.0
        %1127 = vmatprep.subr.mxu0 0.0
        %1128 = vmatpush1.msra.mxu0 0.0
        %1129 = vmatprep.subr.mxu0 0.0
        %1130 = vmatpush1.msra.mxu0 0.0
        %1131 = vmatprep.subr.mxu0 0.0
        %1132 = vmatpush1.msra.mxu0 0.0
        %1133 = vmatprep.subr.mxu0 0.0
        %1134 = vmatpush1.msra.mxu0 0.0
        %1135 = vmatprep.subr.mxu0 0.0
        %1136 = vmatpush1.msra.mxu0 0.0
        %1137 = vmatprep.subr.mxu0 0.0
        %1138 = vmatpush1.msra.mxu0 0.0
        %1139 = vmatprep.subr.mxu0 0.0
        %1140 = vmatpush1.msra.mxu0 0.0
        %1141 = vmatprep.subr.mxu0 0.0
        %1142 = vmatpush1.msra.mxu0 0.0
        %1143 = vmatprep.subr.mxu0 0.0
        %1144 = vmatpush1.msra.mxu0 0.0
        %1145 = vmatprep.subr.mxu0 0.0
        %1146 = vmatpush1.msra.mxu0 0.0
        %1147 = vmatprep.subr.mxu0 0.0
        %1148 = vmatpush1.msra.mxu0 0.0
        %1149 = vmatprep.subr.mxu0 0.0
        %1150 = vmatpush1.msra.mxu0 0.0
        %1151 = vmatprep.subr.mxu0 0.0
        %1152 = vmatpush1.msra.mxu0 0.0
        %1153 = vmatprep.subr.mxu0 0.0
        %1154 = vmatpush1.msra.mxu0 0.0
        %1155 = vmatprep.subr.mxu0 0.0
        %1156 = vmatpush1.msra.mxu0 0.0
        %1157 = vmatprep.mubr.f32.mxu0 0.0
        %1158 = vmatmul.mubr.f32.gmra.mrb[0].mxu0 %v1080
        %v1159 = vpop.f32.mrb[0].mxu0
        %v1160 = vadd.f32 0.0, %v1159
        %v1161 = vpop.f32.mrb[0].mxu0
        %v1162 = vadd.f32 0.0, %v1161
        %1163 = vdwg.mxu0
        %1164 = vmatprep.subr.mxu0 0.0
        %1165 = vmatpush1.msra.mxu0 %v681
        %1166 = vmatprep.subr.mxu0 0.0
        %1167 = vmatpush1.msra.mxu0 %v684
        %1168 = vmatprep.subr.mxu0 0.0
        %1169 = vmatpush1.msra.mxu0 %v687
        %1170 = vmatprep.subr.mxu0 0.0
        %1171 = vmatpush1.msra.mxu0 %v690
        %1172 = vmatprep.subr.mxu0 0.0
        %1173 = vmatpush1.msra.mxu0 %v693
        %1174 = vmatprep.subr.mxu0 0.0
        %1175 = vmatpush1.msra.mxu0 %v696
        %1176 = vmatprep.subr.mxu0 0.0
        %1177 = vmatpush1.msra.mxu0 %v699
        %1178 = vmatprep.subr.mxu0 0.0
        %1179 = vmatpush1.msra.mxu0 %v702
        %1180 = vmatprep.subr.mxu0 0.0
        %1181 = vmatpush1.msra.mxu0 %v705
        %1182 = vmatprep.subr.mxu0 0.0
        %1183 = vmatpush1.msra.mxu0 %v708
        %1184 = vmatprep.subr.mxu0 0.0
        %1185 = vmatpush1.msra.mxu0 %v711
        %1186 = vmatprep.subr.mxu0 0.0
        %1187 = vmatpush1.msra.mxu0 %v714
        %1188 = vmatprep.subr.mxu0 0.0
        %1189 = vmatpush1.msra.mxu0 %v717
        %1190 = vmatprep.subr.mxu0 0.0
        %1191 = vmatpush1.msra.mxu0 %v720
        %1192 = vmatprep.subr.mxu0 0.0
        %1193 = vmatpush1.msra.mxu0 %v723
        %1194 = vmatprep.subr.mxu0 0.0
        %1195 = vmatpush1.msra.mxu0 %v726
        %1196 = vmatprep.subr.mxu0 0.0
        %1197 = vmatpush1.msra.mxu0 0.0
        %1198 = vmatprep.subr.mxu0 0.0
        %1199 = vmatpush1.msra.mxu0 0.0
        %1200 = vmatprep.subr.mxu0 0.0
        %1201 = vmatpush1.msra.mxu0 0.0
        %1202 = vmatprep.subr.mxu0 0.0
        %1203 = vmatpush1.msra.mxu0 0.0
        %1204 = vmatprep.subr.mxu0 0.0
        %1205 = vmatpush1.msra.mxu0 0.0
        %1206 = vmatprep.subr.mxu0 0.0
        %1207 = vmatpush1.msra.mxu0 0.0
        %1208 = vmatprep.subr.mxu0 0.0
        %1209 = vmatpush1.msra.mxu0 0.0
        %1210 = vmatprep.subr.mxu0 0.0
        %1211 = vmatpush1.msra.mxu0 0.0
        %1212 = vmatprep.subr.mxu0 0.0
        %1213 = vmatpush1.msra.mxu0 0.0
        %1214 = vmatprep.subr.mxu0 0.0
        %1215 = vmatpush1.msra.mxu0 0.0
        %1216 = vmatprep.subr.mxu0 0.0
        %1217 = vmatpush1.msra.mxu0 0.0
        %1218 = vmatprep.subr.mxu0 0.0
        %1219 = vmatpush1.msra.mxu0 0.0
        %1220 = vmatprep.subr.mxu0 0.0
        %1221 = vmatpush1.msra.mxu0 0.0
        %1222 = vmatprep.subr.mxu0 0.0
        %1223 = vmatpush1.msra.mxu0 0.0
        %1224 = vmatprep.subr.mxu0 0.0
        %1225 = vmatpush1.msra.mxu0 0.0
        %1226 = vmatprep.subr.mxu0 0.0
        %1227 = vmatpush1.msra.mxu0 0.0
        %1228 = vmatprep.mubr.f32.mxu0 0.0
        %1229 = vmatmul.mubr.f32.gmra.mrb[0].mxu0 %v1080
        %v1230 = vpop.f32.mrb[0].mxu0
        %v1231 = vadd.f32 0.0, %v1230
        %v1232 = vpop.f32.mrb[0].mxu0
        %1233 = vdwg.mxu0
        %v1234 = vadd.f32 %v1090, %v1160
        %v1235 = vxor.u32 %v1234, 2147483648
        %v1236 = vmul.f32 %v1235, 1.442695
        %v1237 = vpow.pop %v1236
        %v1238 = vadd.f32 %v1237, 1.0
        %v1239 = vrcp.pop %v1238
        %v1240 = vmul.f32 1.0, %v1239
        %v1241 = vadd.f32 %v1091, %v1162
        %v1242 = vxor.u32 %v1241, 2147483648
        %v1243 = vmul.f32 %v1242, 1.442695
        %v1244 = vpow.pop %v1243
        %v1245 = vadd.f32 %v1244, 1.0
        %v1246 = vrcp.pop %v1245
        %v1247 = vmul.f32 1.0, %v1246
        %v1248 = vadd.f32 %v1231, %v732
        %v1249 = vmul.f32 %v1240, %v1248
        %v1250 = vadd.f32 %v1092, %v1249
        %v1251 = vtanh.pop %v1250
        %v1252 = vsub.f32 %v1080, %v1251
        %v1253 = vmul.f32 %v1247, %v1252
        %v1254 = vadd.f32 %v1251, %v1253
        %s1255 = scalar_lea.vmem %s363, %s1084 [#allocation12]
        %1256 = vst [vmem:[%s1255] sm:$0xff] %v1254
        %s1257 = scalar_select %p734, 3, 4
        %s1258 = smul.u32 %s1257, 8
        %s1259 = sshra.s32 %s1258, 3
        %s1260 = sand.u32 %s1258, 7
        %s1261 = smul.u32 %s1259, 3
        %s1262 = smul.addr %s1261, 8
        %s1263 = scalar_lea.vmem [#allocation2], %s1262
        %v1264 = vld [vmem:[%s1263] sm:$0xff]
        %v1265 = vld [vmem:[%s1263 + $0x8] sm:$0xff]
        %v1266 = vld [vmem:[%s1263 + $0x10] sm:$0xff]
        %1267 = vmatprep.subr.mxu0 %v680
        %1268 = vmatpush1.msra.mxu0 %v679
        %1269 = vmatprep.subr.mxu0 %v683
        %1270 = vmatpush1.msra.mxu0 %v682
        %1271 = vmatprep.subr.mxu0 %v686
        %1272 = vmatpush1.msra.mxu0 %v685
        %1273 = vmatprep.subr.mxu0 %v689
        %1274 = vmatpush1.msra.mxu0 %v688
        %1275 = vmatprep.subr.mxu0 %v692
        %1276 = vmatpush1.msra.mxu0 %v691
        %1277 = vmatprep.subr.mxu0 %v695
        %1278 = vmatpush1.msra.mxu0 %v694
        %1279 = vmatprep.subr.mxu0 %v698
        %1280 = vmatpush1.msra.mxu0 %v697
        %1281 = vmatprep.subr.mxu0 %v701
        %1282 = vmatpush1.msra.mxu0 %v700
        %1283 = vmatprep.subr.mxu0 %v704
        %1284 = vmatpush1.msra.mxu0 %v703
        %1285 = vmatprep.subr.mxu0 %v707
        %1286 = vmatpush1.msra.mxu0 %v706
        %1287 = vmatprep.subr.mxu0 %v710
        %1288 = vmatpush1.msra.mxu0 %v709
        %1289 = vmatprep.subr.mxu0 %v713
        %1290 = vmatpush1.msra.mxu0 %v712
        %1291 = vmatprep.subr.mxu0 %v716
        %1292 = vmatpush1.msra.mxu0 %v715
        %1293 = vmatprep.subr.mxu0 %v719
        %1294 = vmatpush1.msra.mxu0 %v718
        %1295 = vmatprep.subr.mxu0 %v722
        %1296 = vmatpush1.msra.mxu0 %v721
        %1297 = vmatprep.subr.mxu0 %v725
        %1298 = vmatpush1.msra.mxu0 %v724
        %1299 = vmatprep.subr.mxu0 0.0
        %1300 = vmatpush1.msra.mxu0 0.0
        %1301 = vmatprep.subr.mxu0 0.0
        %1302 = vmatpush1.msra.mxu0 0.0
        %1303 = vmatprep.subr.mxu0 0.0
        %1304 = vmatpush1.msra.mxu0 0.0
        %1305 = vmatprep.subr.mxu0 0.0
        %1306 = vmatpush1.msra.mxu0 0.0
        %1307 = vmatprep.subr.mxu0 0.0
        %1308 = vmatpush1.msra.mxu0 0.0
        %1309 = vmatprep.subr.mxu0 0.0
        %1310 = vmatpush1.msra.mxu0 0.0
        %1311 = vmatprep.subr.mxu0 0.0
        %1312 = vmatpush1.msra.mxu0 0.0
        %1313 = vmatprep.subr.mxu0 0.0
        %1314 = vmatpush1.msra.mxu0 0.0
        %1315 = vmatprep.subr.mxu0 0.0
        %1316 = vmatpush1.msra.mxu0 0.0
        %1317 = vmatprep.subr.mxu0 0.0
        %1318 = vmatpush1.msra.mxu0 0.0
        %1319 = vmatprep.subr.mxu0 0.0
        %1320 = vmatpush1.msra.mxu0 0.0
        %1321 = vmatprep.subr.mxu0 0.0
        %1322 = vmatpush1.msra.mxu0 0.0
        %1323 = vmatprep.subr.mxu0 0.0
        %1324 = vmatpush1.msra.mxu0 0.0
        %1325 = vmatprep.subr.mxu0 0.0
        %1326 = vmatpush1.msra.mxu0 0.0
        %1327 = vmatprep.subr.mxu0 0.0
        %1328 = vmatpush1.msra.mxu0 0.0
        %1329 = vmatprep.subr.mxu0 0.0
        %1330 = vmatpush1.msra.mxu0 0.0
        %1331 = vmatprep.mubr.f32.mxu0 0.0
        %1332 = vmatmul.mubr.f32.gmra.mrb[0].mxu0 %v1254
        %v1333 = vpop.f32.mrb[0].mxu0
        %v1334 = vadd.f32 0.0, %v1333
        %v1335 = vpop.f32.mrb[0].mxu0
        %v1336 = vadd.f32 0.0, %v1335
        %1337 = vdwg.mxu0
        %1338 = vmatprep.subr.mxu0 0.0
        %1339 = vmatpush1.msra.mxu0 %v681
        %1340 = vmatprep.subr.mxu0 0.0
        %1341 = vmatpush1.msra.mxu0 %v684
        %1342 = vmatprep.subr.mxu0 0.0
        %1343 = vmatpush1.msra.mxu0 %v687
        %1344 = vmatprep.subr.mxu0 0.0
        %1345 = vmatpush1.msra.mxu0 %v690
        %1346 = vmatprep.subr.mxu0 0.0
        %1347 = vmatpush1.msra.mxu0 %v693
        %1348 = vmatprep.subr.mxu0 0.0
        %1349 = vmatpush1.msra.mxu0 %v696
        %1350 = vmatprep.subr.mxu0 0.0
        %1351 = vmatpush1.msra.mxu0 %v699
        %1352 = vmatprep.subr.mxu0 0.0
        %1353 = vmatpush1.msra.mxu0 %v702
        %1354 = vmatprep.subr.mxu0 0.0
        %1355 = vmatpush1.msra.mxu0 %v705
        %1356 = vmatprep.subr.mxu0 0.0
        %1357 = vmatpush1.msra.mxu0 %v708
        %1358 = vmatprep.subr.mxu0 0.0
        %1359 = vmatpush1.msra.mxu0 %v711
        %1360 = vmatprep.subr.mxu0 0.0
        %1361 = vmatpush1.msra.mxu0 %v714
        %1362 = vmatprep.subr.mxu0 0.0
        %1363 = vmatpush1.msra.mxu0 %v717
        %1364 = vmatprep.subr.mxu0 0.0
        %1365 = vmatpush1.msra.mxu0 %v720
        %1366 = vmatprep.subr.mxu0 0.0
        %1367 = vmatpush1.msra.mxu0 %v723
        %1368 = vmatprep.subr.mxu0 0.0
        %1369 = vmatpush1.msra.mxu0 %v726
        %1370 = vmatprep.subr.mxu0 0.0
        %1371 = vmatpush1.msra.mxu0 0.0
        %1372 = vmatprep.subr.mxu0 0.0
        %1373 = vmatpush1.msra.mxu0 0.0
        %1374 = vmatprep.subr.mxu0 0.0
        %1375 = vmatpush1.msra.mxu0 0.0
        %1376 = vmatprep.subr.mxu0 0.0
        %1377 = vmatpush1.msra.mxu0 0.0
        %1378 = vmatprep.subr.mxu0 0.0
        %1379 = vmatpush1.msra.mxu0 0.0
        %1380 = vmatprep.subr.mxu0 0.0
        %1381 = vmatpush1.msra.mxu0 0.0
        %1382 = vmatprep.subr.mxu0 0.0
        %1383 = vmatpush1.msra.mxu0 0.0
        %1384 = vmatprep.subr.mxu0 0.0
        %1385 = vmatpush1.msra.mxu0 0.0
        %1386 = vmatprep.subr.mxu0 0.0
        %1387 = vmatpush1.msra.mxu0 0.0
        %1388 = vmatprep.subr.mxu0 0.0
        %1389 = vmatpush1.msra.mxu0 0.0
        %1390 = vmatprep.subr.mxu0 0.0
        %1391 = vmatpush1.msra.mxu0 0.0
        %1392 = vmatprep.subr.mxu0 0.0
        %1393 = vmatpush1.msra.mxu0 0.0
        %1394 = vmatprep.subr.mxu0 0.0
        %1395 = vmatpush1.msra.mxu0 0.0
        %1396 = vmatprep.subr.mxu0 0.0
        %1397 = vmatpush1.msra.mxu0 0.0
        %1398 = vmatprep.subr.mxu0 0.0
        %1399 = vmatpush1.msra.mxu0 0.0
        %1400 = vmatprep.subr.mxu0 0.0
        %1401 = vmatpush1.msra.mxu0 0.0
        %1402 = vmatprep.mubr.f32.mxu0 0.0
        %1403 = vmatmul.mubr.f32.gmra.mrb[0].mxu0 %v1254
        %v1404 = vpop.f32.mrb[0].mxu0
        %v1405 = vadd.f32 0.0, %v1404
        %v1406 = vpop.f32.mrb[0].mxu0
        %1407 = vdwg.mxu0
        %v1408 = vadd.f32 %v1264, %v1334
        %v1409 = vxor.u32 %v1408, 2147483648
        %v1410 = vmul.f32 %v1409, 1.442695
        %v1411 = vpow.pop %v1410
        %v1412 = vadd.f32 %v1411, 1.0
        %v1413 = vrcp.pop %v1412
        %v1414 = vmul.f32 1.0, %v1413
        %v1415 = vadd.f32 %v1265, %v1336
        %v1416 = vxor.u32 %v1415, 2147483648
        %v1417 = vmul.f32 %v1416, 1.442695
        %v1418 = vpow.pop %v1417
        %v1419 = vadd.f32 %v1418, 1.0
        %v1420 = vrcp.pop %v1419
        %v1421 = vmul.f32 1.0, %v1420
        %v1422 = vadd.f32 %v1405, %v732
        %v1423 = vmul.f32 %v1414, %v1422
        %v1424 = vadd.f32 %v1266, %v1423
        %v1425 = vtanh.pop %v1424
        %v1426 = vsub.f32 %v1254, %v1425
        %v1427 = vmul.f32 %v1421, %v1426
        %v1428 = vadd.f32 %v1425, %v1427
        %s1429 = scalar_lea.vmem %s363, %s1258 [#allocation12]
        %1430 = vst [vmem:[%s1429] sm:$0xff] %v1428
        %s1431 = scalar_select %p734, 4, 3
        %s1432 = smul.u32 %s1431, 8
        %s1433 = sshra.s32 %s1432, 3
        %s1434 = sand.u32 %s1432, 7
        %s1435 = smul.u32 %s1433, 3
        %s1436 = smul.addr %s1435, 8
        %s1437 = scalar_lea.vmem [#allocation2], %s1436
        %v1438 = vld [vmem:[%s1437] sm:$0xff]
        %v1439 = vld [vmem:[%s1437 + $0x8] sm:$0xff]
        %v1440 = vld [vmem:[%s1437 + $0x10] sm:$0xff]
        %1441 = vmatprep.subr.mxu0 %v680
        %1442 = vmatpush1.msra.mxu0 %v679
        %1443 = vmatprep.subr.mxu0 %v683
        %1444 = vmatpush1.msra.mxu0 %v682
        %1445 = vmatprep.subr.mxu0 %v686
        %1446 = vmatpush1.msra.mxu0 %v685
        %1447 = vmatprep.subr.mxu0 %v689
        %1448 = vmatpush1.msra.mxu0 %v688
        %1449 = vmatprep.subr.mxu0 %v692
        %1450 = vmatpush1.msra.mxu0 %v691
        %1451 = vmatprep.subr.mxu0 %v695
        %1452 = vmatpush1.msra.mxu0 %v694
        %1453 = vmatprep.subr.mxu0 %v698
        %1454 = vmatpush1.msra.mxu0 %v697
        %1455 = vmatprep.subr.mxu0 %v701
        %1456 = vmatpush1.msra.mxu0 %v700
        %1457 = vmatprep.subr.mxu0 %v704
        %1458 = vmatpush1.msra.mxu0 %v703
        %1459 = vmatprep.subr.mxu0 %v707
        %1460 = vmatpush1.msra.mxu0 %v706
        %1461 = vmatprep.subr.mxu0 %v710
        %1462 = vmatpush1.msra.mxu0 %v709
        %1463 = vmatprep.subr.mxu0 %v713
        %1464 = vmatpush1.msra.mxu0 %v712
        %1465 = vmatprep.subr.mxu0 %v716
        %1466 = vmatpush1.msra.mxu0 %v715
        %1467 = vmatprep.subr.mxu0 %v719
        %1468 = vmatpush1.msra.mxu0 %v718
        %1469 = vmatprep.subr.mxu0 %v722
        %1470 = vmatpush1.msra.mxu0 %v721
        %1471 = vmatprep.subr.mxu0 %v725
        %1472 = vmatpush1.msra.mxu0 %v724
        %1473 = vmatprep.subr.mxu0 0.0
        %1474 = vmatpush1.msra.mxu0 0.0
        %1475 = vmatprep.subr.mxu0 0.0
        %1476 = vmatpush1.msra.mxu0 0.0
        %1477 = vmatprep.subr.mxu0 0.0
        %1478 = vmatpush1.msra.mxu0 0.0
        %1479 = vmatprep.subr.mxu0 0.0
        %1480 = vmatpush1.msra.mxu0 0.0
        %1481 = vmatprep.subr.mxu0 0.0
        %1482 = vmatpush1.msra.mxu0 0.0
        %1483 = vmatprep.subr.mxu0 0.0
        %1484 = vmatpush1.msra.mxu0 0.0
        %1485 = vmatprep.subr.mxu0 0.0
        %1486 = vmatpush1.msra.mxu0 0.0
        %1487 = vmatprep.subr.mxu0 0.0
        %1488 = vmatpush1.msra.mxu0 0.0
        %1489 = vmatprep.subr.mxu0 0.0
        %1490 = vmatpush1.msra.mxu0 0.0
        %1491 = vmatprep.subr.mxu0 0.0
        %1492 = vmatpush1.msra.mxu0 0.0
        %1493 = vmatprep.subr.mxu0 0.0
        %1494 = vmatpush1.msra.mxu0 0.0
        %1495 = vmatprep.subr.mxu0 0.0
        %1496 = vmatpush1.msra.mxu0 0.0
        %1497 = vmatprep.subr.mxu0 0.0
        %1498 = vmatpush1.msra.mxu0 0.0
        %1499 = vmatprep.subr.mxu0 0.0
        %1500 = vmatpush1.msra.mxu0 0.0
        %1501 = vmatprep.subr.mxu0 0.0
        %1502 = vmatpush1.msra.mxu0 0.0
        %1503 = vmatprep.subr.mxu0 0.0
        %1504 = vmatpush1.msra.mxu0 0.0
        %1505 = vmatprep.mubr.f32.mxu0 0.0
        %1506 = vmatmul.mubr.f32.gmra.mrb[0].mxu0 %v1428
        %v1507 = vpop.f32.mrb[0].mxu0
        %v1508 = vadd.f32 0.0, %v1507
        %v1509 = vpop.f32.mrb[0].mxu0
        %v1510 = vadd.f32 0.0, %v1509
        %1511 = vdwg.mxu0
        %1512 = vmatprep.subr.mxu0 0.0
        %1513 = vmatpush1.msra.mxu0 %v681
        %1514 = vmatprep.subr.mxu0 0.0
        %1515 = vmatpush1.msra.mxu0 %v684
        %1516 = vmatprep.subr.mxu0 0.0
        %1517 = vmatpush1.msra.mxu0 %v687
        %1518 = vmatprep.subr.mxu0 0.0
        %1519 = vmatpush1.msra.mxu0 %v690
        %1520 = vmatprep.subr.mxu0 0.0
        %1521 = vmatpush1.msra.mxu0 %v693
        %1522 = vmatprep.subr.mxu0 0.0
        %1523 = vmatpush1.msra.mxu0 %v696
        %1524 = vmatprep.subr.mxu0 0.0
        %1525 = vmatpush1.msra.mxu0 %v699
        %1526 = vmatprep.subr.mxu0 0.0
        %1527 = vmatpush1.msra.mxu0 %v702
        %1528 = vmatprep.subr.mxu0 0.0
        %1529 = vmatpush1.msra.mxu0 %v705
        %1530 = vmatprep.subr.mxu0 0.0
        %1531 = vmatpush1.msra.mxu0 %v708
        %1532 = vmatprep.subr.mxu0 0.0
        %1533 = vmatpush1.msra.mxu0 %v711
        %1534 = vmatprep.subr.mxu0 0.0
        %1535 = vmatpush1.msra.mxu0 %v714
        %1536 = vmatprep.subr.mxu0 0.0
        %1537 = vmatpush1.msra.mxu0 %v717
        %1538 = vmatprep.subr.mxu0 0.0
        %1539 = vmatpush1.msra.mxu0 %v720
        %1540 = vmatprep.subr.mxu0 0.0
        %1541 = vmatpush1.msra.mxu0 %v723
        %1542 = vmatprep.subr.mxu0 0.0
        %1543 = vmatpush1.msra.mxu0 %v726
        %1544 = vmatprep.subr.mxu0 0.0
        %1545 = vmatpush1.msra.mxu0 0.0
        %1546 = vmatprep.subr.mxu0 0.0
        %1547 = vmatpush1.msra.mxu0 0.0
        %1548 = vmatprep.subr.mxu0 0.0
        %1549 = vmatpush1.msra.mxu0 0.0
        %1550 = vmatprep.subr.mxu0 0.0
        %1551 = vmatpush1.msra.mxu0 0.0
        %1552 = vmatprep.subr.mxu0 0.0
        %1553 = vmatpush1.msra.mxu0 0.0
        %1554 = vmatprep.subr.mxu0 0.0
        %1555 = vmatpush1.msra.mxu0 0.0
        %1556 = vmatprep.subr.mxu0 0.0
        %1557 = vmatpush1.msra.mxu0 0.0
        %1558 = vmatprep.subr.mxu0 0.0
        %1559 = vmatpush1.msra.mxu0 0.0
        %1560 = vmatprep.subr.mxu0 0.0
        %1561 = vmatpush1.msra.mxu0 0.0
        %1562 = vmatprep.subr.mxu0 0.0
        %1563 = vmatpush1.msra.mxu0 0.0
        %1564 = vmatprep.subr.mxu0 0.0
        %1565 = vmatpush1.msra.mxu0 0.0
        %1566 = vmatprep.subr.mxu0 0.0
        %1567 = vmatpush1.msra.mxu0 0.0
        %1568 = vmatprep.subr.mxu0 0.0
        %1569 = vmatpush1.msra.mxu0 0.0
        %1570 = vmatprep.subr.mxu0 0.0
        %1571 = vmatpush1.msra.mxu0 0.0
        %1572 = vmatprep.subr.mxu0 0.0
        %1573 = vmatpush1.msra.mxu0 0.0
        %1574 = vmatprep.subr.mxu0 0.0
        %1575 = vmatpush1.msra.mxu0 0.0
        %1576 = vmatprep.mubr.f32.mxu0 0.0
        %1577 = vmatmul.mubr.f32.gmra.mrb[0].mxu0 %v1428
        %v1578 = vpop.f32.mrb[0].mxu0
        %v1579 = vadd.f32 0.0, %v1578
        %v1580 = vpop.f32.mrb[0].mxu0
        %1581 = vdwg.mxu0
        %v1582 = vadd.f32 %v1438, %v1508
        %v1583 = vxor.u32 %v1582, 2147483648
        %v1584 = vmul.f32 %v1583, 1.442695
        %v1585 = vpow.pop %v1584
        %v1586 = vadd.f32 %v1585, 1.0
        %v1587 = vrcp.pop %v1586
        %v1588 = vmul.f32 1.0, %v1587
        %v1589 = vadd.f32 %v1439, %v1510
        %v1590 = vxor.u32 %v1589, 2147483648
        %v1591 = vmul.f32 %v1590, 1.442695
        %v1592 = vpow.pop %v1591
        %v1593 = vadd.f32 %v1592, 1.0
        %v1594 = vrcp.pop %v1593
        %v1595 = vmul.f32 1.0, %v1594
        %v1596 = vadd.f32 %v1579, %v732
        %v1597 = vmul.f32 %v1588, %v1596
        %v1598 = vadd.f32 %v1440, %v1597
        %v1599 = vtanh.pop %v1598
        %v1600 = vsub.f32 %v1428, %v1599
        %v1601 = vmul.f32 %v1595, %v1600
        %v1602 = vadd.f32 %v1599, %v1601
        %s1603 = scalar_lea.vmem %s363, %s1432 [#allocation12]
        %1604 = vst [vmem:[%s1603] sm:$0xff] %v1602
        %s1605 = scalar_select %p734, 5, 2
        %s1606 = smul.u32 %s1605, 8
        %s1607 = sshra.s32 %s1606, 3
        %s1608 = sand.u32 %s1606, 7
        %s1609 = smul.u32 %s1607, 3
        %s1610 = smul.addr %s1609, 8
        %s1611 = scalar_lea.vmem [#allocation2], %s1610
        %v1612 = vld [vmem:[%s1611] sm:$0xff]
        %v1613 = vld [vmem:[%s1611 + $0x8] sm:$0xff]
        %v1614 = vld [vmem:[%s1611 + $0x10] sm:$0xff]
        %1615 = vmatprep.subr.mxu0 %v680
        %1616 = vmatpush1.msra.mxu0 %v679
        %1617 = vmatprep.subr.mxu0 %v683
        %1618 = vmatpush1.msra.mxu0 %v682
        %1619 = vmatprep.subr.mxu0 %v686
        %1620 = vmatpush1.msra.mxu0 %v685
        %1621 = vmatprep.subr.mxu0 %v689
        %1622 = vmatpush1.msra.mxu0 %v688
        %1623 = vmatprep.subr.mxu0 %v692
        %1624 = vmatpush1.msra.mxu0 %v691
        %1625 = vmatprep.subr.mxu0 %v695
        %1626 = vmatpush1.msra.mxu0 %v694
        %1627 = vmatprep.subr.mxu0 %v698
        %1628 = vmatpush1.msra.mxu0 %v697
        %1629 = vmatprep.subr.mxu0 %v701
        %1630 = vmatpush1.msra.mxu0 %v700
        %1631 = vmatprep.subr.mxu0 %v704
        %1632 = vmatpush1.msra.mxu0 %v703
        %1633 = vmatprep.subr.mxu0 %v707
        %1634 = vmatpush1.msra.mxu0 %v706
        %1635 = vmatprep.subr.mxu0 %v710
        %1636 = vmatpush1.msra.mxu0 %v709
        %1637 = vmatprep.subr.mxu0 %v713
        %1638 = vmatpush1.msra.mxu0 %v712
        %1639 = vmatprep.subr.mxu0 %v716
        %1640 = vmatpush1.msra.mxu0 %v715
        %1641 = vmatprep.subr.mxu0 %v719
        %1642 = vmatpush1.msra.mxu0 %v718
        %1643 = vmatprep.subr.mxu0 %v722
        %1644 = vmatpush1.msra.mxu0 %v721
        %1645 = vmatprep.subr.mxu0 %v725
        %1646 = vmatpush1.msra.mxu0 %v724
        %1647 = vmatprep.subr.mxu0 0.0
        %1648 = vmatpush1.msra.mxu0 0.0
        %1649 = vmatprep.subr.mxu0 0.0
        %1650 = vmatpush1.msra.mxu0 0.0
        %1651 = vmatprep.subr.mxu0 0.0
        %1652 = vmatpush1.msra.mxu0 0.0
        %1653 = vmatprep.subr.mxu0 0.0
        %1654 = vmatpush1.msra.mxu0 0.0
        %1655 = vmatprep.subr.mxu0 0.0
        %1656 = vmatpush1.msra.mxu0 0.0
        %1657 = vmatprep.subr.mxu0 0.0
        %1658 = vmatpush1.msra.mxu0 0.0
        %1659 = vmatprep.subr.mxu0 0.0
        %1660 = vmatpush1.msra.mxu0 0.0
        %1661 = vmatprep.subr.mxu0 0.0
        %1662 = vmatpush1.msra.mxu0 0.0
        %1663 = vmatprep.subr.mxu0 0.0
        %1664 = vmatpush1.msra.mxu0 0.0
        %1665 = vmatprep.subr.mxu0 0.0
        %1666 = vmatpush1.msra.mxu0 0.0
        %1667 = vmatprep.subr.mxu0 0.0
        %1668 = vmatpush1.msra.mxu0 0.0
        %1669 = vmatprep.subr.mxu0 0.0
        %1670 = vmatpush1.msra.mxu0 0.0
        %1671 = vmatprep.subr.mxu0 0.0
        %1672 = vmatpush1.msra.mxu0 0.0
        %1673 = vmatprep.subr.mxu0 0.0
        %1674 = vmatpush1.msra.mxu0 0.0
        %1675 = vmatprep.subr.mxu0 0.0
        %1676 = vmatpush1.msra.mxu0 0.0
        %1677 = vmatprep.subr.mxu0 0.0
        %1678 = vmatpush1.msra.mxu0 0.0
        %1679 = vmatprep.mubr.f32.mxu0 0.0
        %1680 = vmatmul.mubr.f32.gmra.mrb[0].mxu0 %v1602
        %v1681 = vpop.f32.mrb[0].mxu0
        %v1682 = vadd.f32 0.0, %v1681
        %v1683 = vpop.f32.mrb[0].mxu0
        %v1684 = vadd.f32 0.0, %v1683
        %1685 = vdwg.mxu0
        %1686 = vmatprep.subr.mxu0 0.0
        %1687 = vmatpush1.msra.mxu0 %v681
        %1688 = vmatprep.subr.mxu0 0.0
        %1689 = vmatpush1.msra.mxu0 %v684
        %1690 = vmatprep.subr.mxu0 0.0
        %1691 = vmatpush1.msra.mxu0 %v687
        %1692 = vmatprep.subr.mxu0 0.0
        %1693 = vmatpush1.msra.mxu0 %v690
        %1694 = vmatprep.subr.mxu0 0.0
        %1695 = vmatpush1.msra.mxu0 %v693
        %1696 = vmatprep.subr.mxu0 0.0
        %1697 = vmatpush1.msra.mxu0 %v696
        %1698 = vmatprep.subr.mxu0 0.0
        %1699 = vmatpush1.msra.mxu0 %v699
        %1700 = vmatprep.subr.mxu0 0.0
        %1701 = vmatpush1.msra.mxu0 %v702
        %1702 = vmatprep.subr.mxu0 0.0
        %1703 = vmatpush1.msra.mxu0 %v705
        %1704 = vmatprep.subr.mxu0 0.0
        %1705 = vmatpush1.msra.mxu0 %v708
        %1706 = vmatprep.subr.mxu0 0.0
        %1707 = vmatpush1.msra.mxu0 %v711
        %1708 = vmatprep.subr.mxu0 0.0
        %1709 = vmatpush1.msra.mxu0 %v714
        %1710 = vmatprep.subr.mxu0 0.0
        %1711 = vmatpush1.msra.mxu0 %v717
        %1712 = vmatprep.subr.mxu0 0.0
        %1713 = vmatpush1.msra.mxu0 %v720
        %1714 = vmatprep.subr.mxu0 0.0
        %1715 = vmatpush1.msra.mxu0 %v723
        %1716 = vmatprep.subr.mxu0 0.0
        %1717 = vmatpush1.msra.mxu0 %v726
        %1718 = vmatprep.subr.mxu0 0.0
        %1719 = vmatpush1.msra.mxu0 0.0
        %1720 = vmatprep.subr.mxu0 0.0
        %1721 = vmatpush1.msra.mxu0 0.0
        %1722 = vmatprep.subr.mxu0 0.0
        %1723 = vmatpush1.msra.mxu0 0.0
        %1724 = vmatprep.subr.mxu0 0.0
        %1725 = vmatpush1.msra.mxu0 0.0
        %1726 = vmatprep.subr.mxu0 0.0
        %1727 = vmatpush1.msra.mxu0 0.0
        %1728 = vmatprep.subr.mxu0 0.0
        %1729 = vmatpush1.msra.mxu0 0.0
        %1730 = vmatprep.subr.mxu0 0.0
        %1731 = vmatpush1.msra.mxu0 0.0
        %1732 = vmatprep.subr.mxu0 0.0
        %1733 = vmatpush1.msra.mxu0 0.0
        %1734 = vmatprep.subr.mxu0 0.0
        %1735 = vmatpush1.msra.mxu0 0.0
        %1736 = vmatprep.subr.mxu0 0.0
        %1737 = vmatpush1.msra.mxu0 0.0
        %1738 = vmatprep.subr.mxu0 0.0
        %1739 = vmatpush1.msra.mxu0 0.0
        %1740 = vmatprep.subr.mxu0 0.0
        %1741 = vmatpush1.msra.mxu0 0.0
        %1742 = vmatprep.subr.mxu0 0.0
        %1743 = vmatpush1.msra.mxu0 0.0
        %1744 = vmatprep.subr.mxu0 0.0
        %1745 = vmatpush1.msra.mxu0 0.0
        %1746 = vmatprep.subr.mxu0 0.0
        %1747 = vmatpush1.msra.mxu0 0.0
        %1748 = vmatprep.subr.mxu0 0.0
        %1749 = vmatpush1.msra.mxu0 0.0
        %1750 = vmatprep.mubr.f32.mxu0 0.0
        %1751 = vmatmul.mubr.f32.gmra.mrb[0].mxu0 %v1602
        %v1752 = vpop.f32.mrb[0].mxu0
        %v1753 = vadd.f32 0.0, %v1752
        %v1754 = vpop.f32.mrb[0].mxu0
        %1755 = vdwg.mxu0
        %v1756 = vadd.f32 %v1612, %v1682
        %v1757 = vxor.u32 %v1756, 2147483648
        %v1758 = vmul.f32 %v1757, 1.442695
        %v1759 = vpow.pop %v1758
        %v1760 = vadd.f32 %v1759, 1.0
        %v1761 = vrcp.pop %v1760
        %v1762 = vmul.f32 1.0, %v1761
        %v1763 = vadd.f32 %v1613, %v1684
        %v1764 = vxor.u32 %v1763, 2147483648
        %v1765 = vmul.f32 %v1764, 1.442695
        %v1766 = vpow.pop %v1765
        %v1767 = vadd.f32 %v1766, 1.0
        %v1768 = vrcp.pop %v1767
        %v1769 = vmul.f32 1.0, %v1768
        %v1770 = vadd.f32 %v1753, %v732
        %v1771 = vmul.f32 %v1762, %v1770
        %v1772 = vadd.f32 %v1614, %v1771
        %v1773 = vtanh.pop %v1772
        %v1774 = vsub.f32 %v1602, %v1773
        %v1775 = vmul.f32 %v1769, %v1774
        %v1776 = vadd.f32 %v1773, %v1775
        %s1777 = scalar_lea.vmem %s363, %s1606 [#allocation12]
        %1778 = vst [vmem:[%s1777] sm:$0xff] %v1776
        %s1779 = scalar_select %p734, 6, 1
        %s1780 = smul.u32 %s1779, 8
        %s1781 = sshra.s32 %s1780, 3
        %s1782 = sand.u32 %s1780, 7
        %s1783 = smul.u32 %s1781, 3
        %s1784 = smul.addr %s1783, 8
        %s1785 = scalar_lea.vmem [#allocation2], %s1784
        %v1786 = vld [vmem:[%s1785] sm:$0xff]
        %v1787 = vld [vmem:[%s1785 + $0x8] sm:$0xff]
        %v1788 = vld [vmem:[%s1785 + $0x10] sm:$0xff]
        %1789 = vmatprep.subr.mxu0 %v680
        %1790 = vmatpush1.msra.mxu0 %v679
        %1791 = vmatprep.subr.mxu0 %v683
        %1792 = vmatpush1.msra.mxu0 %v682
        %1793 = vmatprep.subr.mxu0 %v686
        %1794 = vmatpush1.msra.mxu0 %v685
        %1795 = vmatprep.subr.mxu0 %v689
        %1796 = vmatpush1.msra.mxu0 %v688
        %1797 = vmatprep.subr.mxu0 %v692
        %1798 = vmatpush1.msra.mxu0 %v691
        %1799 = vmatprep.subr.mxu0 %v695
        %1800 = vmatpush1.msra.mxu0 %v694
        %1801 = vmatprep.subr.mxu0 %v698
        %1802 = vmatpush1.msra.mxu0 %v697
        %1803 = vmatprep.subr.mxu0 %v701
        %1804 = vmatpush1.msra.mxu0 %v700
        %1805 = vmatprep.subr.mxu0 %v704
        %1806 = vmatpush1.msra.mxu0 %v703
        %1807 = vmatprep.subr.mxu0 %v707
        %1808 = vmatpush1.msra.mxu0 %v706
        %1809 = vmatprep.subr.mxu0 %v710
        %1810 = vmatpush1.msra.mxu0 %v709
        %1811 = vmatprep.subr.mxu0 %v713
        %1812 = vmatpush1.msra.mxu0 %v712
        %1813 = vmatprep.subr.mxu0 %v716
        %1814 = vmatpush1.msra.mxu0 %v715
        %1815 = vmatprep.subr.mxu0 %v719
        %1816 = vmatpush1.msra.mxu0 %v718
        %1817 = vmatprep.subr.mxu0 %v722
        %1818 = vmatpush1.msra.mxu0 %v721
        %1819 = vmatprep.subr.mxu0 %v725
        %1820 = vmatpush1.msra.mxu0 %v724
        %1821 = vmatprep.subr.mxu0 0.0
        %1822 = vmatpush1.msra.mxu0 0.0
        %1823 = vmatprep.subr.mxu0 0.0
        %1824 = vmatpush1.msra.mxu0 0.0
        %1825 = vmatprep.subr.mxu0 0.0
        %1826 = vmatpush1.msra.mxu0 0.0
        %1827 = vmatprep.subr.mxu0 0.0
        %1828 = vmatpush1.msra.mxu0 0.0
        %1829 = vmatprep.subr.mxu0 0.0
        %1830 = vmatpush1.msra.mxu0 0.0
        %1831 = vmatprep.subr.mxu0 0.0
        %1832 = vmatpush1.msra.mxu0 0.0
        %1833 = vmatprep.subr.mxu0 0.0
        %1834 = vmatpush1.msra.mxu0 0.0
        %1835 = vmatprep.subr.mxu0 0.0
        %1836 = vmatpush1.msra.mxu0 0.0
        %1837 = vmatprep.subr.mxu0 0.0
        %1838 = vmatpush1.msra.mxu0 0.0
        %1839 = vmatprep.subr.mxu0 0.0
        %1840 = vmatpush1.msra.mxu0 0.0
        %1841 = vmatprep.subr.mxu0 0.0
        %1842 = vmatpush1.msra.mxu0 0.0
        %1843 = vmatprep.subr.mxu0 0.0
        %1844 = vmatpush1.msra.mxu0 0.0
        %1845 = vmatprep.subr.mxu0 0.0
        %1846 = vmatpush1.msra.mxu0 0.0
        %1847 = vmatprep.subr.mxu0 0.0
        %1848 = vmatpush1.msra.mxu0 0.0
        %1849 = vmatprep.subr.mxu0 0.0
        %1850 = vmatpush1.msra.mxu0 0.0
        %1851 = vmatprep.subr.mxu0 0.0
        %1852 = vmatpush1.msra.mxu0 0.0
        %1853 = vmatprep.mubr.f32.mxu0 0.0
        %1854 = vmatmul.mubr.f32.gmra.mrb[0].mxu0 %v1776
        %v1855 = vpop.f32.mrb[0].mxu0
        %v1856 = vadd.f32 0.0, %v1855
        %v1857 = vpop.f32.mrb[0].mxu0
        %v1858 = vadd.f32 0.0, %v1857
        %1859 = vdwg.mxu0
        %1860 = vmatprep.subr.mxu0 0.0
        %1861 = vmatpush1.msra.mxu0 %v681
        %1862 = vmatprep.subr.mxu0 0.0
        %1863 = vmatpush1.msra.mxu0 %v684
        %1864 = vmatprep.subr.mxu0 0.0
        %1865 = vmatpush1.msra.mxu0 %v687
        %1866 = vmatprep.subr.mxu0 0.0
        %1867 = vmatpush1.msra.mxu0 %v690
        %1868 = vmatprep.subr.mxu0 0.0
        %1869 = vmatpush1.msra.mxu0 %v693
        %1870 = vmatprep.subr.mxu0 0.0
        %1871 = vmatpush1.msra.mxu0 %v696
        %1872 = vmatprep.subr.mxu0 0.0
        %1873 = vmatpush1.msra.mxu0 %v699
        %1874 = vmatprep.subr.mxu0 0.0
        %1875 = vmatpush1.msra.mxu0 %v702
        %1876 = vmatprep.subr.mxu0 0.0
        %1877 = vmatpush1.msra.mxu0 %v705
        %1878 = vmatprep.subr.mxu0 0.0
        %1879 = vmatpush1.msra.mxu0 %v708
        %1880 = vmatprep.subr.mxu0 0.0
        %1881 = vmatpush1.msra.mxu0 %v711
        %1882 = vmatprep.subr.mxu0 0.0
        %1883 = vmatpush1.msra.mxu0 %v714
        %1884 = vmatprep.subr.mxu0 0.0
        %1885 = vmatpush1.msra.mxu0 %v717
        %1886 = vmatprep.subr.mxu0 0.0
        %1887 = vmatpush1.msra.mxu0 %v720
        %1888 = vmatprep.subr.mxu0 0.0
        %1889 = vmatpush1.msra.mxu0 %v723
        %1890 = vmatprep.subr.mxu0 0.0
        %1891 = vmatpush1.msra.mxu0 %v726
        %1892 = vmatprep.subr.mxu0 0.0
        %1893 = vmatpush1.msra.mxu0 0.0
        %1894 = vmatprep.subr.mxu0 0.0
        %1895 = vmatpush1.msra.mxu0 0.0
        %1896 = vmatprep.subr.mxu0 0.0
        %1897 = vmatpush1.msra.mxu0 0.0
        %1898 = vmatprep.subr.mxu0 0.0
        %1899 = vmatpush1.msra.mxu0 0.0
        %1900 = vmatprep.subr.mxu0 0.0
        %1901 = vmatpush1.msra.mxu0 0.0
        %1902 = vmatprep.subr.mxu0 0.0
        %1903 = vmatpush1.msra.mxu0 0.0
        %1904 = vmatprep.subr.mxu0 0.0
        %1905 = vmatpush1.msra.mxu0 0.0
        %1906 = vmatprep.subr.mxu0 0.0
        %1907 = vmatpush1.msra.mxu0 0.0
        %1908 = vmatprep.subr.mxu0 0.0
        %1909 = vmatpush1.msra.mxu0 0.0
        %1910 = vmatprep.subr.mxu0 0.0
        %1911 = vmatpush1.msra.mxu0 0.0
        %1912 = vmatprep.subr.mxu0 0.0
        %1913 = vmatpush1.msra.mxu0 0.0
        %1914 = vmatprep.subr.mxu0 0.0
        %1915 = vmatpush1.msra.mxu0 0.0
        %1916 = vmatprep.subr.mxu0 0.0
        %1917 = vmatpush1.msra.mxu0 0.0
        %1918 = vmatprep.subr.mxu0 0.0
        %1919 = vmatpush1.msra.mxu0 0.0
        %1920 = vmatprep.subr.mxu0 0.0
        %1921 = vmatpush1.msra.mxu0 0.0
        %1922 = vmatprep.subr.mxu0 0.0
        %1923 = vmatpush1.msra.mxu0 0.0
        %1924 = vmatprep.mubr.f32.mxu0 0.0
        %1925 = vmatmul.mubr.f32.gmra.mrb[0].mxu0 %v1776
        %v1926 = vpop.f32.mrb[0].mxu0
        %v1927 = vadd.f32 0.0, %v1926
        %v1928 = vpop.f32.mrb[0].mxu0
        %1929 = vdwg.mxu0
        %v1930 = vadd.f32 %v1786, %v1856
        %v1931 = vxor.u32 %v1930, 2147483648
        %v1932 = vmul.f32 %v1931, 1.442695
        %v1933 = vpow.pop %v1932
        %v1934 = vadd.f32 %v1933, 1.0
        %v1935 = vrcp.pop %v1934
        %v1936 = vmul.f32 1.0, %v1935
        %v1937 = vadd.f32 %v1787, %v1858
        %v1938 = vxor.u32 %v1937, 2147483648
        %v1939 = vmul.f32 %v1938, 1.442695
        %v1940 = vpow.pop %v1939
        %v1941 = vadd.f32 %v1940, 1.0
        %v1942 = vrcp.pop %v1941
        %v1943 = vmul.f32 1.0, %v1942
        %v1944 = vadd.f32 %v1927, %v732
        %v1945 = vmul.f32 %v1936, %v1944
        %v1946 = vadd.f32 %v1788, %v1945
        %v1947 = vtanh.pop %v1946
        %v1948 = vsub.f32 %v1776, %v1947
        %v1949 = vmul.f32 %v1943, %v1948
        %v1950 = vadd.f32 %v1947, %v1949
        %s1951 = scalar_lea.vmem %s363, %s1780 [#allocation12]
        %1952 = vst [vmem:[%s1951] sm:$0xff] %v1950
        %s1953 = scalar_select %p734, 7, 0
        %s1954 = smul.u32 %s1953, 8
        %s1955 = sshra.s32 %s1954, 3
        %s1956 = sand.u32 %s1954, 7
        %s1957 = smul.u32 %s1955, 3
        %s1958 = smul.addr %s1957, 8
        %s1959 = scalar_lea.vmem [#allocation2], %s1958
        %v1960 = vld [vmem:[%s1959] sm:$0xff]
        %v1961 = vld [vmem:[%s1959 + $0x8] sm:$0xff]
        %v1962 = vld [vmem:[%s1959 + $0x10] sm:$0xff]
        %1963 = vmatprep.subr.mxu0 %v680
        %1964 = vmatpush1.msra.mxu0 %v679
        %1965 = vmatprep.subr.mxu0 %v683
        %1966 = vmatpush1.msra.mxu0 %v682
        %1967 = vmatprep.subr.mxu0 %v686
        %1968 = vmatpush1.msra.mxu0 %v685
        %1969 = vmatprep.subr.mxu0 %v689
        %1970 = vmatpush1.msra.mxu0 %v688
        %1971 = vmatprep.subr.mxu0 %v692
        %1972 = vmatpush1.msra.mxu0 %v691
        %1973 = vmatprep.subr.mxu0 %v695
        %1974 = vmatpush1.msra.mxu0 %v694
        %1975 = vmatprep.subr.mxu0 %v698
        %1976 = vmatpush1.msra.mxu0 %v697
        %1977 = vmatprep.subr.mxu0 %v701
        %1978 = vmatpush1.msra.mxu0 %v700
        %1979 = vmatprep.subr.mxu0 %v704
        %1980 = vmatpush1.msra.mxu0 %v703
        %1981 = vmatprep.subr.mxu0 %v707
        %1982 = vmatpush1.msra.mxu0 %v706
        %1983 = vmatprep.subr.mxu0 %v710
        %1984 = vmatpush1.msra.mxu0 %v709
        %1985 = vmatprep.subr.mxu0 %v713
        %1986 = vmatpush1.msra.mxu0 %v712
        %1987 = vmatprep.subr.mxu0 %v716
        %1988 = vmatpush1.msra.mxu0 %v715
        %1989 = vmatprep.subr.mxu0 %v719
        %1990 = vmatpush1.msra.mxu0 %v718
        %1991 = vmatprep.subr.mxu0 %v722
        %1992 = vmatpush1.msra.mxu0 %v721
        %1993 = vmatprep.subr.mxu0 %v725
        %1994 = vmatpush1.msra.mxu0 %v724
        %1995 = vmatprep.subr.mxu0 0.0
        %1996 = vmatpush1.msra.mxu0 0.0
        %1997 = vmatprep.subr.mxu0 0.0
        %1998 = vmatpush1.msra.mxu0 0.0
        %1999 = vmatprep.subr.mxu0 0.0
        %2000 = vmatpush1.msra.mxu0 0.0
        %2001 = vmatprep.subr.mxu0 0.0
        %2002 = vmatpush1.msra.mxu0 0.0
        %2003 = vmatprep.subr.mxu0 0.0
        %2004 = vmatpush1.msra.mxu0 0.0
        %2005 = vmatprep.subr.mxu0 0.0
        %2006 = vmatpush1.msra.mxu0 0.0
        %2007 = vmatprep.subr.mxu0 0.0
        %2008 = vmatpush1.msra.mxu0 0.0
        %2009 = vmatprep.subr.mxu0 0.0
        %2010 = vmatpush1.msra.mxu0 0.0
        %2011 = vmatprep.subr.mxu0 0.0
        %2012 = vmatpush1.msra.mxu0 0.0
        %2013 = vmatprep.subr.mxu0 0.0
        %2014 = vmatpush1.msra.mxu0 0.0
        %2015 = vmatprep.subr.mxu0 0.0
        %2016 = vmatpush1.msra.mxu0 0.0
        %2017 = vmatprep.subr.mxu0 0.0
        %2018 = vmatpush1.msra.mxu0 0.0
        %2019 = vmatprep.subr.mxu0 0.0
        %2020 = vmatpush1.msra.mxu0 0.0
        %2021 = vmatprep.subr.mxu0 0.0
        %2022 = vmatpush1.msra.mxu0 0.0
        %2023 = vmatprep.subr.mxu0 0.0
        %2024 = vmatpush1.msra.mxu0 0.0
        %2025 = vmatprep.subr.mxu0 0.0
        %2026 = vmatpush1.msra.mxu0 0.0
        %2027 = vmatprep.mubr.f32.mxu0 0.0
        %2028 = vmatmul.mubr.f32.gmra.mrb[0].mxu0 %v1950
        %v2029 = vpop.f32.mrb[0].mxu0
        %v2030 = vadd.f32 0.0, %v2029
        %v2031 = vpop.f32.mrb[0].mxu0
        %v2032 = vadd.f32 0.0, %v2031
        %2033 = vdwg.mxu0
        %2034 = vmatprep.subr.mxu0 0.0
        %2035 = vmatpush1.msra.mxu0 %v681
        %2036 = vmatprep.subr.mxu0 0.0
        %2037 = vmatpush1.msra.mxu0 %v684
        %2038 = vmatprep.subr.mxu0 0.0
        %2039 = vmatpush1.msra.mxu0 %v687
        %2040 = vmatprep.subr.mxu0 0.0
        %2041 = vmatpush1.msra.mxu0 %v690
        %2042 = vmatprep.subr.mxu0 0.0
        %2043 = vmatpush1.msra.mxu0 %v693
        %2044 = vmatprep.subr.mxu0 0.0
        %2045 = vmatpush1.msra.mxu0 %v696
        %2046 = vmatprep.subr.mxu0 0.0
        %2047 = vmatpush1.msra.mxu0 %v699
        %2048 = vmatprep.subr.mxu0 0.0
        %2049 = vmatpush1.msra.mxu0 %v702
        %2050 = vmatprep.subr.mxu0 0.0
        %2051 = vmatpush1.msra.mxu0 %v705
        %2052 = vmatprep.subr.mxu0 0.0
        %2053 = vmatpush1.msra.mxu0 %v708
        %2054 = vmatprep.subr.mxu0 0.0
        %2055 = vmatpush1.msra.mxu0 %v711
        %2056 = vmatprep.subr.mxu0 0.0
        %2057 = vmatpush1.msra.mxu0 %v714
        %2058 = vmatprep.subr.mxu0 0.0
        %2059 = vmatpush1.msra.mxu0 %v717
        %2060 = vmatprep.subr.mxu0 0.0
        %2061 = vmatpush1.msra.mxu0 %v720
        %2062 = vmatprep.subr.mxu0 0.0
        %2063 = vmatpush1.msra.mxu0 %v723
        %2064 = vmatprep.subr.mxu0 0.0
        %2065 = vmatpush1.msra.mxu0 %v726
        %2066 = vmatprep.subr.mxu0 0.0
        %2067 = vmatpush1.msra.mxu0 0.0
        %2068 = vmatprep.subr.mxu0 0.0
        %2069 = vmatpush1.msra.mxu0 0.0
        %2070 = vmatprep.subr.mxu0 0.0
        %2071 = vmatpush1.msra.mxu0 0.0
        %2072 = vmatprep.subr.mxu0 0.0
        %2073 = vmatpush1.msra.mxu0 0.0
        %2074 = vmatprep.subr.mxu0 0.0
        %2075 = vmatpush1.msra.mxu0 0.0
        %2076 = vmatprep.subr.mxu0 0.0
        %2077 = vmatpush1.msra.mxu0 0.0
        %2078 = vmatprep.subr.mxu0 0.0
        %2079 = vmatpush1.msra.mxu0 0.0
        %2080 = vmatprep.subr.mxu0 0.0
        %2081 = vmatpush1.msra.mxu0 0.0
        %2082 = vmatprep.subr.mxu0 0.0
        %2083 = vmatpush1.msra.mxu0 0.0
        %2084 = vmatprep.subr.mxu0 0.0
        %2085 = vmatpush1.msra.mxu0 0.0
        %2086 = vmatprep.subr.mxu0 0.0
        %2087 = vmatpush1.msra.mxu0 0.0
        %2088 = vmatprep.subr.mxu0 0.0
        %2089 = vmatpush1.msra.mxu0 0.0
        %2090 = vmatprep.subr.mxu0 0.0
        %2091 = vmatpush1.msra.mxu0 0.0
        %2092 = vmatprep.subr.mxu0 0.0
        %2093 = vmatpush1.msra.mxu0 0.0
        %2094 = vmatprep.subr.mxu0 0.0
        %2095 = vmatpush1.msra.mxu0 0.0
        %2096 = vmatprep.subr.mxu0 0.0
        %2097 = vmatpush1.msra.mxu0 0.0
        %2098 = vmatprep.mubr.f32.mxu0 0.0
        %2099 = vmatmul.mubr.f32.gmra.mrb[0].mxu0 %v1950
        %v2100 = vpop.f32.mrb[0].mxu0
        %v2101 = vadd.f32 0.0, %v2100
        %v2102 = vpop.f32.mrb[0].mxu0
        %2103 = vdwg.mxu0
        %v2104 = vadd.f32 %v1960, %v2030
        %v2105 = vxor.u32 %v2104, 2147483648
        %v2106 = vmul.f32 %v2105, 1.442695
        %v2107 = vpow.pop %v2106
        %v2108 = vadd.f32 %v2107, 1.0
        %v2109 = vrcp.pop %v2108
        %v2110 = vmul.f32 1.0, %v2109
        %v2111 = vadd.f32 %v1961, %v2032
        %v2112 = vxor.u32 %v2111, 2147483648
        %v2113 = vmul.f32 %v2112, 1.442695
        %v2114 = vpow.pop %v2113
        %v2115 = vadd.f32 %v2114, 1.0
        %v2116 = vrcp.pop %v2115
        %v2117 = vmul.f32 1.0, %v2116
        %v2118 = vadd.f32 %v2101, %v732
        %v2119 = vmul.f32 %v2110, %v2118
        %v2120 = vadd.f32 %v1962, %v2119
        %v2121 = vtanh.pop %v2120
        %v2122 = vsub.f32 %v1950, %v2121
        %v2123 = vmul.f32 %v2117, %v2122
        %v2124 = vadd.f32 %v2121, %v2123
        %s2125 = scalar_lea.vmem %s363, %s1954 [#allocation12]
        %2126 = vst [vmem:[%s2125] sm:$0xff] %v2124
        %s2127 = sand.u32 %s159, 1
        %s2128 = scalar_lea.sflag [#allocation5], %s2127
        %s2129 = sand.u32 %s159, 1
        %s2130 = smul.addr %s2129, 64
        %s2131 = scalar_lea.vmem [#allocation12], %s2130
        // Predicated region
        $region61: #{tpu_custom_call.1} parent=39 // pred_check
          %p2132 = pneg %p169
        $region62: #{tpu_custom_call.1} parent=39 // pred_check_branch
          %2134 = sbr.rel (%p2132) target = $region64
        $region63: #{tpu_custom_call.1} parent=39 // pred_region
          %s2136 = ssub.s32 1024, 1024
          %2137 = vsyncadd %s2128, %s2136
          %s2138 = smul.addr %s26, 8
          %s2139 = smul.addr %s2138, 128
          %s2140 = scalar_lea.hbm %s5, %s2139
          %s2141 = sshll.u32 %s2131, 4
          %s2142 = int_to_ptr.vmem [resolvable:$true] %s2141
          %2147 = dma.vmem_to_hbm [thread:$0]  %s2142, 1024, %s2140, %s2128, 128, 128, 8
        $region64: #{tpu_custom_call.1} parent=39 // pred_fallthru
          _
      $region40: #{tpu_custom_call.1} parent=5 // pred_fallthru
        _
      %p2148 = scmp.le.s32.totalorder 2, %s21
      // Predicated region
      $region65: #{tpu_custom_call.1} parent=5 // pred_check
        %p2149 = pneg %p2148
      $region66: #{tpu_custom_call.1} parent=5 // pred_check_branch
        %2151 = sbr.rel (%p2149) target = $region68
      $region67: #{tpu_custom_call.1} parent=5 // pred_region
        %s2152 = ssub.s32 %s21, 2
        // Predicated region
        $region69: #{tpu_custom_call.1} parent=67 // pred_check
          %p2153 = pneg %p175
        $region70: #{tpu_custom_call.1} parent=67 // pred_check_branch
          %2155 = sbr.rel (%p2153) target = $region72
        $region71: #{tpu_custom_call.1} parent=67 // pred_region
          %s2156 = sand.u32 %s160, 1
          %s2157 = scalar_lea.sflag [#allocation5], %s2156
          %s2158 = sand.u32 %s160, 1
          %s2159 = smul.addr %s2158, 64
          %s2160 = scalar_lea.vmem [#allocation12], %s2159
          %2161 = dma.done %s2157, 1024
        $region72: #{tpu_custom_call.1} parent=67 // pred_fallthru
          _
      $region68: #{tpu_custom_call.1} parent=5 // pred_fallthru
        _
    $region6: #{tpu_custom_call.1} parent=1 // loop_footer
      %s25 = sadd.s32 1, %s21
    $region7: #{tpu_custom_call.1} parent=1 // loop_footer_branch
      %20 = sbr.rel target = $region3
    $region8: #{tpu_custom_call.1} parent=1 // loop_exit
      _
    %2162 = vsyncpa [#allocation4], 1
    %s2163 = scalar_lea.sflag [#allocation4], 1
    %2164 = vsyncpa %s2163, 1
    %2165 = vsyncpa [#allocation7], 1
    %s2166 = scalar_lea.sflag [#allocation7], 1
    %2167 = vsyncpa %s2166, 1
    %2168 = vsyncpa [#allocation10], 1
    %s2169 = scalar_lea.sflag [#allocation10], 1
    %2170 = vsyncpa %s2169, 1
    %2171 = vsyncpa [#allocation5], 1
    %s2172 = scalar_lea.sflag [#allocation5], 1
    %2173 = vsyncpa %s2172, 1

</llo_original>
